<compile_context>
chip_gen: v7x
topology: tpu7x:2x2x1
jax: 0.10.0
libtpu: 0.0.40
codegen_flags: <defaults>
</compile_context>

<pallas_src>
import jax
import jax.numpy as jnp
from jax import lax
from jax.experimental import pallas as pl
from jax.experimental.pallas import tpu as pltpu


KERNEL = 3
STRIDE = 2
PADDING = 2

ACTS = ("sigmoid", "sigmoid", "sigmoid", "tanh", "sigmoid")


def _conv_out_size(n):
    return (n + 2 * PADDING - KERNEL) // STRIDE + 1


# -----------------------------------------------------------------------------
# One-time parameter packing (hoisted out of the per-call path).
# -----------------------------------------------------------------------------
def pack_conv(w_oihw, bias, w_in):
    """Pack a PyTorch-layout conv weight into the (KH, Win*Cin, Wo*Cout) form
    used by the fused kernel, plus a lane-tiled bias of shape (1, Wo*Cout)."""
    cout, cin, n_kh, n_kw = w_oihw.shape
    wo = _conv_out_size(w_in)
    # sel[kw, col, j] = 1  iff  col == STRIDE*j + kw - PADDING
    # (out-of-range targets simply never match -> implements zero padding)
    kw_idx = jnp.arange(n_kw)[:, None, None]
    col_idx = jnp.arange(w_in)[None, :, None]
    j_idx = jnp.arange(wo)[None, None, :]
    sel = (col_idx == STRIDE * j_idx + kw_idx - PADDING).astype(jnp.float32)
    w_hwio = jnp.transpose(w_oihw, (2, 3, 1, 0))            # (KH, KW, Cin, Cout)
    packed = jnp.einsum("kcj,hkio->hcijo", sel, w_hwio)      # (KH, Win, Cin, Wo, Cout)
    packed = packed.reshape(n_kh, w_in * cin, wo * cout)
    b_tiled = jnp.tile(bias, (wo,)).reshape(1, wo * cout)
    return packed, b_tiled


def pack_params(raw_params, h_in):
    """raw_params: ((w1,b1),(w2,b2),(w3,b3),(w4,b4)) in PyTorch OIHW layout."""
    (w1, b1), (w2, b2), (w3, b3), (w4, b4) = raw_params
    sizes = [h_in]
    for _ in range(5):
        sizes.append(_conv_out_size(sizes[-1]))
    layer_weights = [
        (w1, b1),
        (w2, b2),
        (w2[:, :16], b2),   # stand-in for the ill-typed second conv2 (see TODO above)
        (w3, b3),
        (w4, b4),
    ]
    return tuple(pack_conv(w, b, sizes[i]) for i, (w, b) in enumerate(layer_weights))


# -----------------------------------------------------------------------------
# Fused Pallas kernel: all five conv+activation layers in one body.
# -----------------------------------------------------------------------------
def _make_fused_kernel(layer_cfg):
    """layer_cfg: tuple of (h_in, h_out, activation) per layer (static)."""

    def kernel(*refs):
        x_ref, o_ref = refs[0], refs[-1]
        x = x_ref[...]                                   # (H0, W0*Cin0)
        for li, (h_in, h_out, act) in enumerate(layer_cfg):
            w_ref = refs[1 + 2 * li]                     # (KH, Win*Cin, Wo*Cout)
            b_ref = refs[2 + 2 * li]                     # (1, Wo*Cout)
            n_cols = w_ref.shape[-1]
            out_row = lax.broadcasted_iota(jnp.int32, (h_out, h_in), 0)
            in_row = lax.broadcasted_iota(jnp.int32, (h_out, h_in), 1)
            acc = jnp.zeros((h_out, n_cols), jnp.float32)
            for kh in range(KERNEL):
                # 0/1 selection matrix: picks padded input row (STRIDE*i + kh)
                sel = (in_row == STRIDE * out_row + (kh - PADDING)).astype(jnp.float32)
                rows = jnp.dot(sel, x, preferred_element_type=jnp.float32)
                acc = acc + jnp.dot(rows, w_ref[kh],
                                    preferred_element_type=jnp.float32)
            acc = acc + b_ref[...]
            if act == "tanh":
                x = jnp.tanh(acc)
            else:  # sigmoid (exp/divide run on the EUP, effectively free here)
                x = 1.0 / (1.0 + jnp.exp(-acc))
        o_ref[...] = x.astype(o_ref.dtype)

    return kernel


@jax.jit
def model_forward(x_nchw, packed):
    n, cin, h, w = x_nchw.shape
    assert n == 1 and cin == 1 and h == w, (n, cin, h, w)

    heights = [h]
    for _ in range(5):
        heights.append(_conv_out_size(heights[-1]))
    layer_cfg = tuple((heights[i], heights[i + 1], ACTS[i]) for i in range(5))

    x2d = x_nchw[0, 0]                                   # (H, W)  == (H, W*Cin)

    flat = [x2d]
    for wp, bt in packed:
        flat += [wp, bt]

    ho_f = heights[5]
    wo_f = heights[5]
    cout_f = packed[-1][0].shape[-1] // wo_f

    out2d = pl.pallas_call(
        _make_fused_kernel(layer_cfg),
        out_shape=jax.ShapeDtypeStruct((ho_f, wo_f * cout_f), jnp.float32),
        in_specs=[pl.BlockSpec(memory_space=pltpu.MemorySpace.VMEM)] * len(flat),
        out_specs=pl.BlockSpec(memory_space=pltpu.MemorySpace.VMEM),
    )(*flat)

    out = out2d.reshape(ho_f, wo_f, cout_f)
    return jnp.transpose(out, (2, 0, 1))[None]           # NCHW


# -----------------------------------------------------------------------------
# Reference (pure XLA) implementation for a correctness check.
# -----------------------------------------------------------------------------
def reference_forward(x_nchw, raw_params):
    (w1, b1), (w2, b2), (w3, b3), (w4, b4) = raw_params
    x = jnp.transpose(x_nchw, (0, 2, 3, 1))

    def conv(x, w, b):
        y = lax.conv_general_dilated(
            x, jnp.transpose(w, (2, 3, 1, 0)),
            window_strides=(STRIDE, STRIDE),
            padding=((PADDING, PADDING), (PADDING, PADDING)),
            dimension_numbers=("NHWC", "HWIO", "NHWC"),
            precision=lax.Precision.HIGHEST)
        return y + b

    x = jax.nn.sigmoid(conv(x, w1, b1))
    x = jax.nn.sigmoid(conv(x, w2, b2))
    x = jax.nn.sigmoid(conv(x, w2[:, :16], b2))
    x = jnp.tanh(conv(x, w3, b3))
    x = jax.nn.sigmoid(conv(x, w4, b4))
    return jnp.transpose(x, (0, 3, 1, 2))


def _init_conv_params(key, cout, cin, k):
    """Deterministic init mimicking PyTorch's default Conv2d init."""
    kw_key, kb_key = jax.random.split(key)
    fan_in = cin * k * k
    bound = 1.0 / (fan_in ** 0.5)
    w = jax.random.uniform(kw_key, (cout, cin, k, k), jnp.float32, -bound, bound)
    b = jax.random.uniform(kb_key, (cout,), jnp.float32, -bound, bound)
    return w, b


if __name__ == "__main__":
    root = jax.random.PRNGKey(0)
    kx, k1, k2, k3, k4 = jax.random.split(root, 5)

    # Small input consistent with the module: N=1, Cin=1, spatial 32x32 (NCHW).
    H = W = 32
    x = jax.random.normal(kx, (1, 1, H, W), jnp.float32)

    raw_params = (
        _init_conv_params(k1, 32, 1, 3),   # conv1
        _init_conv_params(k2, 16, 32, 3),  # conv2
        _init_conv_params(k3, 16, 16, 3),  # conv3
        _init_conv_params(k4, 16, 16, 3),  # conv4
    )

    # One-time weight repacking (hoisted out of the forward pass).
    packed = pack_params(raw_params, H)

    out = jax.block_until_ready(model_forward(x, packed))
    assert out.shape == (1, 16, 3, 3), out.shape

    ref = jax.block_until_ready(reference_forward(x, raw_params))
    max_err = float(jnp.max(jnp.abs(out - ref)))
    assert max_err < 5e-3, f"max abs error vs reference: {max_err}"

    print("KERNEL_OK")
</pallas_src>

<mosaic_0001>
module attributes {stable_mosaic.version = 11 : i64} {
  func.func @kernel(%arg0: memref<32x32xf32, #tpu.memory_space<vmem>>, %arg1: memref<3x32x544xf32, #tpu.memory_space<vmem>>, %arg2: memref<1x544xf32, #tpu.memory_space<vmem>>, %arg3: memref<3x544x160xf32, #tpu.memory_space<vmem>>, %arg4: memref<1x160xf32, #tpu.memory_space<vmem>>, %arg5: memref<3x160x96xf32, #tpu.memory_space<vmem>>, %arg6: memref<1x96xf32, #tpu.memory_space<vmem>>, %arg7: memref<3x96x64xf32, #tpu.memory_space<vmem>>, %arg8: memref<1x64xf32, #tpu.memory_space<vmem>>, %arg9: memref<3x64x48xf32, #tpu.memory_space<vmem>>, %arg10: memref<1x48xf32, #tpu.memory_space<vmem>>, %arg11: memref<3x48xf32, #tpu.memory_space<vmem>>) attributes {dimension_semantics = [], scalar_prefetch = 0 : i64, scratch_operands = 0 : i64, tpu.core_type = #tpu.core_type<tc>} {
    %c0 = arith.constant 0 : index
    %c0_0 = arith.constant 0 : index
    %0 = vector.load %arg0[%c0, %c0_0] : memref<32x32xf32, #tpu.memory_space<vmem>>, vector<32x32xf32>
    %1 = tpu.iota {dimensions = array<i32: 0>} : vector<17x32xi32>
    %2 = tpu.iota {dimensions = array<i32: 1>} : vector<17x32xi32>
    %cst = arith.constant 0.000000e+00 : f32
    %3 = vector.broadcast %cst : f32 to vector<17x544xf32>
    %c2_i32 = arith.constant 2 : i32
    %4 = vector.broadcast %c2_i32 : i32 to vector<17x32xi32>
    %5 = arith.muli %4, %1 : vector<17x32xi32>
    %c-2_i32 = arith.constant -2 : i32
    %6 = vector.broadcast %c-2_i32 : i32 to vector<17x32xi32>
    %7 = arith.addi %5, %6 : vector<17x32xi32>
    %8 = arith.cmpi eq, %2, %7 : vector<17x32xi32>
    %9 = arith.extui %8 : vector<17x32xi1> to vector<17x32xi32>
    %10 = arith.sitofp %9 : vector<17x32xi32> to vector<17x32xf32>
    %cst_1 = arith.constant dense<0.000000e+00> : vector<17x32xf32>
    %11 = tpu.matmul %10, %0, %cst_1 {dimension_numbers = #tpu.dot_dimension_numbers<[1], [0], [0], [1], [0, 0, 1, 1], [], []>} : vector<17x32xf32>, vector<32x32xf32>, vector<17x32xf32> -> vector<17x32xf32>
    %c0_2 = arith.constant 0 : index
    %c0_3 = arith.constant 0 : index
    %c0_4 = arith.constant 0 : index
    %12 = vector.load %arg1[%c0_2, %c0_3, %c0_4] : memref<3x32x544xf32, #tpu.memory_space<vmem>>, vector<1x32x544xf32>
    %13 = vector.shape_cast %12 : vector<1x32x544xf32> to vector<32x544xf32>
    %cst_5 = arith.constant dense<0.000000e+00> : vector<17x544xf32>
    %14 = tpu.matmul %11, %13, %cst_5 {dimension_numbers = #tpu.dot_dimension_numbers<[1], [0], [0], [1], [0, 0, 1, 1], [], []>} : vector<17x32xf32>, vector<32x544xf32>, vector<17x544xf32> -> vector<17x544xf32>
    %15 = arith.addf %3, %14 : vector<17x544xf32>
    %c2_i32_6 = arith.constant 2 : i32
    %16 = vector.broadcast %c2_i32_6 : i32 to vector<17x32xi32>
    %17 = arith.muli %16, %1 : vector<17x32xi32>
    %c-1_i32 = arith.constant -1 : i32
    %18 = vector.broadcast %c-1_i32 : i32 to vector<17x32xi32>
    %19 = arith.addi %17, %18 : vector<17x32xi32>
    %20 = arith.cmpi eq, %2, %19 : vector<17x32xi32>
    %21 = arith.extui %20 : vector<17x32xi1> to vector<17x32xi32>
    %22 = arith.sitofp %21 : vector<17x32xi32> to vector<17x32xf32>
    %cst_7 = arith.constant dense<0.000000e+00> : vector<17x32xf32>
    %23 = tpu.matmul %22, %0, %cst_7 {dimension_numbers = #tpu.dot_dimension_numbers<[1], [0], [0], [1], [0, 0, 1, 1], [], []>} : vector<17x32xf32>, vector<32x32xf32>, vector<17x32xf32> -> vector<17x32xf32>
    %c1 = arith.constant 1 : index
    %c0_8 = arith.constant 0 : index
    %c0_9 = arith.constant 0 : index
    %24 = vector.load %arg1[%c1, %c0_8, %c0_9] : memref<3x32x544xf32, #tpu.memory_space<vmem>>, vector<1x32x544xf32>
    %25 = vector.shape_cast %24 : vector<1x32x544xf32> to vector<32x544xf32>
    %cst_10 = arith.constant dense<0.000000e+00> : vector<17x544xf32>
    %26 = tpu.matmul %23, %25, %cst_10 {dimension_numbers = #tpu.dot_dimension_numbers<[1], [0], [0], [1], [0, 0, 1, 1], [], []>} : vector<17x32xf32>, vector<32x544xf32>, vector<17x544xf32> -> vector<17x544xf32>
    %27 = arith.addf %15, %26 : vector<17x544xf32>
    %c2_i32_11 = arith.constant 2 : i32
    %28 = vector.broadcast %c2_i32_11 : i32 to vector<17x32xi32>
    %29 = arith.muli %28, %1 : vector<17x32xi32>
    %c0_i32 = arith.constant 0 : i32
    %30 = vector.broadcast %c0_i32 : i32 to vector<17x32xi32>
    %31 = arith.addi %29, %30 : vector<17x32xi32>
    %32 = arith.cmpi eq, %2, %31 : vector<17x32xi32>
    %33 = arith.extui %32 : vector<17x32xi1> to vector<17x32xi32>
    %34 = arith.sitofp %33 : vector<17x32xi32> to vector<17x32xf32>
    %cst_12 = arith.constant dense<0.000000e+00> : vector<17x32xf32>
    %35 = tpu.matmul %34, %0, %cst_12 {dimension_numbers = #tpu.dot_dimension_numbers<[1], [0], [0], [1], [0, 0, 1, 1], [], []>} : vector<17x32xf32>, vector<32x32xf32>, vector<17x32xf32> -> vector<17x32xf32>
    %c2 = arith.constant 2 : index
    %c0_13 = arith.constant 0 : index
    %c0_14 = arith.constant 0 : index
    %36 = vector.load %arg1[%c2, %c0_13, %c0_14] : memref<3x32x544xf32, #tpu.memory_space<vmem>>, vector<1x32x544xf32>
    %37 = vector.shape_cast %36 : vector<1x32x544xf32> to vector<32x544xf32>
    %cst_15 = arith.constant dense<0.000000e+00> : vector<17x544xf32>
    %38 = tpu.matmul %35, %37, %cst_15 {dimension_numbers = #tpu.dot_dimension_numbers<[1], [0], [0], [1], [0, 0, 1, 1], [], []>} : vector<17x32xf32>, vector<32x544xf32>, vector<17x544xf32> -> vector<17x544xf32>
    %39 = arith.addf %27, %38 : vector<17x544xf32>
    %c0_16 = arith.constant 0 : index
    %c0_17 = arith.constant 0 : index
    %40 = vector.load %arg2[%c0_16, %c0_17] : memref<1x544xf32, #tpu.memory_space<vmem>>, vector<1x544xf32>
    %41 = vector.broadcast %40 : vector<1x544xf32> to vector<17x544xf32>
    %42 = arith.addf %39, %41 : vector<17x544xf32>
    %cst_18 = arith.constant 0.000000e+00 : f32
    %43 = vector.broadcast %cst_18 : f32 to vector<17x544xf32>
    %44 = arith.subf %43, %42 : vector<17x544xf32>
    %45 = math.exp %44 : vector<17x544xf32>
    %cst_19 = arith.constant 1.000000e+00 : f32
    %46 = vector.broadcast %cst_19 : f32 to vector<17x544xf32>
    %47 = arith.addf %46, %45 : vector<17x544xf32>
    %cst_20 = arith.constant 1.000000e+00 : f32
    %48 = vector.broadcast %cst_20 : f32 to vector<17x544xf32>
    %49 = arith.divf %48, %47 : vector<17x544xf32>
    %50 = tpu.iota {dimensions = array<i32: 0>} : vector<10x17xi32>
    %51 = tpu.iota {dimensions = array<i32: 1>} : vector<10x17xi32>
    %cst_21 = arith.constant 0.000000e+00 : f32
    %52 = vector.broadcast %cst_21 : f32 to vector<10x160xf32>
    %c2_i32_22 = arith.constant 2 : i32
    %53 = vector.broadcast %c2_i32_22 : i32 to vector<10x17xi32>
    %54 = arith.muli %53, %50 : vector<10x17xi32>
    %c-2_i32_23 = arith.constant -2 : i32
    %55 = vector.broadcast %c-2_i32_23 : i32 to vector<10x17xi32>
    %56 = arith.addi %54, %55 : vector<10x17xi32>
    %57 = arith.cmpi eq, %51, %56 : vector<10x17xi32>
    %58 = arith.extui %57 : vector<10x17xi1> to vector<10x17xi32>
    %59 = arith.sitofp %58 : vector<10x17xi32> to vector<10x17xf32>
    %cst_24 = arith.constant dense<0.000000e+00> : vector<10x544xf32>
    %60 = tpu.matmul %59, %49, %cst_24 {dimension_numbers = #tpu.dot_dimension_numbers<[1], [0], [0], [1], [0, 0, 1, 1], [], []>} : vector<10x17xf32>, vector<17x544xf32>, vector<10x544xf32> -> vector<10x544xf32>
    %c0_25 = arith.constant 0 : index
    %c0_26 = arith.constant 0 : index
    %c0_27 = arith.constant 0 : index
    %61 = vector.load %arg3[%c0_25, %c0_26, %c0_27] : memref<3x544x160xf32, #tpu.memory_space<vmem>>, vector<1x544x160xf32>
    %62 = vector.shape_cast %61 : vector<1x544x160xf32> to vector<544x160xf32>
    %cst_28 = arith.constant dense<0.000000e+00> : vector<10x160xf32>
    %63 = tpu.matmul %60, %62, %cst_28 {dimension_numbers = #tpu.dot_dimension_numbers<[1], [0], [0], [1], [0, 0, 1, 1], [], []>} : vector<10x544xf32>, vector<544x160xf32>, vector<10x160xf32> -> vector<10x160xf32>
    %64 = arith.addf %52, %63 : vector<10x160xf32>
    %c2_i32_29 = arith.constant 2 : i32
    %65 = vector.broadcast %c2_i32_29 : i32 to vector<10x17xi32>
    %66 = arith.muli %65, %50 : vector<10x17xi32>
    %c-1_i32_30 = arith.constant -1 : i32
    %67 = vector.broadcast %c-1_i32_30 : i32 to vector<10x17xi32>
    %68 = arith.addi %66, %67 : vector<10x17xi32>
    %69 = arith.cmpi eq, %51, %68 : vector<10x17xi32>
    %70 = arith.extui %69 : vector<10x17xi1> to vector<10x17xi32>
    %71 = arith.sitofp %70 : vector<10x17xi32> to vector<10x17xf32>
    %cst_31 = arith.constant dense<0.000000e+00> : vector<10x544xf32>
    %72 = tpu.matmul %71, %49, %cst_31 {dimension_numbers = #tpu.dot_dimension_numbers<[1], [0], [0], [1], [0, 0, 1, 1], [], []>} : vector<10x17xf32>, vector<17x544xf32>, vector<10x544xf32> -> vector<10x544xf32>
    %c1_32 = arith.constant 1 : index
    %c0_33 = arith.constant 0 : index
    %c0_34 = arith.constant 0 : index
    %73 = vector.load %arg3[%c1_32, %c0_33, %c0_34] : memref<3x544x160xf32, #tpu.memory_space<vmem>>, vector<1x544x160xf32>
    %74 = vector.shape_cast %73 : vector<1x544x160xf32> to vector<544x160xf32>
    %cst_35 = arith.constant dense<0.000000e+00> : vector<10x160xf32>
    %75 = tpu.matmul %72, %74, %cst_35 {dimension_numbers = #tpu.dot_dimension_numbers<[1], [0], [0], [1], [0, 0, 1, 1], [], []>} : vector<10x544xf32>, vector<544x160xf32>, vector<10x160xf32> -> vector<10x160xf32>
    %76 = arith.addf %64, %75 : vector<10x160xf32>
    %c2_i32_36 = arith.constant 2 : i32
    %77 = vector.broadcast %c2_i32_36 : i32 to vector<10x17xi32>
    %78 = arith.muli %77, %50 : vector<10x17xi32>
    %c0_i32_37 = arith.constant 0 : i32
    %79 = vector.broadcast %c0_i32_37 : i32 to vector<10x17xi32>
    %80 = arith.addi %78, %79 : vector<10x17xi32>
    %81 = arith.cmpi eq, %51, %80 : vector<10x17xi32>
    %82 = arith.extui %81 : vector<10x17xi1> to vector<10x17xi32>
    %83 = arith.sitofp %82 : vector<10x17xi32> to vector<10x17xf32>
    %cst_38 = arith.constant dense<0.000000e+00> : vector<10x544xf32>
    %84 = tpu.matmul %83, %49, %cst_38 {dimension_numbers = #tpu.dot_dimension_numbers<[1], [0], [0], [1], [0, 0, 1, 1], [], []>} : vector<10x17xf32>, vector<17x544xf32>, vector<10x544xf32> -> vector<10x544xf32>
    %c2_39 = arith.constant 2 : index
    %c0_40 = arith.constant 0 : index
    %c0_41 = arith.constant 0 : index
    %85 = vector.load %arg3[%c2_39, %c0_40, %c0_41] : memref<3x544x160xf32, #tpu.memory_space<vmem>>, vector<1x544x160xf32>
    %86 = vector.shape_cast %85 : vector<1x544x160xf32> to vector<544x160xf32>
    %cst_42 = arith.constant dense<0.000000e+00> : vector<10x160xf32>
    %87 = tpu.matmul %84, %86, %cst_42 {dimension_numbers = #tpu.dot_dimension_numbers<[1], [0], [0], [1], [0, 0, 1, 1], [], []>} : vector<10x544xf32>, vector<544x160xf32>, vector<10x160xf32> -> vector<10x160xf32>
    %88 = arith.addf %76, %87 : vector<10x160xf32>
    %c0_43 = arith.constant 0 : index
    %c0_44 = arith.constant 0 : index
    %89 = vector.load %arg4[%c0_43, %c0_44] : memref<1x160xf32, #tpu.memory_space<vmem>>, vector<1x160xf32>
    %90 = vector.broadcast %89 : vector<1x160xf32> to vector<10x160xf32>
    %91 = arith.addf %88, %90 : vector<10x160xf32>
    %cst_45 = arith.constant 0.000000e+00 : f32
    %92 = vector.broadcast %cst_45 : f32 to vector<10x160xf32>
    %93 = arith.subf %92, %91 : vector<10x160xf32>
    %94 = math.exp %93 : vector<10x160xf32>
    %cst_46 = arith.constant 1.000000e+00 : f32
    %95 = vector.broadcast %cst_46 : f32 to vector<10x160xf32>
    %96 = arith.addf %95, %94 : vector<10x160xf32>
    %cst_47 = arith.constant 1.000000e+00 : f32
    %97 = vector.broadcast %cst_47 : f32 to vector<10x160xf32>
    %98 = arith.divf %97, %96 : vector<10x160xf32>
    %99 = tpu.iota {dimensions = array<i32: 0>} : vector<6x10xi32>
    %100 = tpu.iota {dimensions = array<i32: 1>} : vector<6x10xi32>
    %cst_48 = arith.constant 0.000000e+00 : f32
    %101 = vector.broadcast %cst_48 : f32 to vector<6x96xf32>
    %c2_i32_49 = arith.constant 2 : i32
    %102 = vector.broadcast %c2_i32_49 : i32 to vector<6x10xi32>
    %103 = arith.muli %102, %99 : vector<6x10xi32>
    %c-2_i32_50 = arith.constant -2 : i32
    %104 = vector.broadcast %c-2_i32_50 : i32 to vector<6x10xi32>
    %105 = arith.addi %103, %104 : vector<6x10xi32>
    %106 = arith.cmpi eq, %100, %105 : vector<6x10xi32>
    %107 = arith.extui %106 : vector<6x10xi1> to vector<6x10xi32>
    %108 = arith.sitofp %107 : vector<6x10xi32> to vector<6x10xf32>
    %cst_51 = arith.constant dense<0.000000e+00> : vector<6x160xf32>
    %109 = tpu.matmul %108, %98, %cst_51 {dimension_numbers = #tpu.dot_dimension_numbers<[1], [0], [0], [1], [0, 0, 1, 1], [], []>} : vector<6x10xf32>, vector<10x160xf32>, vector<6x160xf32> -> vector<6x160xf32>
    %c0_52 = arith.constant 0 : index
    %c0_53 = arith.constant 0 : index
    %c0_54 = arith.constant 0 : index
    %110 = vector.load %arg5[%c0_52, %c0_53, %c0_54] : memref<3x160x96xf32, #tpu.memory_space<vmem>>, vector<1x160x96xf32>
    %111 = vector.shape_cast %110 : vector<1x160x96xf32> to vector<160x96xf32>
    %cst_55 = arith.constant dense<0.000000e+00> : vector<6x96xf32>
    %112 = tpu.matmul %109, %111, %cst_55 {dimension_numbers = #tpu.dot_dimension_numbers<[1], [0], [0], [1], [0, 0, 1, 1], [], []>} : vector<6x160xf32>, vector<160x96xf32>, vector<6x96xf32> -> vector<6x96xf32>
    %113 = arith.addf %101, %112 : vector<6x96xf32>
    %c2_i32_56 = arith.constant 2 : i32
    %114 = vector.broadcast %c2_i32_56 : i32 to vector<6x10xi32>
    %115 = arith.muli %114, %99 : vector<6x10xi32>
    %c-1_i32_57 = arith.constant -1 : i32
    %116 = vector.broadcast %c-1_i32_57 : i32 to vector<6x10xi32>
    %117 = arith.addi %115, %116 : vector<6x10xi32>
    %118 = arith.cmpi eq, %100, %117 : vector<6x10xi32>
    %119 = arith.extui %118 : vector<6x10xi1> to vector<6x10xi32>
    %120 = arith.sitofp %119 : vector<6x10xi32> to vector<6x10xf32>
    %cst_58 = arith.constant dense<0.000000e+00> : vector<6x160xf32>
    %121 = tpu.matmul %120, %98, %cst_58 {dimension_numbers = #tpu.dot_dimension_numbers<[1], [0], [0], [1], [0, 0, 1, 1], [], []>} : vector<6x10xf32>, vector<10x160xf32>, vector<6x160xf32> -> vector<6x160xf32>
    %c1_59 = arith.constant 1 : index
    %c0_60 = arith.constant 0 : index
    %c0_61 = arith.constant 0 : index
    %122 = vector.load %arg5[%c1_59, %c0_60, %c0_61] : memref<3x160x96xf32, #tpu.memory_space<vmem>>, vector<1x160x96xf32>
    %123 = vector.shape_cast %122 : vector<1x160x96xf32> to vector<160x96xf32>
    %cst_62 = arith.constant dense<0.000000e+00> : vector<6x96xf32>
    %124 = tpu.matmul %121, %123, %cst_62 {dimension_numbers = #tpu.dot_dimension_numbers<[1], [0], [0], [1], [0, 0, 1, 1], [], []>} : vector<6x160xf32>, vector<160x96xf32>, vector<6x96xf32> -> vector<6x96xf32>
    %125 = arith.addf %113, %124 : vector<6x96xf32>
    %c2_i32_63 = arith.constant 2 : i32
    %126 = vector.broadcast %c2_i32_63 : i32 to vector<6x10xi32>
    %127 = arith.muli %126, %99 : vector<6x10xi32>
    %c0_i32_64 = arith.constant 0 : i32
    %128 = vector.broadcast %c0_i32_64 : i32 to vector<6x10xi32>
    %129 = arith.addi %127, %128 : vector<6x10xi32>
    %130 = arith.cmpi eq, %100, %129 : vector<6x10xi32>
    %131 = arith.extui %130 : vector<6x10xi1> to vector<6x10xi32>
    %132 = arith.sitofp %131 : vector<6x10xi32> to vector<6x10xf32>
    %cst_65 = arith.constant dense<0.000000e+00> : vector<6x160xf32>
    %133 = tpu.matmul %132, %98, %cst_65 {dimension_numbers = #tpu.dot_dimension_numbers<[1], [0], [0], [1], [0, 0, 1, 1], [], []>} : vector<6x10xf32>, vector<10x160xf32>, vector<6x160xf32> -> vector<6x160xf32>
    %c2_66 = arith.constant 2 : index
    %c0_67 = arith.constant 0 : index
    %c0_68 = arith.constant 0 : index
    %134 = vector.load %arg5[%c2_66, %c0_67, %c0_68] : memref<3x160x96xf32, #tpu.memory_space<vmem>>, vector<1x160x96xf32>
    %135 = vector.shape_cast %134 : vector<1x160x96xf32> to vector<160x96xf32>
    %cst_69 = arith.constant dense<0.000000e+00> : vector<6x96xf32>
    %136 = tpu.matmul %133, %135, %cst_69 {dimension_numbers = #tpu.dot_dimension_numbers<[1], [0], [0], [1], [0, 0, 1, 1], [], []>} : vector<6x160xf32>, vector<160x96xf32>, vector<6x96xf32> -> vector<6x96xf32>
    %137 = arith.addf %125, %136 : vector<6x96xf32>
    %c0_70 = arith.constant 0 : index
    %c0_71 = arith.constant 0 : index
    %138 = vector.load %arg6[%c0_70, %c0_71] : memref<1x96xf32, #tpu.memory_space<vmem>>, vector<1x96xf32>
    %139 = vector.broadcast %138 : vector<1x96xf32> to vector<6x96xf32>
    %140 = arith.addf %137, %139 : vector<6x96xf32>
    %cst_72 = arith.constant 0.000000e+00 : f32
    %141 = vector.broadcast %cst_72 : f32 to vector<6x96xf32>
    %142 = arith.subf %141, %140 : vector<6x96xf32>
    %143 = math.exp %142 : vector<6x96xf32>
    %cst_73 = arith.constant 1.000000e+00 : f32
    %144 = vector.broadcast %cst_73 : f32 to vector<6x96xf32>
    %145 = arith.addf %144, %143 : vector<6x96xf32>
    %cst_74 = arith.constant 1.000000e+00 : f32
    %146 = vector.broadcast %cst_74 : f32 to vector<6x96xf32>
    %147 = arith.divf %146, %145 : vector<6x96xf32>
    %148 = tpu.iota {dimensions = array<i32: 0>} : vector<4x6xi32>
    %149 = tpu.iota {dimensions = array<i32: 1>} : vector<4x6xi32>
    %cst_75 = arith.constant 0.000000e+00 : f32
    %150 = vector.broadcast %cst_75 : f32 to vector<4x64xf32>
    %c2_i32_76 = arith.constant 2 : i32
    %151 = vector.broadcast %c2_i32_76 : i32 to vector<4x6xi32>
    %152 = arith.muli %151, %148 : vector<4x6xi32>
    %c-2_i32_77 = arith.constant -2 : i32
    %153 = vector.broadcast %c-2_i32_77 : i32 to vector<4x6xi32>
    %154 = arith.addi %152, %153 : vector<4x6xi32>
    %155 = arith.cmpi eq, %149, %154 : vector<4x6xi32>
    %156 = arith.extui %155 : vector<4x6xi1> to vector<4x6xi32>
    %157 = arith.sitofp %156 : vector<4x6xi32> to vector<4x6xf32>
    %cst_78 = arith.constant dense<0.000000e+00> : vector<4x96xf32>
    %158 = tpu.matmul %157, %147, %cst_78 {dimension_numbers = #tpu.dot_dimension_numbers<[1], [0], [0], [1], [0, 0, 1, 1], [], []>} : vector<4x6xf32>, vector<6x96xf32>, vector<4x96xf32> -> vector<4x96xf32>
    %c0_79 = arith.constant 0 : index
    %c0_80 = arith.constant 0 : index
    %c0_81 = arith.constant 0 : index
    %159 = vector.load %arg7[%c0_79, %c0_80, %c0_81] : memref<3x96x64xf32, #tpu.memory_space<vmem>>, vector<1x96x64xf32>
    %160 = vector.shape_cast %159 : vector<1x96x64xf32> to vector<96x64xf32>
    %cst_82 = arith.constant dense<0.000000e+00> : vector<4x64xf32>
    %161 = tpu.matmul %158, %160, %cst_82 {dimension_numbers = #tpu.dot_dimension_numbers<[1], [0], [0], [1], [0, 0, 1, 1], [], []>} : vector<4x96xf32>, vector<96x64xf32>, vector<4x64xf32> -> vector<4x64xf32>
    %162 = arith.addf %150, %161 : vector<4x64xf32>
    %c2_i32_83 = arith.constant 2 : i32
    %163 = vector.broadcast %c2_i32_83 : i32 to vector<4x6xi32>
    %164 = arith.muli %163, %148 : vector<4x6xi32>
    %c-1_i32_84 = arith.constant -1 : i32
    %165 = vector.broadcast %c-1_i32_84 : i32 to vector<4x6xi32>
    %166 = arith.addi %164, %165 : vector<4x6xi32>
    %167 = arith.cmpi eq, %149, %166 : vector<4x6xi32>
    %168 = arith.extui %167 : vector<4x6xi1> to vector<4x6xi32>
    %169 = arith.sitofp %168 : vector<4x6xi32> to vector<4x6xf32>
    %cst_85 = arith.constant dense<0.000000e+00> : vector<4x96xf32>
    %170 = tpu.matmul %169, %147, %cst_85 {dimension_numbers = #tpu.dot_dimension_numbers<[1], [0], [0], [1], [0, 0, 1, 1], [], []>} : vector<4x6xf32>, vector<6x96xf32>, vector<4x96xf32> -> vector<4x96xf32>
    %c1_86 = arith.constant 1 : index
    %c0_87 = arith.constant 0 : index
    %c0_88 = arith.constant 0 : index
    %171 = vector.load %arg7[%c1_86, %c0_87, %c0_88] : memref<3x96x64xf32, #tpu.memory_space<vmem>>, vector<1x96x64xf32>
    %172 = vector.shape_cast %171 : vector<1x96x64xf32> to vector<96x64xf32>
    %cst_89 = arith.constant dense<0.000000e+00> : vector<4x64xf32>
    %173 = tpu.matmul %170, %172, %cst_89 {dimension_numbers = #tpu.dot_dimension_numbers<[1], [0], [0], [1], [0, 0, 1, 1], [], []>} : vector<4x96xf32>, vector<96x64xf32>, vector<4x64xf32> -> vector<4x64xf32>
    %174 = arith.addf %162, %173 : vector<4x64xf32>
    %c2_i32_90 = arith.constant 2 : i32
    %175 = vector.broadcast %c2_i32_90 : i32 to vector<4x6xi32>
    %176 = arith.muli %175, %148 : vector<4x6xi32>
    %c0_i32_91 = arith.constant 0 : i32
    %177 = vector.broadcast %c0_i32_91 : i32 to vector<4x6xi32>
    %178 = arith.addi %176, %177 : vector<4x6xi32>
    %179 = arith.cmpi eq, %149, %178 : vector<4x6xi32>
    %180 = arith.extui %179 : vector<4x6xi1> to vector<4x6xi32>
    %181 = arith.sitofp %180 : vector<4x6xi32> to vector<4x6xf32>
    %cst_92 = arith.constant dense<0.000000e+00> : vector<4x96xf32>
    %182 = tpu.matmul %181, %147, %cst_92 {dimension_numbers = #tpu.dot_dimension_numbers<[1], [0], [0], [1], [0, 0, 1, 1], [], []>} : vector<4x6xf32>, vector<6x96xf32>, vector<4x96xf32> -> vector<4x96xf32>
    %c2_93 = arith.constant 2 : index
    %c0_94 = arith.constant 0 : index
    %c0_95 = arith.constant 0 : index
    %183 = vector.load %arg7[%c2_93, %c0_94, %c0_95] : memref<3x96x64xf32, #tpu.memory_space<vmem>>, vector<1x96x64xf32>
    %184 = vector.shape_cast %183 : vector<1x96x64xf32> to vector<96x64xf32>
    %cst_96 = arith.constant dense<0.000000e+00> : vector<4x64xf32>
    %185 = tpu.matmul %182, %184, %cst_96 {dimension_numbers = #tpu.dot_dimension_numbers<[1], [0], [0], [1], [0, 0, 1, 1], [], []>} : vector<4x96xf32>, vector<96x64xf32>, vector<4x64xf32> -> vector<4x64xf32>
    %186 = arith.addf %174, %185 : vector<4x64xf32>
    %c0_97 = arith.constant 0 : index
    %c0_98 = arith.constant 0 : index
    %187 = vector.load %arg8[%c0_97, %c0_98] : memref<1x64xf32, #tpu.memory_space<vmem>>, vector<1x64xf32>
    %188 = vector.broadcast %187 : vector<1x64xf32> to vector<4x64xf32>
    %189 = arith.addf %186, %188 : vector<4x64xf32>
    %190 = math.tanh %189 : vector<4x64xf32>
    %191 = tpu.iota {dimensions = array<i32: 0>} : vector<3x4xi32>
    %192 = tpu.iota {dimensions = array<i32: 1>} : vector<3x4xi32>
    %cst_99 = arith.constant 0.000000e+00 : f32
    %193 = vector.broadcast %cst_99 : f32 to vector<3x48xf32>
    %c2_i32_100 = arith.constant 2 : i32
    %194 = vector.broadcast %c2_i32_100 : i32 to vector<3x4xi32>
    %195 = arith.muli %194, %191 : vector<3x4xi32>
    %c-2_i32_101 = arith.constant -2 : i32
    %196 = vector.broadcast %c-2_i32_101 : i32 to vector<3x4xi32>
    %197 = arith.addi %195, %196 : vector<3x4xi32>
    %198 = arith.cmpi eq, %192, %197 : vector<3x4xi32>
    %199 = arith.extui %198 : vector<3x4xi1> to vector<3x4xi32>
    %200 = arith.sitofp %199 : vector<3x4xi32> to vector<3x4xf32>
    %cst_102 = arith.constant dense<0.000000e+00> : vector<3x64xf32>
    %201 = tpu.matmul %200, %190, %cst_102 {dimension_numbers = #tpu.dot_dimension_numbers<[1], [0], [0], [1], [0, 0, 1, 1], [], []>} : vector<3x4xf32>, vector<4x64xf32>, vector<3x64xf32> -> vector<3x64xf32>
    %c0_103 = arith.constant 0 : index
    %c0_104 = arith.constant 0 : index
    %c0_105 = arith.constant 0 : index
    %202 = vector.load %arg9[%c0_103, %c0_104, %c0_105] : memref<3x64x48xf32, #tpu.memory_space<vmem>>, vector<1x64x48xf32>
    %203 = vector.shape_cast %202 : vector<1x64x48xf32> to vector<64x48xf32>
    %cst_106 = arith.constant dense<0.000000e+00> : vector<3x48xf32>
    %204 = tpu.matmul %201, %203, %cst_106 {dimension_numbers = #tpu.dot_dimension_numbers<[1], [0], [0], [1], [0, 0, 1, 1], [], []>} : vector<3x64xf32>, vector<64x48xf32>, vector<3x48xf32> -> vector<3x48xf32>
    %205 = arith.addf %193, %204 : vector<3x48xf32>
    %c2_i32_107 = arith.constant 2 : i32
    %206 = vector.broadcast %c2_i32_107 : i32 to vector<3x4xi32>
    %207 = arith.muli %206, %191 : vector<3x4xi32>
    %c-1_i32_108 = arith.constant -1 : i32
    %208 = vector.broadcast %c-1_i32_108 : i32 to vector<3x4xi32>
    %209 = arith.addi %207, %208 : vector<3x4xi32>
    %210 = arith.cmpi eq, %192, %209 : vector<3x4xi32>
    %211 = arith.extui %210 : vector<3x4xi1> to vector<3x4xi32>
    %212 = arith.sitofp %211 : vector<3x4xi32> to vector<3x4xf32>
    %cst_109 = arith.constant dense<0.000000e+00> : vector<3x64xf32>
    %213 = tpu.matmul %212, %190, %cst_109 {dimension_numbers = #tpu.dot_dimension_numbers<[1], [0], [0], [1], [0, 0, 1, 1], [], []>} : vector<3x4xf32>, vector<4x64xf32>, vector<3x64xf32> -> vector<3x64xf32>
    %c1_110 = arith.constant 1 : index
    %c0_111 = arith.constant 0 : index
    %c0_112 = arith.constant 0 : index
    %214 = vector.load %arg9[%c1_110, %c0_111, %c0_112] : memref<3x64x48xf32, #tpu.memory_space<vmem>>, vector<1x64x48xf32>
    %215 = vector.shape_cast %214 : vector<1x64x48xf32> to vector<64x48xf32>
    %cst_113 = arith.constant dense<0.000000e+00> : vector<3x48xf32>
    %216 = tpu.matmul %213, %215, %cst_113 {dimension_numbers = #tpu.dot_dimension_numbers<[1], [0], [0], [1], [0, 0, 1, 1], [], []>} : vector<3x64xf32>, vector<64x48xf32>, vector<3x48xf32> -> vector<3x48xf32>
    %217 = arith.addf %205, %216 : vector<3x48xf32>
    %c2_i32_114 = arith.constant 2 : i32
    %218 = vector.broadcast %c2_i32_114 : i32 to vector<3x4xi32>
    %219 = arith.muli %218, %191 : vector<3x4xi32>
    %c0_i32_115 = arith.constant 0 : i32
    %220 = vector.broadcast %c0_i32_115 : i32 to vector<3x4xi32>
    %221 = arith.addi %219, %220 : vector<3x4xi32>
    %222 = arith.cmpi eq, %192, %221 : vector<3x4xi32>
    %223 = arith.extui %222 : vector<3x4xi1> to vector<3x4xi32>
    %224 = arith.sitofp %223 : vector<3x4xi32> to vector<3x4xf32>
    %cst_116 = arith.constant dense<0.000000e+00> : vector<3x64xf32>
    %225 = tpu.matmul %224, %190, %cst_116 {dimension_numbers = #tpu.dot_dimension_numbers<[1], [0], [0], [1], [0, 0, 1, 1], [], []>} : vector<3x4xf32>, vector<4x64xf32>, vector<3x64xf32> -> vector<3x64xf32>
    %c2_117 = arith.constant 2 : index
    %c0_118 = arith.constant 0 : index
    %c0_119 = arith.constant 0 : index
    %226 = vector.load %arg9[%c2_117, %c0_118, %c0_119] : memref<3x64x48xf32, #tpu.memory_space<vmem>>, vector<1x64x48xf32>
    %227 = vector.shape_cast %226 : vector<1x64x48xf32> to vector<64x48xf32>
    %cst_120 = arith.constant dense<0.000000e+00> : vector<3x48xf32>
    %228 = tpu.matmul %225, %227, %cst_120 {dimension_numbers = #tpu.dot_dimension_numbers<[1], [0], [0], [1], [0, 0, 1, 1], [], []>} : vector<3x64xf32>, vector<64x48xf32>, vector<3x48xf32> -> vector<3x48xf32>
    %229 = arith.addf %217, %228 : vector<3x48xf32>
    %c0_121 = arith.constant 0 : index
    %c0_122 = arith.constant 0 : index
    %230 = vector.load %arg10[%c0_121, %c0_122] : memref<1x48xf32, #tpu.memory_space<vmem>>, vector<1x48xf32>
    %231 = vector.broadcast %230 : vector<1x48xf32> to vector<3x48xf32>
    %232 = arith.addf %229, %231 : vector<3x48xf32>
    %cst_123 = arith.constant 0.000000e+00 : f32
    %233 = vector.broadcast %cst_123 : f32 to vector<3x48xf32>
    %234 = arith.subf %233, %232 : vector<3x48xf32>
    %235 = math.exp %234 : vector<3x48xf32>
    %cst_124 = arith.constant 1.000000e+00 : f32
    %236 = vector.broadcast %cst_124 : f32 to vector<3x48xf32>
    %237 = arith.addf %236, %235 : vector<3x48xf32>
    %cst_125 = arith.constant 1.000000e+00 : f32
    %238 = vector.broadcast %cst_125 : f32 to vector<3x48xf32>
    %239 = arith.divf %238, %237 : vector<3x48xf32>
    %c0_126 = arith.constant 0 : index
    %c0_127 = arith.constant 0 : index
    %240 = vector.load %arg11[%c0_126, %c0_127] : memref<3x48xf32, #tpu.memory_space<vmem>>, vector<3x48xf32>
    tpu.vector_store %arg11[%c0_126, %c0_127], %239 {strides = array<i32>} : memref<3x48xf32, #tpu.memory_space<vmem>>, vector<3x48xf32>,
    return
  }
}

</mosaic_0001>

<llo_original>
// kernel: model_forward.1
$region0: #{model_forward.1}
  #allocation0 [shape = 'u32[]', space=smem, size = 0x4, offset = 0x4, fixed_abs, tag = 'smem constant byte address 0x4 - core index']
  #allocation1 [shape = 'u32[144,128]{1,0:T(1,128)}', space=vmem, size = 0x12000, scoped, tag = 'internal scratch']
  %s0 = inlined_call_operand.vmem [shape: f32[32,32], index: 0, kind: input, shape index: {}]
  %s1 = inlined_call_operand.vmem [shape: f32[3,32,544], index: 1, kind: input, shape index: {}]
  %s2 = inlined_call_operand.vmem [shape: f32[1,544], index: 2, kind: input, shape index: {}]
  %s3 = inlined_call_operand.vmem [shape: f32[3,544,160], index: 3, kind: input, shape index: {}]
  %s4 = inlined_call_operand.vmem [shape: f32[1,160], index: 4, kind: input, shape index: {}]
  %s5 = inlined_call_operand.vmem [shape: f32[3,160,96], index: 5, kind: input, shape index: {}]
  %s6 = inlined_call_operand.vmem [shape: f32[1,96], index: 6, kind: input, shape index: {}]
  %s7 = inlined_call_operand.vmem [shape: f32[3,96,64], index: 7, kind: input, shape index: {}]
  %s8 = inlined_call_operand.vmem [shape: f32[1,64], index: 8, kind: input, shape index: {}]
  %s9 = inlined_call_operand.vmem [shape: f32[3,64,48], index: 9, kind: input, shape index: {}]
  %s10 = inlined_call_operand.vmem [shape: f32[1,48], index: 10, kind: input, shape index: {}]
  %s11 = inlined_call_operand.vmem [shape: f32[3,48], index: 11, kind: output, shape index: {}]
  %s12 = sld [smem:[#allocation0]]
  $region54: #{model_forward.1} parent=0
    _
  %s14 = ssub.s32 1, %s12
  %s15 = scalar_select 0, %s14, %s12
  // Predicated region
  $region2: #{model_forward.1} parent=0 // pred_check
    _
  $region3: #{model_forward.1} parent=0 // pred_check_branch
    %17 = sbr.rel (0) target = $region5
  $region4: #{model_forward.1} parent=0 // pred_region
    _
  $region5: #{model_forward.1} parent=0 // pred_fallthru
    _
  // Predicated region
  $region6: #{model_forward.1} parent=0 // pred_check
    _
  $region7: #{model_forward.1} parent=0 // pred_check_branch
    %19 = sbr.rel (0) target = $region9
  $region8: #{model_forward.1} parent=0 // pred_region
    _
  $region9: #{model_forward.1} parent=0 // pred_fallthru
    _
  // Predicated region
  $region10: #{model_forward.1} parent=0 // pred_check
    _
  $region11: #{model_forward.1} parent=0 // pred_check_branch
    %21 = sbr.rel (0) target = $region13
  $region12: #{model_forward.1} parent=0 // pred_region
    _
  $region13: #{model_forward.1} parent=0 // pred_fallthru
    _
  // Predicated region
  $region14: #{model_forward.1} parent=0 // pred_check
    _
  $region15: #{model_forward.1} parent=0 // pred_check_branch
    %23 = sbr.rel (0) target = $region17
  $region16: #{model_forward.1} parent=0 // pred_region
    _
  $region17: #{model_forward.1} parent=0 // pred_fallthru
    _
  // Predicated region
  $region18: #{model_forward.1} parent=0 // pred_check
    _
  $region19: #{model_forward.1} parent=0 // pred_check_branch
    %25 = sbr.rel (0) target = $region21
  $region20: #{model_forward.1} parent=0 // pred_region
    _
  $region21: #{model_forward.1} parent=0 // pred_fallthru
    _
  // Predicated region
  $region22: #{model_forward.1} parent=0 // pred_check
    _
  $region23: #{model_forward.1} parent=0 // pred_check_branch
    %27 = sbr.rel (0) target = $region25
  $region24: #{model_forward.1} parent=0 // pred_region
    _
  $region25: #{model_forward.1} parent=0 // pred_fallthru
    _
  // Predicated region
  $region26: #{model_forward.1} parent=0 // pred_check
    _
  $region27: #{model_forward.1} parent=0 // pred_check_branch
    %29 = sbr.rel (0) target = $region29
  $region28: #{model_forward.1} parent=0 // pred_region
    _
  $region29: #{model_forward.1} parent=0 // pred_fallthru
    _
  // Predicated region
  $region30: #{model_forward.1} parent=0 // pred_check
    _
  $region31: #{model_forward.1} parent=0 // pred_check_branch
    %31 = sbr.rel (0) target = $region33
  $region32: #{model_forward.1} parent=0 // pred_region
    _
  $region33: #{model_forward.1} parent=0 // pred_fallthru
    _
  // Predicated region
  $region34: #{model_forward.1} parent=0 // pred_check
    _
  $region35: #{model_forward.1} parent=0 // pred_check_branch
    %33 = sbr.rel (0) target = $region37
  $region36: #{model_forward.1} parent=0 // pred_region
    _
  $region37: #{model_forward.1} parent=0 // pred_fallthru
    _
  // Predicated region
  $region38: #{model_forward.1} parent=0 // pred_check
    _
  $region39: #{model_forward.1} parent=0 // pred_check_branch
    %35 = sbr.rel (0) target = $region41
  $region40: #{model_forward.1} parent=0 // pred_region
    _
  $region41: #{model_forward.1} parent=0 // pred_fallthru
    _
  // Predicated region
  $region42: #{model_forward.1} parent=0 // pred_check
    _
  $region43: #{model_forward.1} parent=0 // pred_check_branch
    %37 = sbr.rel (0) target = $region45
  $region44: #{model_forward.1} parent=0 // pred_region
    _
  $region45: #{model_forward.1} parent=0 // pred_fallthru
    _
  %v38 = vld [vmem:[%s0] sm:$0xff]
  %v39 = vld [vmem:[%s0 + $0x8] sm:$0xff]
  %v40 = vld [vmem:[%s0 + $0x10] sm:$0xff]
  %v41 = vld [vmem:[%s0 + $0x18] sm:$0xff]
  %v42 = vlaneseq
  %v43 = vshrl.u32 %v42, 7
  %v44 = vadd.s32 %v43, 8
  %v45 = vadd.s32 %v43, 16
  %v46 = vlaneseq
  %v47 = vand.u32 %v46, 127
  %v48 = vmul.u32 %v43, 2
  %v49 = vmul.u32 %v44, 2
  %v50 = vmul.u32 %v45, 2
  %v51 = vadd.s32 %v48, 4294967294
  %v52 = vadd.s32 %v49, 4294967294
  %v53 = vadd.s32 %v50, 4294967294
  %vm54 = vcmp.eq.s32.totalorder %v47, %v51
  %vm55 = vcmp.eq.s32.totalorder %v47, %v52
  %vm56 = vcmp.eq.s32.totalorder %v47, %v53
  %v57 = vsel %vm54, 1, 0
  %v58 = vsel %vm55, 1, 0
  %v59 = vsel %vm56, 1, 0
  %v60 = vcvt.s32.f32 %v57
  %v61 = vcvt.s32.f32 %v58
  %v62 = vcvt.s32.f32 %v59
  %vm63 = vcmask 261120
  %v65 = vsel %vm63, %v60, 0
  %v68 = vsel %vm63, %v61, 0
  %v71 = vsel %vm63, %v62, 0
  %73 = vmatprep.subr.mxu0 0.0
  %74 = vmatpush1.msra.mxu0 %v38
  %75 = vmatprep.subr.mxu0 0.0
  %76 = vmatpush1.msra.mxu0 %v39
  %77 = vmatprep.subr.mxu0 0.0
  %78 = vmatpush1.msra.mxu0 %v40
  %79 = vmatprep.subr.mxu0 0.0
  %80 = vmatpush1.msra.mxu0 %v41
  %81 = vmatprep.subr.mxu0 0.0
  %82 = vmatpush1.msra.mxu0 0.0
  %83 = vmatprep.subr.mxu0 0.0
  %84 = vmatpush1.msra.mxu0 0.0
  %85 = vmatprep.subr.mxu0 0.0
  %86 = vmatpush1.msra.mxu0 0.0
  %87 = vmatprep.subr.mxu0 0.0
  %88 = vmatpush1.msra.mxu0 0.0
  %89 = vmatprep.subr.mxu0 0.0
  %90 = vmatpush1.msra.mxu0 0.0
  %91 = vmatprep.subr.mxu0 0.0
  %92 = vmatpush1.msra.mxu0 0.0
  %93 = vmatprep.subr.mxu0 0.0
  %94 = vmatpush1.msra.mxu0 0.0
  %95 = vmatprep.subr.mxu0 0.0
  %96 = vmatpush1.msra.mxu0 0.0
  %97 = vmatprep.subr.mxu0 0.0
  %98 = vmatpush1.msra.mxu0 0.0
  %99 = vmatprep.subr.mxu0 0.0
  %100 = vmatpush1.msra.mxu0 0.0
  %101 = vmatprep.subr.mxu0 0.0
  %102 = vmatpush1.msra.mxu0 0.0
  %103 = vmatprep.subr.mxu0 0.0
  %104 = vmatpush1.msra.mxu0 0.0
  %105 = vmatprep.subr.mxu0 0.0
  %106 = vmatpush1.msra.mxu0 0.0
  %107 = vmatprep.subr.mxu0 0.0
  %108 = vmatpush1.msra.mxu0 0.0
  %109 = vmatprep.subr.mxu0 0.0
  %110 = vmatpush1.msra.mxu0 0.0
  %111 = vmatprep.subr.mxu0 0.0
  %112 = vmatpush1.msra.mxu0 0.0
  %113 = vmatprep.subr.mxu0 0.0
  %114 = vmatpush1.msra.mxu0 0.0
  %115 = vmatprep.subr.mxu0 0.0
  %116 = vmatpush1.msra.mxu0 0.0
  %117 = vmatprep.subr.mxu0 0.0
  %118 = vmatpush1.msra.mxu0 0.0
  %119 = vmatprep.subr.mxu0 0.0
  %120 = vmatpush1.msra.mxu0 0.0
  %121 = vmatprep.subr.mxu0 0.0
  %122 = vmatpush1.msra.mxu0 0.0
  %123 = vmatprep.subr.mxu0 0.0
  %124 = vmatpush1.msra.mxu0 0.0
  %125 = vmatprep.subr.mxu0 0.0
  %126 = vmatpush1.msra.mxu0 0.0
  %127 = vmatprep.subr.mxu0 0.0
  %128 = vmatpush1.msra.mxu0 0.0
  %129 = vmatprep.subr.mxu0 0.0
  %130 = vmatpush1.msra.mxu0 0.0
  %131 = vmatprep.subr.mxu0 0.0
  %132 = vmatpush1.msra.mxu0 0.0
  %133 = vmatprep.subr.mxu0 0.0
  %134 = vmatpush1.msra.mxu0 0.0
  %135 = vmatprep.subr.mxu0 0.0
  %136 = vmatpush1.msra.mxu0 0.0
  %137 = vmatprep.mubr.f32.mxu0 0.0
  %138 = vmatmul.mubr.f32.gmra.mrb[0].mxu0 %v65
  %v139 = vpop.f32.mrb[0].mxu0
  %v140 = vadd.f32 0.0, %v139
  %v141 = vpop.f32.mrb[0].mxu0
  %142 = vmatprep.mubr.f32.mxu0 0.0
  %143 = vmatmul.mubr.f32.gmra.mrb[0].mxu0 %v68
  %v144 = vpop.f32.mrb[0].mxu0
  %v145 = vadd.f32 0.0, %v144
  %v146 = vpop.f32.mrb[0].mxu0
  %147 = vmatprep.mubr.f32.mxu0 0.0
  %148 = vmatmul.mubr.f32.gmra.mrb[0].mxu0 %v71
  %v149 = vpop.f32.mrb[0].mxu0
  %v150 = vadd.f32 0.0, %v149
  %v151 = vpop.f32.mrb[0].mxu0
  %152 = vdwg.mxu0
  %v153 = vld [vmem:[%s1] sm:$0xff]
  %v154 = vld [vmem:[%s1 + $0x8] sm:$0xff]
  %v155 = vld [vmem:[%s1 + $0x10] sm:$0xff]
  %v156 = vld [vmem:[%s1 + $0x18] sm:$0xff]
  %v157 = vld [vmem:[%s1 + $0x20] sm:$0xff]
  %v158 = vld [vmem:[%s1 + $0x28] sm:$0xff]
  %v159 = vld [vmem:[%s1 + $0x30] sm:$0xff]
  %v160 = vld [vmem:[%s1 + $0x38] sm:$0xff]
  %v161 = vld [vmem:[%s1 + $0x40] sm:$0xff]
  %v162 = vld [vmem:[%s1 + $0x48] sm:$0xff]
  %v163 = vld [vmem:[%s1 + $0x50] sm:$0xff]
  %v164 = vld [vmem:[%s1 + $0x58] sm:$0xff]
  %v165 = vld [vmem:[%s1 + $0x60] sm:$0xff]
  %v166 = vld [vmem:[%s1 + $0x68] sm:$0xff]
  %v167 = vld [vmem:[%s1 + $0x70] sm:$0xff]
  %v168 = vld [vmem:[%s1 + $0x78] sm:$0xff]
  %v169 = vld [vmem:[%s1 + $0x80] sm:$0xff]
  %v170 = vld [vmem:[%s1 + $0x88] sm:$0xff]
  %v171 = vld [vmem:[%s1 + $0x90] sm:$0xff]
  %v172 = vld [vmem:[%s1 + $0x98] sm:$0xff]
  %v173 = vadd.s32 %v48, 4294967295
  %v174 = vadd.s32 %v49, 4294967295
  %v175 = vadd.s32 %v50, 4294967295
  %vm176 = vcmp.eq.s32.totalorder %v47, %v173
  %vm177 = vcmp.eq.s32.totalorder %v47, %v174
  %vm178 = vcmp.eq.s32.totalorder %v47, %v175
  %v179 = vsel %vm176, 1, 0
  %v180 = vsel %vm177, 1, 0
  %v181 = vsel %vm178, 1, 0
  %v182 = vcvt.s32.f32 %v179
  %v183 = vcvt.s32.f32 %v180
  %v184 = vcvt.s32.f32 %v181
  %v186 = vsel %vm63, %v182, 0
  %v189 = vsel %vm63, %v183, 0
  %v192 = vsel %vm63, %v184, 0
  %194 = vmatprep.subr.mxu0 0.0
  %195 = vmatpush1.msra.mxu0 %v38
  %196 = vmatprep.subr.mxu0 0.0
  %197 = vmatpush1.msra.mxu0 %v39
  %198 = vmatprep.subr.mxu0 0.0
  %199 = vmatpush1.msra.mxu0 %v40
  %200 = vmatprep.subr.mxu0 0.0
  %201 = vmatpush1.msra.mxu0 %v41
  %202 = vmatprep.subr.mxu0 0.0
  %203 = vmatpush1.msra.mxu0 0.0
  %204 = vmatprep.subr.mxu0 0.0
  %205 = vmatpush1.msra.mxu0 0.0
  %206 = vmatprep.subr.mxu0 0.0
  %207 = vmatpush1.msra.mxu0 0.0
  %208 = vmatprep.subr.mxu0 0.0
  %209 = vmatpush1.msra.mxu0 0.0
  %210 = vmatprep.subr.mxu0 0.0
  %211 = vmatpush1.msra.mxu0 0.0
  %212 = vmatprep.subr.mxu0 0.0
  %213 = vmatpush1.msra.mxu0 0.0
  %214 = vmatprep.subr.mxu0 0.0
  %215 = vmatpush1.msra.mxu0 0.0
  %216 = vmatprep.subr.mxu0 0.0
  %217 = vmatpush1.msra.mxu0 0.0
  %218 = vmatprep.subr.mxu0 0.0
  %219 = vmatpush1.msra.mxu0 0.0
  %220 = vmatprep.subr.mxu0 0.0
  %221 = vmatpush1.msra.mxu0 0.0
  %222 = vmatprep.subr.mxu0 0.0
  %223 = vmatpush1.msra.mxu0 0.0
  %224 = vmatprep.subr.mxu0 0.0
  %225 = vmatpush1.msra.mxu0 0.0
  %226 = vmatprep.subr.mxu0 0.0
  %227 = vmatpush1.msra.mxu0 0.0
  %228 = vmatprep.subr.mxu0 0.0
  %229 = vmatpush1.msra.mxu0 0.0
  %230 = vmatprep.subr.mxu0 0.0
  %231 = vmatpush1.msra.mxu0 0.0
  %232 = vmatprep.subr.mxu0 0.0
  %233 = vmatpush1.msra.mxu0 0.0
  %234 = vmatprep.subr.mxu0 0.0
  %235 = vmatpush1.msra.mxu0 0.0
  %236 = vmatprep.subr.mxu0 0.0
  %237 = vmatpush1.msra.mxu0 0.0
  %238 = vmatprep.subr.mxu0 0.0
  %239 = vmatpush1.msra.mxu0 0.0
  %240 = vmatprep.subr.mxu0 0.0
  %241 = vmatpush1.msra.mxu0 0.0
  %242 = vmatprep.subr.mxu0 0.0
  %243 = vmatpush1.msra.mxu0 0.0
  %244 = vmatprep.subr.mxu0 0.0
  %245 = vmatpush1.msra.mxu0 0.0
  %246 = vmatprep.subr.mxu0 0.0
  %247 = vmatpush1.msra.mxu0 0.0
  %248 = vmatprep.subr.mxu0 0.0
  %249 = vmatpush1.msra.mxu0 0.0
  %250 = vmatprep.subr.mxu0 0.0
  %251 = vmatpush1.msra.mxu0 0.0
  %252 = vmatprep.subr.mxu0 0.0
  %253 = vmatpush1.msra.mxu0 0.0
  %254 = vmatprep.subr.mxu0 0.0
  %255 = vmatpush1.msra.mxu0 0.0
  %256 = vmatprep.subr.mxu0 0.0
  %257 = vmatpush1.msra.mxu0 0.0
  %258 = vmatprep.mubr.f32.mxu0 0.0
  %259 = vmatmul.mubr.f32.gmra.mrb[0].mxu0 %v186
  %v260 = vpop.f32.mrb[0].mxu0
  %v261 = vadd.f32 0.0, %v260
  %v262 = vpop.f32.mrb[0].mxu0
  %263 = vmatprep.mubr.f32.mxu0 0.0
  %264 = vmatmul.mubr.f32.gmra.mrb[0].mxu0 %v189
  %v265 = vpop.f32.mrb[0].mxu0
  %v266 = vadd.f32 0.0, %v265
  %v267 = vpop.f32.mrb[0].mxu0
  %268 = vmatprep.mubr.f32.mxu0 0.0
  %269 = vmatmul.mubr.f32.gmra.mrb[0].mxu0 %v192
  %v270 = vpop.f32.mrb[0].mxu0
  %v271 = vadd.f32 0.0, %v270
  %v272 = vpop.f32.mrb[0].mxu0
  %273 = vdwg.mxu0
  %s274 = scalar_lea.vmem %s1, 160
  %v275 = vld [vmem:[%s274] sm:$0xff]
  %v276 = vld [vmem:[%s274 + $0x8] sm:$0xff]
  %v277 = vld [vmem:[%s274 + $0x10] sm:$0xff]
  %v278 = vld [vmem:[%s274 + $0x18] sm:$0xff]
  %v279 = vld [vmem:[%s274 + $0x20] sm:$0xff]
  %v280 = vld [vmem:[%s274 + $0x28] sm:$0xff]
  %v281 = vld [vmem:[%s274 + $0x30] sm:$0xff]
  %v282 = vld [vmem:[%s274 + $0x38] sm:$0xff]
  %v283 = vld [vmem:[%s274 + $0x40] sm:$0xff]
  %v284 = vld [vmem:[%s274 + $0x48] sm:$0xff]
  %v285 = vld [vmem:[%s274 + $0x50] sm:$0xff]
  %v286 = vld [vmem:[%s274 + $0x58] sm:$0xff]
  %v287 = vld [vmem:[%s274 + $0x60] sm:$0xff]
  %v288 = vld [vmem:[%s274 + $0x68] sm:$0xff]
  %v289 = vld [vmem:[%s274 + $0x70] sm:$0xff]
  %v290 = vld [vmem:[%s274 + $0x78] sm:$0xff]
  %v291 = vld [vmem:[%s274 + $0x80] sm:$0xff]
  %v292 = vld [vmem:[%s274 + $0x88] sm:$0xff]
  %v293 = vld [vmem:[%s274 + $0x90] sm:$0xff]
  %v294 = vld [vmem:[%s274 + $0x98] sm:$0xff]
  %v296 = vsel %vm63, %v261, 0
  %v299 = vsel %vm63, %v266, 0
  %v302 = vsel %vm63, %v271, 0
  %304 = vmatprep.subr.mxu0 %v276
  %305 = vmatpush1.msra.mxu0 %v275
  %306 = vmatprep.subr.mxu0 %v281
  %307 = vmatpush1.msra.mxu0 %v280
  %308 = vmatprep.subr.mxu0 %v286
  %309 = vmatpush1.msra.mxu0 %v285
  %310 = vmatprep.subr.mxu0 %v291
  %311 = vmatpush1.msra.mxu0 %v290
  %312 = vmatprep.subr.mxu0 0.0
  %313 = vmatpush1.msra.mxu0 0.0
  %314 = vmatprep.subr.mxu0 0.0
  %315 = vmatpush1.msra.mxu0 0.0
  %316 = vmatprep.subr.mxu0 0.0
  %317 = vmatpush1.msra.mxu0 0.0
  %318 = vmatprep.subr.mxu0 0.0
  %319 = vmatpush1.msra.mxu0 0.0
  %320 = vmatprep.subr.mxu0 0.0
  %321 = vmatpush1.msra.mxu0 0.0
  %322 = vmatprep.subr.mxu0 0.0
  %323 = vmatpush1.msra.mxu0 0.0
  %324 = vmatprep.subr.mxu0 0.0
  %325 = vmatpush1.msra.mxu0 0.0
  %326 = vmatprep.subr.mxu0 0.0
  %327 = vmatpush1.msra.mxu0 0.0
  %328 = vmatprep.subr.mxu0 0.0
  %329 = vmatpush1.msra.mxu0 0.0
  %330 = vmatprep.subr.mxu0 0.0
  %331 = vmatpush1.msra.mxu0 0.0
  %332 = vmatprep.subr.mxu0 0.0
  %333 = vmatpush1.msra.mxu0 0.0
  %334 = vmatprep.subr.mxu0 0.0
  %335 = vmatpush1.msra.mxu0 0.0
  %336 = vmatprep.subr.mxu0 0.0
  %337 = vmatpush1.msra.mxu0 0.0
  %338 = vmatprep.subr.mxu0 0.0
  %339 = vmatpush1.msra.mxu0 0.0
  %340 = vmatprep.subr.mxu0 0.0
  %341 = vmatpush1.msra.mxu0 0.0
  %342 = vmatprep.subr.mxu0 0.0
  %343 = vmatpush1.msra.mxu0 0.0
  %344 = vmatprep.subr.mxu0 0.0
  %345 = vmatpush1.msra.mxu0 0.0
  %346 = vmatprep.subr.mxu0 0.0
  %347 = vmatpush1.msra.mxu0 0.0
  %348 = vmatprep.subr.mxu0 0.0
  %349 = vmatpush1.msra.mxu0 0.0
  %350 = vmatprep.subr.mxu0 0.0
  %351 = vmatpush1.msra.mxu0 0.0
  %352 = vmatprep.subr.mxu0 0.0
  %353 = vmatpush1.msra.mxu0 0.0
  %354 = vmatprep.subr.mxu0 0.0
  %355 = vmatpush1.msra.mxu0 0.0
  %356 = vmatprep.subr.mxu0 0.0
  %357 = vmatpush1.msra.mxu0 0.0
  %358 = vmatprep.subr.mxu0 0.0
  %359 = vmatpush1.msra.mxu0 0.0
  %360 = vmatprep.subr.mxu0 0.0
  %361 = vmatpush1.msra.mxu0 0.0
  %362 = vmatprep.subr.mxu0 0.0
  %363 = vmatpush1.msra.mxu0 0.0
  %364 = vmatprep.subr.mxu0 0.0
  %365 = vmatpush1.msra.mxu0 0.0
  %366 = vmatprep.subr.mxu0 0.0
  %367 = vmatpush1.msra.mxu0 0.0
  %368 = vmatprep.mubr.f32.mxu0 0.0
  %369 = vmatmul.mubr.f32.gmra.mrb[0].mxu0 %v296
  %v370 = vpop.f32.mrb[0].mxu0
  %v371 = vadd.f32 0.0, %v370
  %v372 = vpop.f32.mrb[0].mxu0
  %v373 = vadd.f32 0.0, %v372
  %374 = vmatprep.mubr.f32.mxu0 0.0
  %375 = vmatmul.mubr.f32.gmra.mrb[0].mxu0 %v299
  %v376 = vpop.f32.mrb[0].mxu0
  %v377 = vadd.f32 0.0, %v376
  %v378 = vpop.f32.mrb[0].mxu0
  %v379 = vadd.f32 0.0, %v378
  %380 = vmatprep.mubr.f32.mxu0 0.0
  %381 = vmatmul.mubr.f32.gmra.mrb[0].mxu0 %v302
  %v382 = vpop.f32.mrb[0].mxu0
  %v383 = vadd.f32 0.0, %v382
  %v384 = vpop.f32.mrb[0].mxu0
  %v385 = vadd.f32 0.0, %v384
  %386 = vdwg.mxu0
  %387 = vmatprep.subr.mxu0 %v278
  %388 = vmatpush1.msra.mxu0 %v277
  %389 = vmatprep.subr.mxu0 %v283
  %390 = vmatpush1.msra.mxu0 %v282
  %391 = vmatprep.subr.mxu0 %v288
  %392 = vmatpush1.msra.mxu0 %v287
  %393 = vmatprep.subr.mxu0 %v293
  %394 = vmatpush1.msra.mxu0 %v292
  %395 = vmatprep.subr.mxu0 0.0
  %396 = vmatpush1.msra.mxu0 0.0
  %397 = vmatprep.subr.mxu0 0.0
  %398 = vmatpush1.msra.mxu0 0.0
  %399 = vmatprep.subr.mxu0 0.0
  %400 = vmatpush1.msra.mxu0 0.0
  %401 = vmatprep.subr.mxu0 0.0
  %402 = vmatpush1.msra.mxu0 0.0
  %403 = vmatprep.subr.mxu0 0.0
  %404 = vmatpush1.msra.mxu0 0.0
  %405 = vmatprep.subr.mxu0 0.0
  %406 = vmatpush1.msra.mxu0 0.0
  %407 = vmatprep.subr.mxu0 0.0
  %408 = vmatpush1.msra.mxu0 0.0
  %409 = vmatprep.subr.mxu0 0.0
  %410 = vmatpush1.msra.mxu0 0.0
  %411 = vmatprep.subr.mxu0 0.0
  %412 = vmatpush1.msra.mxu0 0.0
  %413 = vmatprep.subr.mxu0 0.0
  %414 = vmatpush1.msra.mxu0 0.0
  %415 = vmatprep.subr.mxu0 0.0
  %416 = vmatpush1.msra.mxu0 0.0
  %417 = vmatprep.subr.mxu0 0.0
  %418 = vmatpush1.msra.mxu0 0.0
  %419 = vmatprep.subr.mxu0 0.0
  %420 = vmatpush1.msra.mxu0 0.0
  %421 = vmatprep.subr.mxu0 0.0
  %422 = vmatpush1.msra.mxu0 0.0
  %423 = vmatprep.subr.mxu0 0.0
  %424 = vmatpush1.msra.mxu0 0.0
  %425 = vmatprep.subr.mxu0 0.0
  %426 = vmatpush1.msra.mxu0 0.0
  %427 = vmatprep.subr.mxu0 0.0
  %428 = vmatpush1.msra.mxu0 0.0
  %429 = vmatprep.subr.mxu0 0.0
  %430 = vmatpush1.msra.mxu0 0.0
  %431 = vmatprep.subr.mxu0 0.0
  %432 = vmatpush1.msra.mxu0 0.0
  %433 = vmatprep.subr.mxu0 0.0
  %434 = vmatpush1.msra.mxu0 0.0
  %435 = vmatprep.subr.mxu0 0.0
  %436 = vmatpush1.msra.mxu0 0.0
  %437 = vmatprep.subr.mxu0 0.0
  %438 = vmatpush1.msra.mxu0 0.0
  %439 = vmatprep.subr.mxu0 0.0
  %440 = vmatpush1.msra.mxu0 0.0
  %441 = vmatprep.subr.mxu0 0.0
  %442 = vmatpush1.msra.mxu0 0.0
  %443 = vmatprep.subr.mxu0 0.0
  %444 = vmatpush1.msra.mxu0 0.0
  %445 = vmatprep.subr.mxu0 0.0
  %446 = vmatpush1.msra.mxu0 0.0
  %447 = vmatprep.subr.mxu0 0.0
  %448 = vmatpush1.msra.mxu0 0.0
  %449 = vmatprep.subr.mxu0 0.0
  %450 = vmatpush1.msra.mxu0 0.0
  %451 = vmatprep.mubr.f32.mxu0 0.0
  %452 = vmatmul.mubr.f32.gmra.mrb[0].mxu0 %v296
  %v453 = vpop.f32.mrb[0].mxu0
  %v454 = vadd.f32 0.0, %v453
  %v455 = vpop.f32.mrb[0].mxu0
  %v456 = vadd.f32 0.0, %v455
  %457 = vmatprep.mubr.f32.mxu0 0.0
  %458 = vmatmul.mubr.f32.gmra.mrb[0].mxu0 %v299
  %v459 = vpop.f32.mrb[0].mxu0
  %v460 = vadd.f32 0.0, %v459
  %v461 = vpop.f32.mrb[0].mxu0
  %v462 = vadd.f32 0.0, %v461
  %463 = vmatprep.mubr.f32.mxu0 0.0
  %464 = vmatmul.mubr.f32.gmra.mrb[0].mxu0 %v302
  %v465 = vpop.f32.mrb[0].mxu0
  %v466 = vadd.f32 0.0, %v465
  %v467 = vpop.f32.mrb[0].mxu0
  %v468 = vadd.f32 0.0, %v467
  %469 = vdwg.mxu0
  %470 = vmatprep.subr.mxu0 0.0
  %471 = vmatpush1.msra.mxu0 %v279
  %472 = vmatprep.subr.mxu0 0.0
  %473 = vmatpush1.msra.mxu0 %v284
  %474 = vmatprep.subr.mxu0 0.0
  %475 = vmatpush1.msra.mxu0 %v289
  %476 = vmatprep.subr.mxu0 0.0
  %477 = vmatpush1.msra.mxu0 %v294
  %478 = vmatprep.subr.mxu0 0.0
  %479 = vmatpush1.msra.mxu0 0.0
  %480 = vmatprep.subr.mxu0 0.0
  %481 = vmatpush1.msra.mxu0 0.0
  %482 = vmatprep.subr.mxu0 0.0
  %483 = vmatpush1.msra.mxu0 0.0
  %484 = vmatprep.subr.mxu0 0.0
  %485 = vmatpush1.msra.mxu0 0.0
  %486 = vmatprep.subr.mxu0 0.0
  %487 = vmatpush1.msra.mxu0 0.0
  %488 = vmatprep.subr.mxu0 0.0
  %489 = vmatpush1.msra.mxu0 0.0
  %490 = vmatprep.subr.mxu0 0.0
  %491 = vmatpush1.msra.mxu0 0.0
  %492 = vmatprep.subr.mxu0 0.0
  %493 = vmatpush1.msra.mxu0 0.0
  %494 = vmatprep.subr.mxu0 0.0
  %495 = vmatpush1.msra.mxu0 0.0
  %496 = vmatprep.subr.mxu0 0.0
  %497 = vmatpush1.msra.mxu0 0.0
  %498 = vmatprep.subr.mxu0 0.0
  %499 = vmatpush1.msra.mxu0 0.0
  %500 = vmatprep.subr.mxu0 0.0
  %501 = vmatpush1.msra.mxu0 0.0
  %502 = vmatprep.subr.mxu0 0.0
  %503 = vmatpush1.msra.mxu0 0.0
  %504 = vmatprep.subr.mxu0 0.0
  %505 = vmatpush1.msra.mxu0 0.0
  %506 = vmatprep.subr.mxu0 0.0
  %507 = vmatpush1.msra.mxu0 0.0
  %508 = vmatprep.subr.mxu0 0.0
  %509 = vmatpush1.msra.mxu0 0.0
  %510 = vmatprep.subr.mxu0 0.0
  %511 = vmatpush1.msra.mxu0 0.0
  %512 = vmatprep.subr.mxu0 0.0
  %513 = vmatpush1.msra.mxu0 0.0
  %514 = vmatprep.subr.mxu0 0.0
  %515 = vmatpush1.msra.mxu0 0.0
  %516 = vmatprep.subr.mxu0 0.0
  %517 = vmatpush1.msra.mxu0 0.0
  %518 = vmatprep.subr.mxu0 0.0
  %519 = vmatpush1.msra.mxu0 0.0
  %520 = vmatprep.subr.mxu0 0.0
  %521 = vmatpush1.msra.mxu0 0.0
  %522 = vmatprep.subr.mxu0 0.0
  %523 = vmatpush1.msra.mxu0 0.0
  %524 = vmatprep.subr.mxu0 0.0
  %525 = vmatpush1.msra.mxu0 0.0
  %526 = vmatprep.subr.mxu0 0.0
  %527 = vmatpush1.msra.mxu0 0.0
  %528 = vmatprep.subr.mxu0 0.0
  %529 = vmatpush1.msra.mxu0 0.0
  %530 = vmatprep.subr.mxu0 0.0
  %531 = vmatpush1.msra.mxu0 0.0
  %532 = vmatprep.subr.mxu0 0.0
  %533 = vmatpush1.msra.mxu0 0.0
  %534 = vmatprep.mubr.f32.mxu0 0.0
  %535 = vmatmul.mubr.f32.gmra.mrb[0].mxu0 %v296
  %v536 = vpop.f32.mrb[0].mxu0
  %v537 = vadd.f32 0.0, %v536
  %v538 = vpop.f32.mrb[0].mxu0
  %539 = vmatprep.mubr.f32.mxu0 0.0
  %540 = vmatmul.mubr.f32.gmra.mrb[0].mxu0 %v299
  %v541 = vpop.f32.mrb[0].mxu0
  %v542 = vadd.f32 0.0, %v541
  %v543 = vpop.f32.mrb[0].mxu0
  %544 = vmatprep.mubr.f32.mxu0 0.0
  %545 = vmatmul.mubr.f32.gmra.mrb[0].mxu0 %v302
  %v546 = vpop.f32.mrb[0].mxu0
  %v547 = vadd.f32 0.0, %v546
  %v548 = vpop.f32.mrb[0].mxu0
  %549 = vdwg.mxu0
  %v551 = vsel %vm63, %v140, 0
  %v554 = vsel %vm63, %v145, 0
  %v557 = vsel %vm63, %v150, 0
  %559 = vmatprep.subr.mxu0 %v154
  %560 = vmatpush1.msra.mxu0 %v153
  %561 = vmatprep.subr.mxu0 %v159
  %562 = vmatpush1.msra.mxu0 %v158
  %563 = vmatprep.subr.mxu0 %v164
  %564 = vmatpush1.msra.mxu0 %v163
  %565 = vmatprep.subr.mxu0 %v169
  %566 = vmatpush1.msra.mxu0 %v168
  %567 = vmatprep.subr.mxu0 0.0
  %568 = vmatpush1.msra.mxu0 0.0
  %569 = vmatprep.subr.mxu0 0.0
  %570 = vmatpush1.msra.mxu0 0.0
  %571 = vmatprep.subr.mxu0 0.0
  %572 = vmatpush1.msra.mxu0 0.0
  %573 = vmatprep.subr.mxu0 0.0
  %574 = vmatpush1.msra.mxu0 0.0
  %575 = vmatprep.subr.mxu0 0.0
  %576 = vmatpush1.msra.mxu0 0.0
  %577 = vmatprep.subr.mxu0 0.0
  %578 = vmatpush1.msra.mxu0 0.0
  %579 = vmatprep.subr.mxu0 0.0
  %580 = vmatpush1.msra.mxu0 0.0
  %581 = vmatprep.subr.mxu0 0.0
  %582 = vmatpush1.msra.mxu0 0.0
  %583 = vmatprep.subr.mxu0 0.0
  %584 = vmatpush1.msra.mxu0 0.0
  %585 = vmatprep.subr.mxu0 0.0
  %586 = vmatpush1.msra.mxu0 0.0
  %587 = vmatprep.subr.mxu0 0.0
  %588 = vmatpush1.msra.mxu0 0.0
  %589 = vmatprep.subr.mxu0 0.0
  %590 = vmatpush1.msra.mxu0 0.0
  %591 = vmatprep.subr.mxu0 0.0
  %592 = vmatpush1.msra.mxu0 0.0
  %593 = vmatprep.subr.mxu0 0.0
  %594 = vmatpush1.msra.mxu0 0.0
  %595 = vmatprep.subr.mxu0 0.0
  %596 = vmatpush1.msra.mxu0 0.0
  %597 = vmatprep.subr.mxu0 0.0
  %598 = vmatpush1.msra.mxu0 0.0
  %599 = vmatprep.subr.mxu0 0.0
  %600 = vmatpush1.msra.mxu0 0.0
  %601 = vmatprep.subr.mxu0 0.0
  %602 = vmatpush1.msra.mxu0 0.0
  %603 = vmatprep.subr.mxu0 0.0
  %604 = vmatpush1.msra.mxu0 0.0
  %605 = vmatprep.subr.mxu0 0.0
  %606 = vmatpush1.msra.mxu0 0.0
  %607 = vmatprep.subr.mxu0 0.0
  %608 = vmatpush1.msra.mxu0 0.0
  %609 = vmatprep.subr.mxu0 0.0
  %610 = vmatpush1.msra.mxu0 0.0
  %611 = vmatprep.subr.mxu0 0.0
  %612 = vmatpush1.msra.mxu0 0.0
  %613 = vmatprep.subr.mxu0 0.0
  %614 = vmatpush1.msra.mxu0 0.0
  %615 = vmatprep.subr.mxu0 0.0
  %616 = vmatpush1.msra.mxu0 0.0
  %617 = vmatprep.subr.mxu0 0.0
  %618 = vmatpush1.msra.mxu0 0.0
  %619 = vmatprep.subr.mxu0 0.0
  %620 = vmatpush1.msra.mxu0 0.0
  %621 = vmatprep.subr.mxu0 0.0
  %622 = vmatpush1.msra.mxu0 0.0
  %623 = vmatprep.mubr.f32.mxu0 0.0
  %624 = vmatmul.mubr.f32.gmra.mrb[0].mxu0 %v551
  %v625 = vpop.f32.mrb[0].mxu0
  %v626 = vadd.f32 %v371, %v625
  %v627 = vpop.f32.mrb[0].mxu0
  %v628 = vadd.f32 %v373, %v627
  %629 = vmatprep.mubr.f32.mxu0 0.0
  %630 = vmatmul.mubr.f32.gmra.mrb[0].mxu0 %v554
  %v631 = vpop.f32.mrb[0].mxu0
  %v632 = vadd.f32 %v377, %v631
  %v633 = vpop.f32.mrb[0].mxu0
  %v634 = vadd.f32 %v379, %v633
  %635 = vmatprep.mubr.f32.mxu0 0.0
  %636 = vmatmul.mubr.f32.gmra.mrb[0].mxu0 %v557
  %v637 = vpop.f32.mrb[0].mxu0
  %v638 = vadd.f32 %v383, %v637
  %v639 = vpop.f32.mrb[0].mxu0
  %v640 = vadd.f32 %v385, %v639
  %641 = vdwg.mxu0
  %642 = vmatprep.subr.mxu0 %v156
  %643 = vmatpush1.msra.mxu0 %v155
  %644 = vmatprep.subr.mxu0 %v161
  %645 = vmatpush1.msra.mxu0 %v160
  %646 = vmatprep.subr.mxu0 %v166
  %647 = vmatpush1.msra.mxu0 %v165
  %648 = vmatprep.subr.mxu0 %v171
  %649 = vmatpush1.msra.mxu0 %v170
  %650 = vmatprep.subr.mxu0 0.0
  %651 = vmatpush1.msra.mxu0 0.0
  %652 = vmatprep.subr.mxu0 0.0
  %653 = vmatpush1.msra.mxu0 0.0
  %654 = vmatprep.subr.mxu0 0.0
  %655 = vmatpush1.msra.mxu0 0.0
  %656 = vmatprep.subr.mxu0 0.0
  %657 = vmatpush1.msra.mxu0 0.0
  %658 = vmatprep.subr.mxu0 0.0
  %659 = vmatpush1.msra.mxu0 0.0
  %660 = vmatprep.subr.mxu0 0.0
  %661 = vmatpush1.msra.mxu0 0.0
  %662 = vmatprep.subr.mxu0 0.0
  %663 = vmatpush1.msra.mxu0 0.0
  %664 = vmatprep.subr.mxu0 0.0
  %665 = vmatpush1.msra.mxu0 0.0
  %666 = vmatprep.subr.mxu0 0.0
  %667 = vmatpush1.msra.mxu0 0.0
  %668 = vmatprep.subr.mxu0 0.0
  %669 = vmatpush1.msra.mxu0 0.0
  %670 = vmatprep.subr.mxu0 0.0
  %671 = vmatpush1.msra.mxu0 0.0
  %672 = vmatprep.subr.mxu0 0.0
  %673 = vmatpush1.msra.mxu0 0.0
  %674 = vmatprep.subr.mxu0 0.0
  %675 = vmatpush1.msra.mxu0 0.0
  %676 = vmatprep.subr.mxu0 0.0
  %677 = vmatpush1.msra.mxu0 0.0
  %678 = vmatprep.subr.mxu0 0.0
  %679 = vmatpush1.msra.mxu0 0.0
  %680 = vmatprep.subr.mxu0 0.0
  %681 = vmatpush1.msra.mxu0 0.0
  %682 = vmatprep.subr.mxu0 0.0
  %683 = vmatpush1.msra.mxu0 0.0
  %684 = vmatprep.subr.mxu0 0.0
  %685 = vmatpush1.msra.mxu0 0.0
  %686 = vmatprep.subr.mxu0 0.0
  %687 = vmatpush1.msra.mxu0 0.0
  %688 = vmatprep.subr.mxu0 0.0
  %689 = vmatpush1.msra.mxu0 0.0
  %690 = vmatprep.subr.mxu0 0.0
  %691 = vmatpush1.msra.mxu0 0.0
  %692 = vmatprep.subr.mxu0 0.0
  %693 = vmatpush1.msra.mxu0 0.0
  %694 = vmatprep.subr.mxu0 0.0
  %695 = vmatpush1.msra.mxu0 0.0
  %696 = vmatprep.subr.mxu0 0.0
  %697 = vmatpush1.msra.mxu0 0.0
  %698 = vmatprep.subr.mxu0 0.0
  %699 = vmatpush1.msra.mxu0 0.0
  %700 = vmatprep.subr.mxu0 0.0
  %701 = vmatpush1.msra.mxu0 0.0
  %702 = vmatprep.subr.mxu0 0.0
  %703 = vmatpush1.msra.mxu0 0.0
  %704 = vmatprep.subr.mxu0 0.0
  %705 = vmatpush1.msra.mxu0 0.0
  %706 = vmatprep.mubr.f32.mxu0 0.0
  %707 = vmatmul.mubr.f32.gmra.mrb[0].mxu0 %v551
  %v708 = vpop.f32.mrb[0].mxu0
  %v709 = vadd.f32 %v454, %v708
  %v710 = vpop.f32.mrb[0].mxu0
  %v711 = vadd.f32 %v456, %v710
  %712 = vmatprep.mubr.f32.mxu0 0.0
  %713 = vmatmul.mubr.f32.gmra.mrb[0].mxu0 %v554
  %v714 = vpop.f32.mrb[0].mxu0
  %v715 = vadd.f32 %v460, %v714
  %v716 = vpop.f32.mrb[0].mxu0
  %v717 = vadd.f32 %v462, %v716
  %718 = vmatprep.mubr.f32.mxu0 0.0
  %719 = vmatmul.mubr.f32.gmra.mrb[0].mxu0 %v557
  %v720 = vpop.f32.mrb[0].mxu0
  %v721 = vadd.f32 %v466, %v720
  %v722 = vpop.f32.mrb[0].mxu0
  %v723 = vadd.f32 %v468, %v722
  %724 = vdwg.mxu0
  %725 = vmatprep.subr.mxu0 0.0
  %726 = vmatpush1.msra.mxu0 %v157
  %727 = vmatprep.subr.mxu0 0.0
  %728 = vmatpush1.msra.mxu0 %v162
  %729 = vmatprep.subr.mxu0 0.0
  %730 = vmatpush1.msra.mxu0 %v167
  %731 = vmatprep.subr.mxu0 0.0
  %732 = vmatpush1.msra.mxu0 %v172
  %733 = vmatprep.subr.mxu0 0.0
  %734 = vmatpush1.msra.mxu0 0.0
  %735 = vmatprep.subr.mxu0 0.0
  %736 = vmatpush1.msra.mxu0 0.0
  %737 = vmatprep.subr.mxu0 0.0
  %738 = vmatpush1.msra.mxu0 0.0
  %739 = vmatprep.subr.mxu0 0.0
  %740 = vmatpush1.msra.mxu0 0.0
  %741 = vmatprep.subr.mxu0 0.0
  %742 = vmatpush1.msra.mxu0 0.0
  %743 = vmatprep.subr.mxu0 0.0
  %744 = vmatpush1.msra.mxu0 0.0
  %745 = vmatprep.subr.mxu0 0.0
  %746 = vmatpush1.msra.mxu0 0.0
  %747 = vmatprep.subr.mxu0 0.0
  %748 = vmatpush1.msra.mxu0 0.0
  %749 = vmatprep.subr.mxu0 0.0
  %750 = vmatpush1.msra.mxu0 0.0
  %751 = vmatprep.subr.mxu0 0.0
  %752 = vmatpush1.msra.mxu0 0.0
  %753 = vmatprep.subr.mxu0 0.0
  %754 = vmatpush1.msra.mxu0 0.0
  %755 = vmatprep.subr.mxu0 0.0
  %756 = vmatpush1.msra.mxu0 0.0
  %757 = vmatprep.subr.mxu0 0.0
  %758 = vmatpush1.msra.mxu0 0.0
  %759 = vmatprep.subr.mxu0 0.0
  %760 = vmatpush1.msra.mxu0 0.0
  %761 = vmatprep.subr.mxu0 0.0
  %762 = vmatpush1.msra.mxu0 0.0
  %763 = vmatprep.subr.mxu0 0.0
  %764 = vmatpush1.msra.mxu0 0.0
  %765 = vmatprep.subr.mxu0 0.0
  %766 = vmatpush1.msra.mxu0 0.0
  %767 = vmatprep.subr.mxu0 0.0
  %768 = vmatpush1.msra.mxu0 0.0
  %769 = vmatprep.subr.mxu0 0.0
  %770 = vmatpush1.msra.mxu0 0.0
  %771 = vmatprep.subr.mxu0 0.0
  %772 = vmatpush1.msra.mxu0 0.0
  %773 = vmatprep.subr.mxu0 0.0
  %774 = vmatpush1.msra.mxu0 0.0
  %775 = vmatprep.subr.mxu0 0.0
  %776 = vmatpush1.msra.mxu0 0.0
  %777 = vmatprep.subr.mxu0 0.0
  %778 = vmatpush1.msra.mxu0 0.0
  %779 = vmatprep.subr.mxu0 0.0
  %780 = vmatpush1.msra.mxu0 0.0
  %781 = vmatprep.subr.mxu0 0.0
  %782 = vmatpush1.msra.mxu0 0.0
  %783 = vmatprep.subr.mxu0 0.0
  %784 = vmatpush1.msra.mxu0 0.0
  %785 = vmatprep.subr.mxu0 0.0
  %786 = vmatpush1.msra.mxu0 0.0
  %787 = vmatprep.subr.mxu0 0.0
  %788 = vmatpush1.msra.mxu0 0.0
  %789 = vmatprep.mubr.f32.mxu0 0.0
  %790 = vmatmul.mubr.f32.gmra.mrb[0].mxu0 %v551
  %v791 = vpop.f32.mrb[0].mxu0
  %v792 = vadd.f32 %v537, %v791
  %v793 = vpop.f32.mrb[0].mxu0
  %794 = vmatprep.mubr.f32.mxu0 0.0
  %795 = vmatmul.mubr.f32.gmra.mrb[0].mxu0 %v554
  %v796 = vpop.f32.mrb[0].mxu0
  %v797 = vadd.f32 %v542, %v796
  %v798 = vpop.f32.mrb[0].mxu0
  %799 = vmatprep.mubr.f32.mxu0 0.0
  %800 = vmatmul.mubr.f32.gmra.mrb[0].mxu0 %v557
  %v801 = vpop.f32.mrb[0].mxu0
  %v802 = vadd.f32 %v547, %v801
  %v803 = vpop.f32.mrb[0].mxu0
  %804 = vdwg.mxu0
  %vm805 = vcmp.eq.s32.totalorder %v47, %v48
  %vm806 = vcmp.eq.s32.totalorder %v47, %v49
  %vm807 = vcmp.eq.s32.totalorder %v47, %v50
  %v808 = vsel %vm805, 1, 0
  %v809 = vsel %vm806, 1, 0
  %v810 = vsel %vm807, 1, 0
  %v811 = vcvt.s32.f32 %v808
  %v812 = vcvt.s32.f32 %v809
  %v813 = vcvt.s32.f32 %v810
  %v815 = vsel %vm63, %v811, 0
  %v818 = vsel %vm63, %v812, 0
  %v821 = vsel %vm63, %v813, 0
  %823 = vmatprep.subr.mxu0 0.0
  %824 = vmatpush1.msra.mxu0 %v38
  %825 = vmatprep.subr.mxu0 0.0
  %826 = vmatpush1.msra.mxu0 %v39
  %827 = vmatprep.subr.mxu0 0.0
  %828 = vmatpush1.msra.mxu0 %v40
  %829 = vmatprep.subr.mxu0 0.0
  %830 = vmatpush1.msra.mxu0 %v41
  %831 = vmatprep.subr.mxu0 0.0
  %832 = vmatpush1.msra.mxu0 0.0
  %833 = vmatprep.subr.mxu0 0.0
  %834 = vmatpush1.msra.mxu0 0.0
  %835 = vmatprep.subr.mxu0 0.0
  %836 = vmatpush1.msra.mxu0 0.0
  %837 = vmatprep.subr.mxu0 0.0
  %838 = vmatpush1.msra.mxu0 0.0
  %839 = vmatprep.subr.mxu0 0.0
  %840 = vmatpush1.msra.mxu0 0.0
  %841 = vmatprep.subr.mxu0 0.0
  %842 = vmatpush1.msra.mxu0 0.0
  %843 = vmatprep.subr.mxu0 0.0
  %844 = vmatpush1.msra.mxu0 0.0
  %845 = vmatprep.subr.mxu0 0.0
  %846 = vmatpush1.msra.mxu0 0.0
  %847 = vmatprep.subr.mxu0 0.0
  %848 = vmatpush1.msra.mxu0 0.0
  %849 = vmatprep.subr.mxu0 0.0
  %850 = vmatpush1.msra.mxu0 0.0
  %851 = vmatprep.subr.mxu0 0.0
  %852 = vmatpush1.msra.mxu0 0.0
  %853 = vmatprep.subr.mxu0 0.0
  %854 = vmatpush1.msra.mxu0 0.0
  %855 = vmatprep.subr.mxu0 0.0
  %856 = vmatpush1.msra.mxu0 0.0
  %857 = vmatprep.subr.mxu0 0.0
  %858 = vmatpush1.msra.mxu0 0.0
  %859 = vmatprep.subr.mxu0 0.0
  %860 = vmatpush1.msra.mxu0 0.0
  %861 = vmatprep.subr.mxu0 0.0
  %862 = vmatpush1.msra.mxu0 0.0
  %863 = vmatprep.subr.mxu0 0.0
  %864 = vmatpush1.msra.mxu0 0.0
  %865 = vmatprep.subr.mxu0 0.0
  %866 = vmatpush1.msra.mxu0 0.0
  %867 = vmatprep.subr.mxu0 0.0
  %868 = vmatpush1.msra.mxu0 0.0
  %869 = vmatprep.subr.mxu0 0.0
  %870 = vmatpush1.msra.mxu0 0.0
  %871 = vmatprep.subr.mxu0 0.0
  %872 = vmatpush1.msra.mxu0 0.0
  %873 = vmatprep.subr.mxu0 0.0
  %874 = vmatpush1.msra.mxu0 0.0
  %875 = vmatprep.subr.mxu0 0.0
  %876 = vmatpush1.msra.mxu0 0.0
  %877 = vmatprep.subr.mxu0 0.0
  %878 = vmatpush1.msra.mxu0 0.0
  %879 = vmatprep.subr.mxu0 0.0
  %880 = vmatpush1.msra.mxu0 0.0
  %881 = vmatprep.subr.mxu0 0.0
  %882 = vmatpush1.msra.mxu0 0.0
  %883 = vmatprep.subr.mxu0 0.0
  %884 = vmatpush1.msra.mxu0 0.0
  %885 = vmatprep.subr.mxu0 0.0
  %886 = vmatpush1.msra.mxu0 0.0
  %887 = vmatprep.mubr.f32.mxu0 0.0
  %888 = vmatmul.mubr.f32.gmra.mrb[0].mxu0 %v815
  %v889 = vpop.f32.mrb[0].mxu0
  %v890 = vadd.f32 0.0, %v889
  %v891 = vpop.f32.mrb[0].mxu0
  %892 = vmatprep.mubr.f32.mxu0 0.0
  %893 = vmatmul.mubr.f32.gmra.mrb[0].mxu0 %v818
  %v894 = vpop.f32.mrb[0].mxu0
  %v895 = vadd.f32 0.0, %v894
  %v896 = vpop.f32.mrb[0].mxu0
  %897 = vmatprep.mubr.f32.mxu0 0.0
  %898 = vmatmul.mubr.f32.gmra.mrb[0].mxu0 %v821
  %v899 = vpop.f32.mrb[0].mxu0
  %v900 = vadd.f32 0.0, %v899
  %v901 = vpop.f32.mrb[0].mxu0
  %902 = vdwg.mxu0
  %s903 = scalar_lea.vmem %s1, 320
  %v904 = vld [vmem:[%s903] sm:$0xff]
  %v905 = vld [vmem:[%s903 + $0x8] sm:$0xff]
  %v906 = vld [vmem:[%s903 + $0x10] sm:$0xff]
  %v907 = vld [vmem:[%s903 + $0x18] sm:$0xff]
  %v908 = vld [vmem:[%s903 + $0x20] sm:$0xff]
  %v909 = vld [vmem:[%s903 + $0x28] sm:$0xff]
  %v910 = vld [vmem:[%s903 + $0x30] sm:$0xff]
  %v911 = vld [vmem:[%s903 + $0x38] sm:$0xff]
  %v912 = vld [vmem:[%s903 + $0x40] sm:$0xff]
  %v913 = vld [vmem:[%s903 + $0x48] sm:$0xff]
  %v914 = vld [vmem:[%s903 + $0x50] sm:$0xff]
  %v915 = vld [vmem:[%s903 + $0x58] sm:$0xff]
  %v916 = vld [vmem:[%s903 + $0x60] sm:$0xff]
  %v917 = vld [vmem:[%s903 + $0x68] sm:$0xff]
  %v918 = vld [vmem:[%s903 + $0x70] sm:$0xff]
  %v919 = vld [vmem:[%s903 + $0x78] sm:$0xff]
  %v920 = vld [vmem:[%s903 + $0x80] sm:$0xff]
  %v921 = vld [vmem:[%s903 + $0x88] sm:$0xff]
  %v922 = vld [vmem:[%s903 + $0x90] sm:$0xff]
  %v923 = vld [vmem:[%s903 + $0x98] sm:$0xff]
  %v925 = vsel %vm63, %v890, 0
  %v928 = vsel %vm63, %v895, 0
  %v931 = vsel %vm63, %v900, 0
  %933 = vmatprep.subr.mxu0 %v905
  %934 = vmatpush1.msra.mxu0 %v904
  %935 = vmatprep.subr.mxu0 %v910
  %936 = vmatpush1.msra.mxu0 %v909
  %937 = vmatprep.subr.mxu0 %v915
  %938 = vmatpush1.msra.mxu0 %v914
  %939 = vmatprep.subr.mxu0 %v920
  %940 = vmatpush1.msra.mxu0 %v919
  %941 = vmatprep.subr.mxu0 0.0
  %942 = vmatpush1.msra.mxu0 0.0
  %943 = vmatprep.subr.mxu0 0.0
  %944 = vmatpush1.msra.mxu0 0.0
  %945 = vmatprep.subr.mxu0 0.0
  %946 = vmatpush1.msra.mxu0 0.0
  %947 = vmatprep.subr.mxu0 0.0
  %948 = vmatpush1.msra.mxu0 0.0
  %949 = vmatprep.subr.mxu0 0.0
  %950 = vmatpush1.msra.mxu0 0.0
  %951 = vmatprep.subr.mxu0 0.0
  %952 = vmatpush1.msra.mxu0 0.0
  %953 = vmatprep.subr.mxu0 0.0
  %954 = vmatpush1.msra.mxu0 0.0
  %955 = vmatprep.subr.mxu0 0.0
  %956 = vmatpush1.msra.mxu0 0.0
  %957 = vmatprep.subr.mxu0 0.0
  %958 = vmatpush1.msra.mxu0 0.0
  %959 = vmatprep.subr.mxu0 0.0
  %960 = vmatpush1.msra.mxu0 0.0
  %961 = vmatprep.subr.mxu0 0.0
  %962 = vmatpush1.msra.mxu0 0.0
  %963 = vmatprep.subr.mxu0 0.0
  %964 = vmatpush1.msra.mxu0 0.0
  %965 = vmatprep.subr.mxu0 0.0
  %966 = vmatpush1.msra.mxu0 0.0
  %967 = vmatprep.subr.mxu0 0.0
  %968 = vmatpush1.msra.mxu0 0.0
  %969 = vmatprep.subr.mxu0 0.0
  %970 = vmatpush1.msra.mxu0 0.0
  %971 = vmatprep.subr.mxu0 0.0
  %972 = vmatpush1.msra.mxu0 0.0
  %973 = vmatprep.subr.mxu0 0.0
  %974 = vmatpush1.msra.mxu0 0.0
  %975 = vmatprep.subr.mxu0 0.0
  %976 = vmatpush1.msra.mxu0 0.0
  %977 = vmatprep.subr.mxu0 0.0
  %978 = vmatpush1.msra.mxu0 0.0
  %979 = vmatprep.subr.mxu0 0.0
  %980 = vmatpush1.msra.mxu0 0.0
  %981 = vmatprep.subr.mxu0 0.0
  %982 = vmatpush1.msra.mxu0 0.0
  %983 = vmatprep.subr.mxu0 0.0
  %984 = vmatpush1.msra.mxu0 0.0
  %985 = vmatprep.subr.mxu0 0.0
  %986 = vmatpush1.msra.mxu0 0.0
  %987 = vmatprep.subr.mxu0 0.0
  %988 = vmatpush1.msra.mxu0 0.0
  %989 = vmatprep.subr.mxu0 0.0
  %990 = vmatpush1.msra.mxu0 0.0
  %991 = vmatprep.subr.mxu0 0.0
  %992 = vmatpush1.msra.mxu0 0.0
  %993 = vmatprep.subr.mxu0 0.0
  %994 = vmatpush1.msra.mxu0 0.0
  %995 = vmatprep.subr.mxu0 0.0
  %996 = vmatpush1.msra.mxu0 0.0
  %997 = vmatprep.mubr.f32.mxu0 0.0
  %998 = vmatmul.mubr.f32.gmra.mrb[0].mxu0 %v925
  %v999 = vpop.f32.mrb[0].mxu0
  %v1000 = vadd.f32 0.0, %v999
  %v1001 = vpop.f32.mrb[0].mxu0
  %v1002 = vadd.f32 0.0, %v1001
  %1003 = vmatprep.mubr.f32.mxu0 0.0
  %1004 = vmatmul.mubr.f32.gmra.mrb[0].mxu0 %v928
  %v1005 = vpop.f32.mrb[0].mxu0
  %v1006 = vadd.f32 0.0, %v1005
  %v1007 = vpop.f32.mrb[0].mxu0
  %v1008 = vadd.f32 0.0, %v1007
  %1009 = vmatprep.mubr.f32.mxu0 0.0
  %1010 = vmatmul.mubr.f32.gmra.mrb[0].mxu0 %v931
  %v1011 = vpop.f32.mrb[0].mxu0
  %v1012 = vadd.f32 0.0, %v1011
  %v1013 = vpop.f32.mrb[0].mxu0
  %v1014 = vadd.f32 0.0, %v1013
  %1015 = vdwg.mxu0
  %1016 = vmatprep.subr.mxu0 %v907
  %1017 = vmatpush1.msra.mxu0 %v906
  %1018 = vmatprep.subr.mxu0 %v912
  %1019 = vmatpush1.msra.mxu0 %v911
  %1020 = vmatprep.subr.mxu0 %v917
  %1021 = vmatpush1.msra.mxu0 %v916
  %1022 = vmatprep.subr.mxu0 %v922
  %1023 = vmatpush1.msra.mxu0 %v921
  %1024 = vmatprep.subr.mxu0 0.0
  %1025 = vmatpush1.msra.mxu0 0.0
  %1026 = vmatprep.subr.mxu0 0.0
  %1027 = vmatpush1.msra.mxu0 0.0
  %1028 = vmatprep.subr.mxu0 0.0
  %1029 = vmatpush1.msra.mxu0 0.0
  %1030 = vmatprep.subr.mxu0 0.0
  %1031 = vmatpush1.msra.mxu0 0.0
  %1032 = vmatprep.subr.mxu0 0.0
  %1033 = vmatpush1.msra.mxu0 0.0
  %1034 = vmatprep.subr.mxu0 0.0
  %1035 = vmatpush1.msra.mxu0 0.0
  %1036 = vmatprep.subr.mxu0 0.0
  %1037 = vmatpush1.msra.mxu0 0.0
  %1038 = vmatprep.subr.mxu0 0.0
  %1039 = vmatpush1.msra.mxu0 0.0
  %1040 = vmatprep.subr.mxu0 0.0
  %1041 = vmatpush1.msra.mxu0 0.0
  %1042 = vmatprep.subr.mxu0 0.0
  %1043 = vmatpush1.msra.mxu0 0.0
  %1044 = vmatprep.subr.mxu0 0.0
  %1045 = vmatpush1.msra.mxu0 0.0
  %1046 = vmatprep.subr.mxu0 0.0
  %1047 = vmatpush1.msra.mxu0 0.0
  %1048 = vmatprep.subr.mxu0 0.0
  %1049 = vmatpush1.msra.mxu0 0.0
  %1050 = vmatprep.subr.mxu0 0.0
  %1051 = vmatpush1.msra.mxu0 0.0
  %1052 = vmatprep.subr.mxu0 0.0
  %1053 = vmatpush1.msra.mxu0 0.0
  %1054 = vmatprep.subr.mxu0 0.0
  %1055 = vmatpush1.msra.mxu0 0.0
  %1056 = vmatprep.subr.mxu0 0.0
  %1057 = vmatpush1.msra.mxu0 0.0
  %1058 = vmatprep.subr.mxu0 0.0
  %1059 = vmatpush1.msra.mxu0 0.0
  %1060 = vmatprep.subr.mxu0 0.0
  %1061 = vmatpush1.msra.mxu0 0.0
  %1062 = vmatprep.subr.mxu0 0.0
  %1063 = vmatpush1.msra.mxu0 0.0
  %1064 = vmatprep.subr.mxu0 0.0
  %1065 = vmatpush1.msra.mxu0 0.0
  %1066 = vmatprep.subr.mxu0 0.0
  %1067 = vmatpush1.msra.mxu0 0.0
  %1068 = vmatprep.subr.mxu0 0.0
  %1069 = vmatpush1.msra.mxu0 0.0
  %1070 = vmatprep.subr.mxu0 0.0
  %1071 = vmatpush1.msra.mxu0 0.0
  %1072 = vmatprep.subr.mxu0 0.0
  %1073 = vmatpush1.msra.mxu0 0.0
  %1074 = vmatprep.subr.mxu0 0.0
  %1075 = vmatpush1.msra.mxu0 0.0
  %1076 = vmatprep.subr.mxu0 0.0
  %1077 = vmatpush1.msra.mxu0 0.0
  %1078 = vmatprep.subr.mxu0 0.0
  %1079 = vmatpush1.msra.mxu0 0.0
  %1080 = vmatprep.mubr.f32.mxu0 0.0
  %1081 = vmatmul.mubr.f32.gmra.mrb[0].mxu0 %v925
  %v1082 = vpop.f32.mrb[0].mxu0
  %v1083 = vadd.f32 0.0, %v1082
  %v1084 = vpop.f32.mrb[0].mxu0
  %v1085 = vadd.f32 0.0, %v1084
  %1086 = vmatprep.mubr.f32.mxu0 0.0
  %1087 = vmatmul.mubr.f32.gmra.mrb[0].mxu0 %v928
  %v1088 = vpop.f32.mrb[0].mxu0
  %v1089 = vadd.f32 0.0, %v1088
  %v1090 = vpop.f32.mrb[0].mxu0
  %v1091 = vadd.f32 0.0, %v1090
  %1092 = vmatprep.mubr.f32.mxu0 0.0
  %1093 = vmatmul.mubr.f32.gmra.mrb[0].mxu0 %v931
  %v1094 = vpop.f32.mrb[0].mxu0
  %v1095 = vadd.f32 0.0, %v1094
  %v1096 = vpop.f32.mrb[0].mxu0
  %v1097 = vadd.f32 0.0, %v1096
  %1098 = vdwg.mxu0
  %1099 = vmatprep.subr.mxu0 0.0
  %1100 = vmatpush1.msra.mxu0 %v908
  %1101 = vmatprep.subr.mxu0 0.0
  %1102 = vmatpush1.msra.mxu0 %v913
  %1103 = vmatprep.subr.mxu0 0.0
  %1104 = vmatpush1.msra.mxu0 %v918
  %1105 = vmatprep.subr.mxu0 0.0
  %1106 = vmatpush1.msra.mxu0 %v923
  %1107 = vmatprep.subr.mxu0 0.0
  %1108 = vmatpush1.msra.mxu0 0.0
  %1109 = vmatprep.subr.mxu0 0.0
  %1110 = vmatpush1.msra.mxu0 0.0
  %1111 = vmatprep.subr.mxu0 0.0
  %1112 = vmatpush1.msra.mxu0 0.0
  %1113 = vmatprep.subr.mxu0 0.0
  %1114 = vmatpush1.msra.mxu0 0.0
  %1115 = vmatprep.subr.mxu0 0.0
  %1116 = vmatpush1.msra.mxu0 0.0
  %1117 = vmatprep.subr.mxu0 0.0
  %1118 = vmatpush1.msra.mxu0 0.0
  %1119 = vmatprep.subr.mxu0 0.0
  %1120 = vmatpush1.msra.mxu0 0.0
  %1121 = vmatprep.subr.mxu0 0.0
  %1122 = vmatpush1.msra.mxu0 0.0
  %1123 = vmatprep.subr.mxu0 0.0
  %1124 = vmatpush1.msra.mxu0 0.0
  %1125 = vmatprep.subr.mxu0 0.0
  %1126 = vmatpush1.msra.mxu0 0.0
  %1127 = vmatprep.subr.mxu0 0.0
  %1128 = vmatpush1.msra.mxu0 0.0
  %1129 = vmatprep.subr.mxu0 0.0
  %1130 = vmatpush1.msra.mxu0 0.0
  %1131 = vmatprep.subr.mxu0 0.0
  %1132 = vmatpush1.msra.mxu0 0.0
  %1133 = vmatprep.subr.mxu0 0.0
  %1134 = vmatpush1.msra.mxu0 0.0
  %1135 = vmatprep.subr.mxu0 0.0
  %1136 = vmatpush1.msra.mxu0 0.0
  %1137 = vmatprep.subr.mxu0 0.0
  %1138 = vmatpush1.msra.mxu0 0.0
  %1139 = vmatprep.subr.mxu0 0.0
  %1140 = vmatpush1.msra.mxu0 0.0
  %1141 = vmatprep.subr.mxu0 0.0
  %1142 = vmatpush1.msra.mxu0 0.0
  %1143 = vmatprep.subr.mxu0 0.0
  %1144 = vmatpush1.msra.mxu0 0.0
  %1145 = vmatprep.subr.mxu0 0.0
  %1146 = vmatpush1.msra.mxu0 0.0
  %1147 = vmatprep.subr.mxu0 0.0
  %1148 = vmatpush1.msra.mxu0 0.0
  %1149 = vmatprep.subr.mxu0 0.0
  %1150 = vmatpush1.msra.mxu0 0.0
  %1151 = vmatprep.subr.mxu0 0.0
  %1152 = vmatpush1.msra.mxu0 0.0
  %1153 = vmatprep.subr.mxu0 0.0
  %1154 = vmatpush1.msra.mxu0 0.0
  %1155 = vmatprep.subr.mxu0 0.0
  %1156 = vmatpush1.msra.mxu0 0.0
  %1157 = vmatprep.subr.mxu0 0.0
  %1158 = vmatpush1.msra.mxu0 0.0
  %1159 = vmatprep.subr.mxu0 0.0
  %1160 = vmatpush1.msra.mxu0 0.0
  %1161 = vmatprep.subr.mxu0 0.0
  %1162 = vmatpush1.msra.mxu0 0.0
  %1163 = vmatprep.mubr.f32.mxu0 0.0
  %1164 = vmatmul.mubr.f32.gmra.mrb[0].mxu0 %v925
  %v1165 = vpop.f32.mrb[0].mxu0
  %v1166 = vadd.f32 0.0, %v1165
  %v1167 = vpop.f32.mrb[0].mxu0
  %1168 = vmatprep.mubr.f32.mxu0 0.0
  %1169 = vmatmul.mubr.f32.gmra.mrb[0].mxu0 %v928
  %v1170 = vpop.f32.mrb[0].mxu0
  %v1171 = vadd.f32 0.0, %v1170
  %v1172 = vpop.f32.mrb[0].mxu0
  %1173 = vmatprep.mubr.f32.mxu0 0.0
  %1174 = vmatmul.mubr.f32.gmra.mrb[0].mxu0 %v931
  %v1175 = vpop.f32.mrb[0].mxu0
  %v1176 = vadd.f32 0.0, %v1175
  %v1177 = vpop.f32.mrb[0].mxu0
  %1178 = vdwg.mxu0
  %v1179 = vadd.f32 %v626, %v1000
  %v1180 = vadd.f32 %v628, %v1002
  %v1181 = vadd.f32 %v709, %v1083
  %v1182 = vadd.f32 %v711, %v1085
  %v1183 = vadd.f32 %v792, %v1166
  %v1184 = vadd.f32 %v632, %v1006
  %v1185 = vadd.f32 %v634, %v1008
  %v1186 = vadd.f32 %v715, %v1089
  %v1187 = vadd.f32 %v717, %v1091
  %v1188 = vadd.f32 %v797, %v1171
  %v1189 = vadd.f32 %v638, %v1012
  %v1190 = vadd.f32 %v640, %v1014
  %v1191 = vadd.f32 %v721, %v1095
  %v1192 = vadd.f32 %v723, %v1097
  %v1193 = vadd.f32 %v802, %v1176
  %v1194 = vld [vmem:[%s2] sm:$0x1f]
  %v1196 = vlaneseq
  %v1197 = vshrl.u32 %v1196, 7
  %v1198 = vsub.s32 0, %v1197
  %v1199 = vrot.slane %v1194, %v1198
  %v1200 = vlaneseq
  %v1201 = vshrl.u32 %v1200, 7
  %v1202 = vsub.s32 1, %v1201
  %v1203 = vrot.slane %v1194, %v1202
  %v1204 = vlaneseq
  %v1205 = vshrl.u32 %v1204, 7
  %v1206 = vsub.s32 2, %v1205
  %v1207 = vrot.slane %v1194, %v1206
  %v1208 = vlaneseq
  %v1209 = vshrl.u32 %v1208, 7
  %v1210 = vsub.s32 3, %v1209
  %v1211 = vrot.slane %v1194, %v1210
  %v1212 = vlaneseq
  %v1213 = vshrl.u32 %v1212, 7
  %v1214 = vsub.s32 4, %v1213
  %v1215 = vrot.slane %v1194, %v1214
  %v1221 = vadd.f32 %v1179, %v1199
  %v1222 = vadd.f32 %v1180, %v1203
  %v1223 = vadd.f32 %v1181, %v1207
  %v1224 = vadd.f32 %v1182, %v1211
  %v1225 = vadd.f32 %v1183, %v1215
  %v1226 = vadd.f32 %v1184, %v1199
  %v1227 = vadd.f32 %v1185, %v1203
  %v1228 = vadd.f32 %v1186, %v1207
  %v1229 = vadd.f32 %v1187, %v1211
  %v1230 = vadd.f32 %v1188, %v1215
  %v1231 = vadd.f32 %v1189, %v1199
  %v1232 = vadd.f32 %v1190, %v1203
  %v1233 = vadd.f32 %v1191, %v1207
  %v1234 = vadd.f32 %v1192, %v1211
  %v1235 = vadd.f32 %v1193, %v1215
  %v1236 = vsub.f32 0.0, %v1221
  %v1237 = vsub.f32 0.0, %v1222
  %v1238 = vsub.f32 0.0, %v1223
  %v1239 = vsub.f32 0.0, %v1224
  %v1240 = vsub.f32 0.0, %v1225
  %v1241 = vsub.f32 0.0, %v1226
  %v1242 = vsub.f32 0.0, %v1227
  %v1243 = vsub.f32 0.0, %v1228
  %v1244 = vsub.f32 0.0, %v1229
  %v1245 = vsub.f32 0.0, %v1230
  %v1246 = vsub.f32 0.0, %v1231
  %v1247 = vsub.f32 0.0, %v1232
  %v1248 = vsub.f32 0.0, %v1233
  %v1249 = vsub.f32 0.0, %v1234
  %v1250 = vsub.f32 0.0, %v1235
  %v1251 = vmul.f32 %v1236, 1.442695
  %v1252 = vpow.pop %v1251
  %v1253 = vmul.f32 %v1237, 1.442695
  %v1254 = vpow.pop %v1253
  %v1255 = vmul.f32 %v1238, 1.442695
  %v1256 = vpow.pop %v1255
  %v1257 = vmul.f32 %v1239, 1.442695
  %v1258 = vpow.pop %v1257
  %v1259 = vmul.f32 %v1240, 1.442695
  %v1260 = vpow.pop %v1259
  %v1261 = vmul.f32 %v1241, 1.442695
  %v1262 = vpow.pop %v1261
  %v1263 = vmul.f32 %v1242, 1.442695
  %v1264 = vpow.pop %v1263
  %v1265 = vmul.f32 %v1243, 1.442695
  %v1266 = vpow.pop %v1265
  %v1267 = vmul.f32 %v1244, 1.442695
  %v1268 = vpow.pop %v1267
  %v1269 = vmul.f32 %v1245, 1.442695
  %v1270 = vpow.pop %v1269
  %v1271 = vmul.f32 %v1246, 1.442695
  %v1272 = vpow.pop %v1271
  %v1273 = vmul.f32 %v1247, 1.442695
  %v1274 = vpow.pop %v1273
  %v1275 = vmul.f32 %v1248, 1.442695
  %v1276 = vpow.pop %v1275
  %v1277 = vmul.f32 %v1249, 1.442695
  %v1278 = vpow.pop %v1277
  %v1279 = vmul.f32 %v1250, 1.442695
  %v1280 = vpow.pop %v1279
  %v1281 = vadd.f32 %v1252, 1.0
  %v1282 = vadd.f32 %v1254, 1.0
  %v1283 = vadd.f32 %v1256, 1.0
  %v1284 = vadd.f32 %v1258, 1.0
  %v1285 = vadd.f32 %v1260, 1.0
  %v1286 = vadd.f32 %v1262, 1.0
  %v1287 = vadd.f32 %v1264, 1.0
  %v1288 = vadd.f32 %v1266, 1.0
  %v1289 = vadd.f32 %v1268, 1.0
  %v1290 = vadd.f32 %v1270, 1.0
  %v1291 = vadd.f32 %v1272, 1.0
  %v1292 = vadd.f32 %v1274, 1.0
  %v1293 = vadd.f32 %v1276, 1.0
  %v1294 = vadd.f32 %v1278, 1.0
  %v1295 = vadd.f32 %v1280, 1.0
  %v1296 = vrcp.pop %v1281
  %v1297 = vmul.f32 1.0, %v1296
  %v1298 = vrcp.pop %v1282
  %v1299 = vmul.f32 1.0, %v1298
  %v1300 = vrcp.pop %v1283
  %v1301 = vmul.f32 1.0, %v1300
  %v1302 = vrcp.pop %v1284
  %v1303 = vmul.f32 1.0, %v1302
  %v1304 = vrcp.pop %v1285
  %v1305 = vmul.f32 1.0, %v1304
  %v1306 = vrcp.pop %v1286
  %v1307 = vmul.f32 1.0, %v1306
  %v1308 = vrcp.pop %v1287
  %v1309 = vmul.f32 1.0, %v1308
  %v1310 = vrcp.pop %v1288
  %v1311 = vmul.f32 1.0, %v1310
  %v1312 = vrcp.pop %v1289
  %v1313 = vmul.f32 1.0, %v1312
  %v1314 = vrcp.pop %v1290
  %v1315 = vmul.f32 1.0, %v1314
  %v1316 = vrcp.pop %v1291
  %v1317 = vmul.f32 1.0, %v1316
  %v1318 = vrcp.pop %v1292
  %v1319 = vmul.f32 1.0, %v1318
  %v1320 = vrcp.pop %v1293
  %v1321 = vmul.f32 1.0, %v1320
  %v1322 = vrcp.pop %v1294
  %v1323 = vmul.f32 1.0, %v1322
  %v1324 = vrcp.pop %v1295
  %v1325 = vmul.f32 1.0, %v1324
  %vm1326 = vcmask 138240
  %v1327 = vsel %vm1326, %v60, 0
  %v1329 = vsel %vm1326, %v61, 0
  %vm1331 = vcmask 1040384
  %v1333 = vsel %vm1331, %v1317, 0
  %v1336 = vsel %vm1331, %v1319, 0
  %v1339 = vsel %vm1331, %v1321, 0
  %v1342 = vsel %vm1331, %v1323, 0
  %v1345 = vsel %vm1331, %v1325, 0
  %1347 = vmatprep.subr.mxu0 %v1299
  %1348 = vmatpush1.msra.mxu0 %v1297
  %1349 = vmatprep.subr.mxu0 %v1309
  %1350 = vmatpush1.msra.mxu0 %v1307
  %1351 = vmatprep.subr.mxu0 %v1336
  %1352 = vmatpush1.msra.mxu0 %v1333
  %1353 = vmatprep.subr.mxu0 0.0
  %1354 = vmatpush1.msra.mxu0 0.0
  %1355 = vmatprep.subr.mxu0 0.0
  %1356 = vmatpush1.msra.mxu0 0.0
  %1357 = vmatprep.subr.mxu0 0.0
  %1358 = vmatpush1.msra.mxu0 0.0
  %1359 = vmatprep.subr.mxu0 0.0
  %1360 = vmatpush1.msra.mxu0 0.0
  %1361 = vmatprep.subr.mxu0 0.0
  %1362 = vmatpush1.msra.mxu0 0.0
  %1363 = vmatprep.subr.mxu0 0.0
  %1364 = vmatpush1.msra.mxu0 0.0
  %1365 = vmatprep.subr.mxu0 0.0
  %1366 = vmatpush1.msra.mxu0 0.0
  %1367 = vmatprep.subr.mxu0 0.0
  %1368 = vmatpush1.msra.mxu0 0.0
  %1369 = vmatprep.subr.mxu0 0.0
  %1370 = vmatpush1.msra.mxu0 0.0
  %1371 = vmatprep.subr.mxu0 0.0
  %1372 = vmatpush1.msra.mxu0 0.0
  %1373 = vmatprep.subr.mxu0 0.0
  %1374 = vmatpush1.msra.mxu0 0.0
  %1375 = vmatprep.subr.mxu0 0.0
  %1376 = vmatpush1.msra.mxu0 0.0
  %1377 = vmatprep.subr.mxu0 0.0
  %1378 = vmatpush1.msra.mxu0 0.0
  %1379 = vmatprep.subr.mxu0 0.0
  %1380 = vmatpush1.msra.mxu0 0.0
  %1381 = vmatprep.subr.mxu0 0.0
  %1382 = vmatpush1.msra.mxu0 0.0
  %1383 = vmatprep.subr.mxu0 0.0
  %1384 = vmatpush1.msra.mxu0 0.0
  %1385 = vmatprep.subr.mxu0 0.0
  %1386 = vmatpush1.msra.mxu0 0.0
  %1387 = vmatprep.subr.mxu0 0.0
  %1388 = vmatpush1.msra.mxu0 0.0
  %1389 = vmatprep.subr.mxu0 0.0
  %1390 = vmatpush1.msra.mxu0 0.0
  %1391 = vmatprep.subr.mxu0 0.0
  %1392 = vmatpush1.msra.mxu0 0.0
  %1393 = vmatprep.subr.mxu0 0.0
  %1394 = vmatpush1.msra.mxu0 0.0
  %1395 = vmatprep.subr.mxu0 0.0
  %1396 = vmatpush1.msra.mxu0 0.0
  %1397 = vmatprep.subr.mxu0 0.0
  %1398 = vmatpush1.msra.mxu0 0.0
  %1399 = vmatprep.subr.mxu0 0.0
  %1400 = vmatpush1.msra.mxu0 0.0
  %1401 = vmatprep.subr.mxu0 0.0
  %1402 = vmatpush1.msra.mxu0 0.0
  %1403 = vmatprep.subr.mxu0 0.0
  %1404 = vmatpush1.msra.mxu0 0.0
  %1405 = vmatprep.subr.mxu0 0.0
  %1406 = vmatpush1.msra.mxu0 0.0
  %1407 = vmatprep.subr.mxu0 0.0
  %1408 = vmatpush1.msra.mxu0 0.0
  %1409 = vmatprep.subr.mxu0 0.0
  %1410 = vmatpush1.msra.mxu0 0.0
  %1411 = vmatprep.mubr.f32.mxu0 0.0
  %1412 = vmatmul.mubr.f32.gmra.mrb[0].mxu0 %v1327
  %v1413 = vpop.f32.mrb[0].mxu0
  %v1414 = vadd.f32 0.0, %v1413
  %v1415 = vpop.f32.mrb[0].mxu0
  %v1416 = vadd.f32 0.0, %v1415
  %1417 = vmatprep.mubr.f32.mxu0 0.0
  %1418 = vmatmul.mubr.f32.gmra.mrb[0].mxu0 %v1329
  %v1419 = vpop.f32.mrb[0].mxu0
  %v1420 = vadd.f32 0.0, %v1419
  %v1421 = vpop.f32.mrb[0].mxu0
  %v1422 = vadd.f32 0.0, %v1421
  %1423 = vdwg.mxu0
  %1424 = vmatprep.subr.mxu0 %v1303
  %1425 = vmatpush1.msra.mxu0 %v1301
  %1426 = vmatprep.subr.mxu0 %v1313
  %1427 = vmatpush1.msra.mxu0 %v1311
  %1428 = vmatprep.subr.mxu0 %v1342
  %1429 = vmatpush1.msra.mxu0 %v1339
  %1430 = vmatprep.subr.mxu0 0.0
  %1431 = vmatpush1.msra.mxu0 0.0
  %1432 = vmatprep.subr.mxu0 0.0
  %1433 = vmatpush1.msra.mxu0 0.0
  %1434 = vmatprep.subr.mxu0 0.0
  %1435 = vmatpush1.msra.mxu0 0.0
  %1436 = vmatprep.subr.mxu0 0.0
  %1437 = vmatpush1.msra.mxu0 0.0
  %1438 = vmatprep.subr.mxu0 0.0
  %1439 = vmatpush1.msra.mxu0 0.0
  %1440 = vmatprep.subr.mxu0 0.0
  %1441 = vmatpush1.msra.mxu0 0.0
  %1442 = vmatprep.subr.mxu0 0.0
  %1443 = vmatpush1.msra.mxu0 0.0
  %1444 = vmatprep.subr.mxu0 0.0
  %1445 = vmatpush1.msra.mxu0 0.0
  %1446 = vmatprep.subr.mxu0 0.0
  %1447 = vmatpush1.msra.mxu0 0.0
  %1448 = vmatprep.subr.mxu0 0.0
  %1449 = vmatpush1.msra.mxu0 0.0
  %1450 = vmatprep.subr.mxu0 0.0
  %1451 = vmatpush1.msra.mxu0 0.0
  %1452 = vmatprep.subr.mxu0 0.0
  %1453 = vmatpush1.msra.mxu0 0.0
  %1454 = vmatprep.subr.mxu0 0.0
  %1455 = vmatpush1.msra.mxu0 0.0
  %1456 = vmatprep.subr.mxu0 0.0
  %1457 = vmatpush1.msra.mxu0 0.0
  %1458 = vmatprep.subr.mxu0 0.0
  %1459 = vmatpush1.msra.mxu0 0.0
  %1460 = vmatprep.subr.mxu0 0.0
  %1461 = vmatpush1.msra.mxu0 0.0
  %1462 = vmatprep.subr.mxu0 0.0
  %1463 = vmatpush1.msra.mxu0 0.0
  %1464 = vmatprep.subr.mxu0 0.0
  %1465 = vmatpush1.msra.mxu0 0.0
  %1466 = vmatprep.subr.mxu0 0.0
  %1467 = vmatpush1.msra.mxu0 0.0
  %1468 = vmatprep.subr.mxu0 0.0
  %1469 = vmatpush1.msra.mxu0 0.0
  %1470 = vmatprep.subr.mxu0 0.0
  %1471 = vmatpush1.msra.mxu0 0.0
  %1472 = vmatprep.subr.mxu0 0.0
  %1473 = vmatpush1.msra.mxu0 0.0
  %1474 = vmatprep.subr.mxu0 0.0
  %1475 = vmatpush1.msra.mxu0 0.0
  %1476 = vmatprep.subr.mxu0 0.0
  %1477 = vmatpush1.msra.mxu0 0.0
  %1478 = vmatprep.subr.mxu0 0.0
  %1479 = vmatpush1.msra.mxu0 0.0
  %1480 = vmatprep.subr.mxu0 0.0
  %1481 = vmatpush1.msra.mxu0 0.0
  %1482 = vmatprep.subr.mxu0 0.0
  %1483 = vmatpush1.msra.mxu0 0.0
  %1484 = vmatprep.subr.mxu0 0.0
  %1485 = vmatpush1.msra.mxu0 0.0
  %1486 = vmatprep.subr.mxu0 0.0
  %1487 = vmatpush1.msra.mxu0 0.0
  %1488 = vmatprep.mubr.f32.mxu0 0.0
  %1489 = vmatmul.mubr.f32.gmra.mrb[0].mxu0 %v1327
  %v1490 = vpop.f32.mrb[0].mxu0
  %v1491 = vadd.f32 0.0, %v1490
  %v1492 = vpop.f32.mrb[0].mxu0
  %v1493 = vadd.f32 0.0, %v1492
  %1494 = vmatprep.mubr.f32.mxu0 0.0
  %1495 = vmatmul.mubr.f32.gmra.mrb[0].mxu0 %v1329
  %v1496 = vpop.f32.mrb[0].mxu0
  %v1497 = vadd.f32 0.0, %v1496
  %v1498 = vpop.f32.mrb[0].mxu0
  %v1499 = vadd.f32 0.0, %v1498
  %1500 = vdwg.mxu0
  %1501 = vmatprep.subr.mxu0 0.0
  %1502 = vmatpush1.msra.mxu0 %v1305
  %1503 = vmatprep.subr.mxu0 0.0
  %1504 = vmatpush1.msra.mxu0 %v1315
  %1505 = vmatprep.subr.mxu0 0.0
  %1506 = vmatpush1.msra.mxu0 %v1345
  %1507 = vmatprep.subr.mxu0 0.0
  %1508 = vmatpush1.msra.mxu0 0.0
  %1509 = vmatprep.subr.mxu0 0.0
  %1510 = vmatpush1.msra.mxu0 0.0
  %1511 = vmatprep.subr.mxu0 0.0
  %1512 = vmatpush1.msra.mxu0 0.0
  %1513 = vmatprep.subr.mxu0 0.0
  %1514 = vmatpush1.msra.mxu0 0.0
  %1515 = vmatprep.subr.mxu0 0.0
  %1516 = vmatpush1.msra.mxu0 0.0
  %1517 = vmatprep.subr.mxu0 0.0
  %1518 = vmatpush1.msra.mxu0 0.0
  %1519 = vmatprep.subr.mxu0 0.0
  %1520 = vmatpush1.msra.mxu0 0.0
  %1521 = vmatprep.subr.mxu0 0.0
  %1522 = vmatpush1.msra.mxu0 0.0
  %1523 = vmatprep.subr.mxu0 0.0
  %1524 = vmatpush1.msra.mxu0 0.0
  %1525 = vmatprep.subr.mxu0 0.0
  %1526 = vmatpush1.msra.mxu0 0.0
  %1527 = vmatprep.subr.mxu0 0.0
  %1528 = vmatpush1.msra.mxu0 0.0
  %1529 = vmatprep.subr.mxu0 0.0
  %1530 = vmatpush1.msra.mxu0 0.0
  %1531 = vmatprep.subr.mxu0 0.0
  %1532 = vmatpush1.msra.mxu0 0.0
  %1533 = vmatprep.subr.mxu0 0.0
  %1534 = vmatpush1.msra.mxu0 0.0
  %1535 = vmatprep.subr.mxu0 0.0
  %1536 = vmatpush1.msra.mxu0 0.0
  %1537 = vmatprep.subr.mxu0 0.0
  %1538 = vmatpush1.msra.mxu0 0.0
  %1539 = vmatprep.subr.mxu0 0.0
  %1540 = vmatpush1.msra.mxu0 0.0
  %1541 = vmatprep.subr.mxu0 0.0
  %1542 = vmatpush1.msra.mxu0 0.0
  %1543 = vmatprep.subr.mxu0 0.0
  %1544 = vmatpush1.msra.mxu0 0.0
  %1545 = vmatprep.subr.mxu0 0.0
  %1546 = vmatpush1.msra.mxu0 0.0
  %1547 = vmatprep.subr.mxu0 0.0
  %1548 = vmatpush1.msra.mxu0 0.0
  %1549 = vmatprep.subr.mxu0 0.0
  %1550 = vmatpush1.msra.mxu0 0.0
  %1551 = vmatprep.subr.mxu0 0.0
  %1552 = vmatpush1.msra.mxu0 0.0
  %1553 = vmatprep.subr.mxu0 0.0
  %1554 = vmatpush1.msra.mxu0 0.0
  %1555 = vmatprep.subr.mxu0 0.0
  %1556 = vmatpush1.msra.mxu0 0.0
  %1557 = vmatprep.subr.mxu0 0.0
  %1558 = vmatpush1.msra.mxu0 0.0
  %1559 = vmatprep.subr.mxu0 0.0
  %1560 = vmatpush1.msra.mxu0 0.0
  %1561 = vmatprep.subr.mxu0 0.0
  %1562 = vmatpush1.msra.mxu0 0.0
  %1563 = vmatprep.subr.mxu0 0.0
  %1564 = vmatpush1.msra.mxu0 0.0
  %1565 = vmatprep.mubr.f32.mxu0 0.0
  %1566 = vmatmul.mubr.f32.gmra.mrb[0].mxu0 %v1327
  %v1567 = vpop.f32.mrb[0].mxu0
  %v1568 = vadd.f32 0.0, %v1567
  %v1569 = vpop.f32.mrb[0].mxu0
  %1570 = vmatprep.mubr.f32.mxu0 0.0
  %1571 = vmatmul.mubr.f32.gmra.mrb[0].mxu0 %v1329
  %v1572 = vpop.f32.mrb[0].mxu0
  %v1573 = vadd.f32 0.0, %v1572
  %v1574 = vpop.f32.mrb[0].mxu0
  %1575 = vdwg.mxu0
  %v1576 = vld [vmem:[%s3] sm:$0xff]
  %v1577 = vld [vmem:[%s3 + $0x8] sm:$0xff]
  %v1578 = vld [vmem:[%s3 + $0x10] sm:$0xff]
  %v1579 = vld [vmem:[%s3 + $0x18] sm:$0xff]
  %v1580 = vld [vmem:[%s3 + $0x20] sm:$0xff]
  %v1581 = vld [vmem:[%s3 + $0x28] sm:$0xff]
  %v1582 = vld [vmem:[%s3 + $0x30] sm:$0xff]
  %v1583 = vld [vmem:[%s3 + $0x38] sm:$0xff]
  %v1584 = vld [vmem:[%s3 + $0x40] sm:$0xff]
  %v1585 = vld [vmem:[%s3 + $0x48] sm:$0xff]
  %v1586 = vld [vmem:[%s3 + $0x50] sm:$0xff]
  %v1587 = vld [vmem:[%s3 + $0x58] sm:$0xff]
  %v1588 = vld [vmem:[%s3 + $0x60] sm:$0xff]
  %v1589 = vld [vmem:[%s3 + $0x68] sm:$0xff]
  %v1590 = vld [vmem:[%s3 + $0x70] sm:$0xff]
  %v1591 = vld [vmem:[%s3 + $0x78] sm:$0xff]
  %v1592 = vld [vmem:[%s3 + $0x80] sm:$0xff]
  %v1593 = vld [vmem:[%s3 + $0x88] sm:$0xff]
  %v1594 = vld [vmem:[%s3 + $0x90] sm:$0xff]
  %v1595 = vld [vmem:[%s3 + $0x98] sm:$0xff]
  %v1596 = vld [vmem:[%s3 + $0xa0] sm:$0xff]
  %v1597 = vld [vmem:[%s3 + $0xa8] sm:$0xff]
  %v1598 = vld [vmem:[%s3 + $0xb0] sm:$0xff]
  %v1599 = vld [vmem:[%s3 + $0xb8] sm:$0xff]
  %v1600 = vld [vmem:[%s3 + $0xc0] sm:$0xff]
  %v1601 = vld [vmem:[%s3 + $0xc8] sm:$0xff]
  %v1602 = vld [vmem:[%s3 + $0xd0] sm:$0xff]
  %v1603 = vld [vmem:[%s3 + $0xd8] sm:$0xff]
  %v1604 = vld [vmem:[%s3 + $0xe0] sm:$0xff]
  %v1605 = vld [vmem:[%s3 + $0xe8] sm:$0xff]
  %v1606 = vld [vmem:[%s3 + $0xf0] sm:$0xff]
  %v1607 = vld [vmem:[%s3 + $0xf8] sm:$0xff]
  %v1608 = vld [vmem:[%s3 + $0x100] sm:$0xff]
  %v1609 = vld [vmem:[%s3 + $0x108] sm:$0xff]
  %v1610 = vld [vmem:[%s3 + $0x110] sm:$0xff]
  %v1611 = vld [vmem:[%s3 + $0x118] sm:$0xff]
  %v1612 = vld [vmem:[%s3 + $0x120] sm:$0xff]
  %v1613 = vld [vmem:[%s3 + $0x128] sm:$0xff]
  %v1614 = vld [vmem:[%s3 + $0x130] sm:$0xff]
  %v1615 = vld [vmem:[%s3 + $0x138] sm:$0xff]
  %v1616 = vld [vmem:[%s3 + $0x140] sm:$0xff]
  %v1617 = vld [vmem:[%s3 + $0x148] sm:$0xff]
  %v1618 = vld [vmem:[%s3 + $0x150] sm:$0xff]
  %v1619 = vld [vmem:[%s3 + $0x158] sm:$0xff]
  %v1620 = vld [vmem:[%s3 + $0x160] sm:$0xff]
  %v1621 = vld [vmem:[%s3 + $0x168] sm:$0xff]
  %v1622 = vld [vmem:[%s3 + $0x170] sm:$0xff]
  %v1623 = vld [vmem:[%s3 + $0x178] sm:$0xff]
  %v1624 = vld [vmem:[%s3 + $0x180] sm:$0xff]
  %v1625 = vld [vmem:[%s3 + $0x188] sm:$0xff]
  %v1626 = vld [vmem:[%s3 + $0x190] sm:$0xff]
  %v1627 = vld [vmem:[%s3 + $0x198] sm:$0xff]
  %v1628 = vld [vmem:[%s3 + $0x1a0] sm:$0xff]
  %v1629 = vld [vmem:[%s3 + $0x1a8] sm:$0xff]
  %v1630 = vld [vmem:[%s3 + $0x1b0] sm:$0xff]
  %v1631 = vld [vmem:[%s3 + $0x1b8] sm:$0xff]
  %v1632 = vld [vmem:[%s3 + $0x1c0] sm:$0xff]
  %v1633 = vld [vmem:[%s3 + $0x1c8] sm:$0xff]
  %v1634 = vld [vmem:[%s3 + $0x1d0] sm:$0xff]
  %v1635 = vld [vmem:[%s3 + $0x1d8] sm:$0xff]
  %v1636 = vld [vmem:[%s3 + $0x1e0] sm:$0xff]
  %v1637 = vld [vmem:[%s3 + $0x1e8] sm:$0xff]
  %v1638 = vld [vmem:[%s3 + $0x1f0] sm:$0xff]
  %v1639 = vld [vmem:[%s3 + $0x1f8] sm:$0xff]
  %v1640 = vld [vmem:[%s3 + $0x200] sm:$0xff]
  %v1641 = vld [vmem:[%s3 + $0x208] sm:$0xff]
  %v1642 = vld [vmem:[%s3 + $0x210] sm:$0xff]
  %v1643 = vld [vmem:[%s3 + $0x218] sm:$0xff]
  %v1644 = vld [vmem:[%s3 + $0x220] sm:$0xff]
  %v1645 = vld [vmem:[%s3 + $0x228] sm:$0xff]
  %v1646 = vld [vmem:[%s3 + $0x230] sm:$0xff]
  %v1647 = vld [vmem:[%s3 + $0x238] sm:$0xff]
  %v1648 = vld [vmem:[%s3 + $0x240] sm:$0xff]
  %v1649 = vld [vmem:[%s3 + $0x248] sm:$0xff]
  %v1650 = vld [vmem:[%s3 + $0x250] sm:$0xff]
  %v1651 = vld [vmem:[%s3 + $0x258] sm:$0xff]
  %v1652 = vld [vmem:[%s3 + $0x260] sm:$0xff]
  %v1653 = vld [vmem:[%s3 + $0x268] sm:$0xff]
  %v1654 = vld [vmem:[%s3 + $0x270] sm:$0xff]
  %v1655 = vld [vmem:[%s3 + $0x278] sm:$0xff]
  %v1656 = vld [vmem:[%s3 + $0x280] sm:$0xff]
  %v1657 = vld [vmem:[%s3 + $0x288] sm:$0xff]
  %v1658 = vld [vmem:[%s3 + $0x290] sm:$0xff]
  %v1659 = vld [vmem:[%s3 + $0x298] sm:$0xff]
  %v1660 = vld [vmem:[%s3 + $0x2a0] sm:$0xff]
  %v1661 = vld [vmem:[%s3 + $0x2a8] sm:$0xff]
  %v1662 = vld [vmem:[%s3 + $0x2b0] sm:$0xff]
  %v1663 = vld [vmem:[%s3 + $0x2b8] sm:$0xff]
  %v1664 = vld [vmem:[%s3 + $0x2c0] sm:$0xff]
  %v1665 = vld [vmem:[%s3 + $0x2c8] sm:$0xff]
  %v1666 = vld [vmem:[%s3 + $0x2d0] sm:$0xff]
  %v1667 = vld [vmem:[%s3 + $0x2d8] sm:$0xff]
  %v1668 = vld [vmem:[%s3 + $0x2e0] sm:$0xff]
  %v1669 = vld [vmem:[%s3 + $0x2e8] sm:$0xff]
  %v1670 = vld [vmem:[%s3 + $0x2f0] sm:$0xff]
  %v1671 = vld [vmem:[%s3 + $0x2f8] sm:$0xff]
  %v1672 = vld [vmem:[%s3 + $0x300] sm:$0xff]
  %v1673 = vld [vmem:[%s3 + $0x308] sm:$0xff]
  %v1674 = vld [vmem:[%s3 + $0x310] sm:$0xff]
  %v1675 = vld [vmem:[%s3 + $0x318] sm:$0xff]
  %v1676 = vld [vmem:[%s3 + $0x320] sm:$0xff]
  %v1677 = vld [vmem:[%s3 + $0x328] sm:$0xff]
  %v1678 = vld [vmem:[%s3 + $0x330] sm:$0xff]
  %v1679 = vld [vmem:[%s3 + $0x338] sm:$0xff]
  %v1680 = vld [vmem:[%s3 + $0x340] sm:$0xff]
  %v1681 = vld [vmem:[%s3 + $0x348] sm:$0xff]
  %v1682 = vld [vmem:[%s3 + $0x350] sm:$0xff]
  %v1683 = vld [vmem:[%s3 + $0x358] sm:$0xff]
  %v1684 = vld [vmem:[%s3 + $0x360] sm:$0xff]
  %v1685 = vld [vmem:[%s3 + $0x368] sm:$0xff]
  %v1686 = vld [vmem:[%s3 + $0x370] sm:$0xff]
  %v1687 = vld [vmem:[%s3 + $0x378] sm:$0xff]
  %v1688 = vld [vmem:[%s3 + $0x380] sm:$0xff]
  %v1689 = vld [vmem:[%s3 + $0x388] sm:$0xff]
  %v1690 = vld [vmem:[%s3 + $0x390] sm:$0xff]
  %v1691 = vld [vmem:[%s3 + $0x398] sm:$0xff]
  %v1692 = vld [vmem:[%s3 + $0x3a0] sm:$0xff]
  %v1693 = vld [vmem:[%s3 + $0x3a8] sm:$0xff]
  %v1694 = vld [vmem:[%s3 + $0x3b0] sm:$0xff]
  %v1695 = vld [vmem:[%s3 + $0x3b8] sm:$0xff]
  %v1696 = vld [vmem:[%s3 + $0x3c0] sm:$0xff]
  %v1697 = vld [vmem:[%s3 + $0x3c8] sm:$0xff]
  %v1698 = vld [vmem:[%s3 + $0x3d0] sm:$0xff]
  %v1699 = vld [vmem:[%s3 + $0x3d8] sm:$0xff]
  %v1700 = vld [vmem:[%s3 + $0x3e0] sm:$0xff]
  %v1701 = vld [vmem:[%s3 + $0x3e8] sm:$0xff]
  %v1702 = vld [vmem:[%s3 + $0x3f0] sm:$0xff]
  %v1703 = vld [vmem:[%s3 + $0x3f8] sm:$0xff]
  %v1704 = vld [vmem:[%s3 + $0x400] sm:$0xff]
  %v1705 = vld [vmem:[%s3 + $0x408] sm:$0xff]
  %v1706 = vld [vmem:[%s3 + $0x410] sm:$0xff]
  %v1707 = vld [vmem:[%s3 + $0x418] sm:$0xff]
  %v1708 = vld [vmem:[%s3 + $0x420] sm:$0xff]
  %v1709 = vld [vmem:[%s3 + $0x428] sm:$0xff]
  %v1710 = vld [vmem:[%s3 + $0x430] sm:$0xff]
  %v1711 = vld [vmem:[%s3 + $0x438] sm:$0xff]
  %v1712 = vsel %vm1326, %v182, 0
  %v1714 = vsel %vm1326, %v183, 0
  %1716 = vmatprep.subr.mxu0 %v1299
  %1717 = vmatpush1.msra.mxu0 %v1297
  %1718 = vmatprep.subr.mxu0 %v1309
  %1719 = vmatpush1.msra.mxu0 %v1307
  %1720 = vmatprep.subr.mxu0 %v1336
  %1721 = vmatpush1.msra.mxu0 %v1333
  %1722 = vmatprep.subr.mxu0 0.0
  %1723 = vmatpush1.msra.mxu0 0.0
  %1724 = vmatprep.subr.mxu0 0.0
  %1725 = vmatpush1.msra.mxu0 0.0
  %1726 = vmatprep.subr.mxu0 0.0
  %1727 = vmatpush1.msra.mxu0 0.0
  %1728 = vmatprep.subr.mxu0 0.0
  %1729 = vmatpush1.msra.mxu0 0.0
  %1730 = vmatprep.subr.mxu0 0.0
  %1731 = vmatpush1.msra.mxu0 0.0
  %1732 = vmatprep.subr.mxu0 0.0
  %1733 = vmatpush1.msra.mxu0 0.0
  %1734 = vmatprep.subr.mxu0 0.0
  %1735 = vmatpush1.msra.mxu0 0.0
  %1736 = vmatprep.subr.mxu0 0.0
  %1737 = vmatpush1.msra.mxu0 0.0
  %1738 = vmatprep.subr.mxu0 0.0
  %1739 = vmatpush1.msra.mxu0 0.0
  %1740 = vmatprep.subr.mxu0 0.0
  %1741 = vmatpush1.msra.mxu0 0.0
  %1742 = vmatprep.subr.mxu0 0.0
  %1743 = vmatpush1.msra.mxu0 0.0
  %1744 = vmatprep.subr.mxu0 0.0
  %1745 = vmatpush1.msra.mxu0 0.0
  %1746 = vmatprep.subr.mxu0 0.0
  %1747 = vmatpush1.msra.mxu0 0.0
  %1748 = vmatprep.subr.mxu0 0.0
  %1749 = vmatpush1.msra.mxu0 0.0
  %1750 = vmatprep.subr.mxu0 0.0
  %1751 = vmatpush1.msra.mxu0 0.0
  %1752 = vmatprep.subr.mxu0 0.0
  %1753 = vmatpush1.msra.mxu0 0.0
  %1754 = vmatprep.subr.mxu0 0.0
  %1755 = vmatpush1.msra.mxu0 0.0
  %1756 = vmatprep.subr.mxu0 0.0
  %1757 = vmatpush1.msra.mxu0 0.0
  %1758 = vmatprep.subr.mxu0 0.0
  %1759 = vmatpush1.msra.mxu0 0.0
  %1760 = vmatprep.subr.mxu0 0.0
  %1761 = vmatpush1.msra.mxu0 0.0
  %1762 = vmatprep.subr.mxu0 0.0
  %1763 = vmatpush1.msra.mxu0 0.0
  %1764 = vmatprep.subr.mxu0 0.0
  %1765 = vmatpush1.msra.mxu0 0.0
  %1766 = vmatprep.subr.mxu0 0.0
  %1767 = vmatpush1.msra.mxu0 0.0
  %1768 = vmatprep.subr.mxu0 0.0
  %1769 = vmatpush1.msra.mxu0 0.0
  %1770 = vmatprep.subr.mxu0 0.0
  %1771 = vmatpush1.msra.mxu0 0.0
  %1772 = vmatprep.subr.mxu0 0.0
  %1773 = vmatpush1.msra.mxu0 0.0
  %1774 = vmatprep.subr.mxu0 0.0
  %1775 = vmatpush1.msra.mxu0 0.0
  %1776 = vmatprep.subr.mxu0 0.0
  %1777 = vmatpush1.msra.mxu0 0.0
  %1778 = vmatprep.subr.mxu0 0.0
  %1779 = vmatpush1.msra.mxu0 0.0
  %1780 = vmatprep.mubr.f32.mxu0 0.0
  %1781 = vmatmul.mubr.f32.gmra.mrb[0].mxu0 %v1712
  %v1782 = vpop.f32.mrb[0].mxu0
  %v1783 = vadd.f32 0.0, %v1782
  %v1784 = vpop.f32.mrb[0].mxu0
  %v1785 = vadd.f32 0.0, %v1784
  %1786 = vmatprep.mubr.f32.mxu0 0.0
  %1787 = vmatmul.mubr.f32.gmra.mrb[0].mxu0 %v1714
  %v1788 = vpop.f32.mrb[0].mxu0
  %v1789 = vadd.f32 0.0, %v1788
  %v1790 = vpop.f32.mrb[0].mxu0
  %v1791 = vadd.f32 0.0, %v1790
  %1792 = vdwg.mxu0
  %1793 = vmatprep.subr.mxu0 %v1303
  %1794 = vmatpush1.msra.mxu0 %v1301
  %1795 = vmatprep.subr.mxu0 %v1313
  %1796 = vmatpush1.msra.mxu0 %v1311
  %1797 = vmatprep.subr.mxu0 %v1342
  %1798 = vmatpush1.msra.mxu0 %v1339
  %1799 = vmatprep.subr.mxu0 0.0
  %1800 = vmatpush1.msra.mxu0 0.0
  %1801 = vmatprep.subr.mxu0 0.0
  %1802 = vmatpush1.msra.mxu0 0.0
  %1803 = vmatprep.subr.mxu0 0.0
  %1804 = vmatpush1.msra.mxu0 0.0
  %1805 = vmatprep.subr.mxu0 0.0
  %1806 = vmatpush1.msra.mxu0 0.0
  %1807 = vmatprep.subr.mxu0 0.0
  %1808 = vmatpush1.msra.mxu0 0.0
  %1809 = vmatprep.subr.mxu0 0.0
  %1810 = vmatpush1.msra.mxu0 0.0
  %1811 = vmatprep.subr.mxu0 0.0
  %1812 = vmatpush1.msra.mxu0 0.0
  %1813 = vmatprep.subr.mxu0 0.0
  %1814 = vmatpush1.msra.mxu0 0.0
  %1815 = vmatprep.subr.mxu0 0.0
  %1816 = vmatpush1.msra.mxu0 0.0
  %1817 = vmatprep.subr.mxu0 0.0
  %1818 = vmatpush1.msra.mxu0 0.0
  %1819 = vmatprep.subr.mxu0 0.0
  %1820 = vmatpush1.msra.mxu0 0.0
  %1821 = vmatprep.subr.mxu0 0.0
  %1822 = vmatpush1.msra.mxu0 0.0
  %1823 = vmatprep.subr.mxu0 0.0
  %1824 = vmatpush1.msra.mxu0 0.0
  %1825 = vmatprep.subr.mxu0 0.0
  %1826 = vmatpush1.msra.mxu0 0.0
  %1827 = vmatprep.subr.mxu0 0.0
  %1828 = vmatpush1.msra.mxu0 0.0
  %1829 = vmatprep.subr.mxu0 0.0
  %1830 = vmatpush1.msra.mxu0 0.0
  %1831 = vmatprep.subr.mxu0 0.0
  %1832 = vmatpush1.msra.mxu0 0.0
  %1833 = vmatprep.subr.mxu0 0.0
  %1834 = vmatpush1.msra.mxu0 0.0
  %1835 = vmatprep.subr.mxu0 0.0
  %1836 = vmatpush1.msra.mxu0 0.0
  %1837 = vmatprep.subr.mxu0 0.0
  %1838 = vmatpush1.msra.mxu0 0.0
  %1839 = vmatprep.subr.mxu0 0.0
  %1840 = vmatpush1.msra.mxu0 0.0
  %1841 = vmatprep.subr.mxu0 0.0
  %1842 = vmatpush1.msra.mxu0 0.0
  %1843 = vmatprep.subr.mxu0 0.0
  %1844 = vmatpush1.msra.mxu0 0.0
  %1845 = vmatprep.subr.mxu0 0.0
  %1846 = vmatpush1.msra.mxu0 0.0
  %1847 = vmatprep.subr.mxu0 0.0
  %1848 = vmatpush1.msra.mxu0 0.0
  %1849 = vmatprep.subr.mxu0 0.0
  %1850 = vmatpush1.msra.mxu0 0.0
  %1851 = vmatprep.subr.mxu0 0.0
  %1852 = vmatpush1.msra.mxu0 0.0
  %1853 = vmatprep.subr.mxu0 0.0
  %1854 = vmatpush1.msra.mxu0 0.0
  %1855 = vmatprep.subr.mxu0 0.0
  %1856 = vmatpush1.msra.mxu0 0.0
  %1857 = vmatprep.mubr.f32.mxu0 0.0
  %1858 = vmatmul.mubr.f32.gmra.mrb[0].mxu0 %v1712
  %v1859 = vpop.f32.mrb[0].mxu0
  %v1860 = vadd.f32 0.0, %v1859
  %v1861 = vpop.f32.mrb[0].mxu0
  %v1862 = vadd.f32 0.0, %v1861
  %1863 = vmatprep.mubr.f32.mxu0 0.0
  %1864 = vmatmul.mubr.f32.gmra.mrb[0].mxu0 %v1714
  %v1865 = vpop.f32.mrb[0].mxu0
  %v1866 = vadd.f32 0.0, %v1865
  %v1867 = vpop.f32.mrb[0].mxu0
  %v1868 = vadd.f32 0.0, %v1867
  %1869 = vdwg.mxu0
  %1870 = vmatprep.subr.mxu0 0.0
  %1871 = vmatpush1.msra.mxu0 %v1305
  %1872 = vmatprep.subr.mxu0 0.0
  %1873 = vmatpush1.msra.mxu0 %v1315
  %1874 = vmatprep.subr.mxu0 0.0
  %1875 = vmatpush1.msra.mxu0 %v1345
  %1876 = vmatprep.subr.mxu0 0.0
  %1877 = vmatpush1.msra.mxu0 0.0
  %1878 = vmatprep.subr.mxu0 0.0
  %1879 = vmatpush1.msra.mxu0 0.0
  %1880 = vmatprep.subr.mxu0 0.0
  %1881 = vmatpush1.msra.mxu0 0.0
  %1882 = vmatprep.subr.mxu0 0.0
  %1883 = vmatpush1.msra.mxu0 0.0
  %1884 = vmatprep.subr.mxu0 0.0
  %1885 = vmatpush1.msra.mxu0 0.0
  %1886 = vmatprep.subr.mxu0 0.0
  %1887 = vmatpush1.msra.mxu0 0.0
  %1888 = vmatprep.subr.mxu0 0.0
  %1889 = vmatpush1.msra.mxu0 0.0
  %1890 = vmatprep.subr.mxu0 0.0
  %1891 = vmatpush1.msra.mxu0 0.0
  %1892 = vmatprep.subr.mxu0 0.0
  %1893 = vmatpush1.msra.mxu0 0.0
  %1894 = vmatprep.subr.mxu0 0.0
  %1895 = vmatpush1.msra.mxu0 0.0
  %1896 = vmatprep.subr.mxu0 0.0
  %1897 = vmatpush1.msra.mxu0 0.0
  %1898 = vmatprep.subr.mxu0 0.0
  %1899 = vmatpush1.msra.mxu0 0.0
  %1900 = vmatprep.subr.mxu0 0.0
  %1901 = vmatpush1.msra.mxu0 0.0
  %1902 = vmatprep.subr.mxu0 0.0
  %1903 = vmatpush1.msra.mxu0 0.0
  %1904 = vmatprep.subr.mxu0 0.0
  %1905 = vmatpush1.msra.mxu0 0.0
  %1906 = vmatprep.subr.mxu0 0.0
  %1907 = vmatpush1.msra.mxu0 0.0
  %1908 = vmatprep.subr.mxu0 0.0
  %1909 = vmatpush1.msra.mxu0 0.0
  %1910 = vmatprep.subr.mxu0 0.0
  %1911 = vmatpush1.msra.mxu0 0.0
  %1912 = vmatprep.subr.mxu0 0.0
  %1913 = vmatpush1.msra.mxu0 0.0
  %1914 = vmatprep.subr.mxu0 0.0
  %1915 = vmatpush1.msra.mxu0 0.0
  %1916 = vmatprep.subr.mxu0 0.0
  %1917 = vmatpush1.msra.mxu0 0.0
  %1918 = vmatprep.subr.mxu0 0.0
  %1919 = vmatpush1.msra.mxu0 0.0
  %1920 = vmatprep.subr.mxu0 0.0
  %1921 = vmatpush1.msra.mxu0 0.0
  %1922 = vmatprep.subr.mxu0 0.0
  %1923 = vmatpush1.msra.mxu0 0.0
  %1924 = vmatprep.subr.mxu0 0.0
  %1925 = vmatpush1.msra.mxu0 0.0
  %1926 = vmatprep.subr.mxu0 0.0
  %1927 = vmatpush1.msra.mxu0 0.0
  %1928 = vmatprep.subr.mxu0 0.0
  %1929 = vmatpush1.msra.mxu0 0.0
  %1930 = vmatprep.subr.mxu0 0.0
  %1931 = vmatpush1.msra.mxu0 0.0
  %1932 = vmatprep.subr.mxu0 0.0
  %1933 = vmatpush1.msra.mxu0 0.0
  %1934 = vmatprep.mubr.f32.mxu0 0.0
  %1935 = vmatmul.mubr.f32.gmra.mrb[0].mxu0 %v1712
  %v1936 = vpop.f32.mrb[0].mxu0
  %v1937 = vadd.f32 0.0, %v1936
  %v1938 = vpop.f32.mrb[0].mxu0
  %1939 = vmatprep.mubr.f32.mxu0 0.0
  %1940 = vmatmul.mubr.f32.gmra.mrb[0].mxu0 %v1714
  %v1941 = vpop.f32.mrb[0].mxu0
  %v1942 = vadd.f32 0.0, %v1941
  %v1943 = vpop.f32.mrb[0].mxu0
  %1944 = vdwg.mxu0
  %s1945 = scalar_lea.vmem %s3, 1088
  %v1946 = vld [vmem:[%s1945] sm:$0xff]
  %v1947 = vld [vmem:[%s1945 + $0x8] sm:$0xff]
  %v1948 = vld [vmem:[%s1945 + $0x10] sm:$0xff]
  %v1949 = vld [vmem:[%s1945 + $0x18] sm:$0xff]
  %v1950 = vld [vmem:[%s1945 + $0x20] sm:$0xff]
  %v1951 = vld [vmem:[%s1945 + $0x28] sm:$0xff]
  %v1952 = vld [vmem:[%s1945 + $0x30] sm:$0xff]
  %v1953 = vld [vmem:[%s1945 + $0x38] sm:$0xff]
  %v1954 = vld [vmem:[%s1945 + $0x40] sm:$0xff]
  %v1955 = vld [vmem:[%s1945 + $0x48] sm:$0xff]
  %v1956 = vld [vmem:[%s1945 + $0x50] sm:$0xff]
  %v1957 = vld [vmem:[%s1945 + $0x58] sm:$0xff]
  %v1958 = vld [vmem:[%s1945 + $0x60] sm:$0xff]
  %v1959 = vld [vmem:[%s1945 + $0x68] sm:$0xff]
  %v1960 = vld [vmem:[%s1945 + $0x70] sm:$0xff]
  %v1961 = vld [vmem:[%s1945 + $0x78] sm:$0xff]
  %v1962 = vld [vmem:[%s1945 + $0x80] sm:$0xff]
  %v1963 = vld [vmem:[%s1945 + $0x88] sm:$0xff]
  %v1964 = vld [vmem:[%s1945 + $0x90] sm:$0xff]
  %v1965 = vld [vmem:[%s1945 + $0x98] sm:$0xff]
  %v1966 = vld [vmem:[%s1945 + $0xa0] sm:$0xff]
  %v1967 = vld [vmem:[%s1945 + $0xa8] sm:$0xff]
  %v1968 = vld [vmem:[%s1945 + $0xb0] sm:$0xff]
  %v1969 = vld [vmem:[%s1945 + $0xb8] sm:$0xff]
  %v1970 = vld [vmem:[%s1945 + $0xc0] sm:$0xff]
  %v1971 = vld [vmem:[%s1945 + $0xc8] sm:$0xff]
  %v1972 = vld [vmem:[%s1945 + $0xd0] sm:$0xff]
  %v1973 = vld [vmem:[%s1945 + $0xd8] sm:$0xff]
  %v1974 = vld [vmem:[%s1945 + $0xe0] sm:$0xff]
  %v1975 = vld [vmem:[%s1945 + $0xe8] sm:$0xff]
  %v1976 = vld [vmem:[%s1945 + $0xf0] sm:$0xff]
  %v1977 = vld [vmem:[%s1945 + $0xf8] sm:$0xff]
  %v1978 = vld [vmem:[%s1945 + $0x100] sm:$0xff]
  %v1979 = vld [vmem:[%s1945 + $0x108] sm:$0xff]
  %v1980 = vld [vmem:[%s1945 + $0x110] sm:$0xff]
  %v1981 = vld [vmem:[%s1945 + $0x118] sm:$0xff]
  %v1982 = vld [vmem:[%s1945 + $0x120] sm:$0xff]
  %v1983 = vld [vmem:[%s1945 + $0x128] sm:$0xff]
  %v1984 = vld [vmem:[%s1945 + $0x130] sm:$0xff]
  %v1985 = vld [vmem:[%s1945 + $0x138] sm:$0xff]
  %v1986 = vld [vmem:[%s1945 + $0x140] sm:$0xff]
  %v1987 = vld [vmem:[%s1945 + $0x148] sm:$0xff]
  %v1988 = vld [vmem:[%s1945 + $0x150] sm:$0xff]
  %v1989 = vld [vmem:[%s1945 + $0x158] sm:$0xff]
  %v1990 = vld [vmem:[%s1945 + $0x160] sm:$0xff]
  %v1991 = vld [vmem:[%s1945 + $0x168] sm:$0xff]
  %v1992 = vld [vmem:[%s1945 + $0x170] sm:$0xff]
  %v1993 = vld [vmem:[%s1945 + $0x178] sm:$0xff]
  %v1994 = vld [vmem:[%s1945 + $0x180] sm:$0xff]
  %v1995 = vld [vmem:[%s1945 + $0x188] sm:$0xff]
  %v1996 = vld [vmem:[%s1945 + $0x190] sm:$0xff]
  %v1997 = vld [vmem:[%s1945 + $0x198] sm:$0xff]
  %v1998 = vld [vmem:[%s1945 + $0x1a0] sm:$0xff]
  %v1999 = vld [vmem:[%s1945 + $0x1a8] sm:$0xff]
  %v2000 = vld [vmem:[%s1945 + $0x1b0] sm:$0xff]
  %v2001 = vld [vmem:[%s1945 + $0x1b8] sm:$0xff]
  %v2002 = vld [vmem:[%s1945 + $0x1c0] sm:$0xff]
  %v2003 = vld [vmem:[%s1945 + $0x1c8] sm:$0xff]
  %v2004 = vld [vmem:[%s1945 + $0x1d0] sm:$0xff]
  %v2005 = vld [vmem:[%s1945 + $0x1d8] sm:$0xff]
  %v2006 = vld [vmem:[%s1945 + $0x1e0] sm:$0xff]
  %v2007 = vld [vmem:[%s1945 + $0x1e8] sm:$0xff]
  %v2008 = vld [vmem:[%s1945 + $0x1f0] sm:$0xff]
  %v2009 = vld [vmem:[%s1945 + $0x1f8] sm:$0xff]
  %v2010 = vld [vmem:[%s1945 + $0x200] sm:$0xff]
  %v2011 = vld [vmem:[%s1945 + $0x208] sm:$0xff]
  %v2012 = vld [vmem:[%s1945 + $0x210] sm:$0xff]
  %v2013 = vld [vmem:[%s1945 + $0x218] sm:$0xff]
  %v2014 = vld [vmem:[%s1945 + $0x220] sm:$0xff]
  %v2015 = vld [vmem:[%s1945 + $0x228] sm:$0xff]
  %v2016 = vld [vmem:[%s1945 + $0x230] sm:$0xff]
  %v2017 = vld [vmem:[%s1945 + $0x238] sm:$0xff]
  %v2018 = vld [vmem:[%s1945 + $0x240] sm:$0xff]
  %v2019 = vld [vmem:[%s1945 + $0x248] sm:$0xff]
  %v2020 = vld [vmem:[%s1945 + $0x250] sm:$0xff]
  %v2021 = vld [vmem:[%s1945 + $0x258] sm:$0xff]
  %v2022 = vld [vmem:[%s1945 + $0x260] sm:$0xff]
  %v2023 = vld [vmem:[%s1945 + $0x268] sm:$0xff]
  %v2024 = vld [vmem:[%s1945 + $0x270] sm:$0xff]
  %v2025 = vld [vmem:[%s1945 + $0x278] sm:$0xff]
  %v2026 = vld [vmem:[%s1945 + $0x280] sm:$0xff]
  %v2027 = vld [vmem:[%s1945 + $0x288] sm:$0xff]
  %v2028 = vld [vmem:[%s1945 + $0x290] sm:$0xff]
  %v2029 = vld [vmem:[%s1945 + $0x298] sm:$0xff]
  %v2030 = vld [vmem:[%s1945 + $0x2a0] sm:$0xff]
  %v2031 = vld [vmem:[%s1945 + $0x2a8] sm:$0xff]
  %v2032 = vld [vmem:[%s1945 + $0x2b0] sm:$0xff]
  %v2033 = vld [vmem:[%s1945 + $0x2b8] sm:$0xff]
  %v2034 = vld [vmem:[%s1945 + $0x2c0] sm:$0xff]
  %v2035 = vld [vmem:[%s1945 + $0x2c8] sm:$0xff]
  %v2036 = vld [vmem:[%s1945 + $0x2d0] sm:$0xff]
  %v2037 = vld [vmem:[%s1945 + $0x2d8] sm:$0xff]
  %v2038 = vld [vmem:[%s1945 + $0x2e0] sm:$0xff]
  %v2039 = vld [vmem:[%s1945 + $0x2e8] sm:$0xff]
  %v2040 = vld [vmem:[%s1945 + $0x2f0] sm:$0xff]
  %v2041 = vld [vmem:[%s1945 + $0x2f8] sm:$0xff]
  %v2042 = vld [vmem:[%s1945 + $0x300] sm:$0xff]
  %v2043 = vld [vmem:[%s1945 + $0x308] sm:$0xff]
  %v2044 = vld [vmem:[%s1945 + $0x310] sm:$0xff]
  %v2045 = vld [vmem:[%s1945 + $0x318] sm:$0xff]
  %v2046 = vld [vmem:[%s1945 + $0x320] sm:$0xff]
  %v2047 = vld [vmem:[%s1945 + $0x328] sm:$0xff]
  %v2048 = vld [vmem:[%s1945 + $0x330] sm:$0xff]
  %v2049 = vld [vmem:[%s1945 + $0x338] sm:$0xff]
  %v2050 = vld [vmem:[%s1945 + $0x340] sm:$0xff]
  %v2051 = vld [vmem:[%s1945 + $0x348] sm:$0xff]
  %v2052 = vld [vmem:[%s1945 + $0x350] sm:$0xff]
  %v2053 = vld [vmem:[%s1945 + $0x358] sm:$0xff]
  %v2054 = vld [vmem:[%s1945 + $0x360] sm:$0xff]
  %v2055 = vld [vmem:[%s1945 + $0x368] sm:$0xff]
  %v2056 = vld [vmem:[%s1945 + $0x370] sm:$0xff]
  %v2057 = vld [vmem:[%s1945 + $0x378] sm:$0xff]
  %v2058 = vld [vmem:[%s1945 + $0x380] sm:$0xff]
  %v2059 = vld [vmem:[%s1945 + $0x388] sm:$0xff]
  %v2060 = vld [vmem:[%s1945 + $0x390] sm:$0xff]
  %v2061 = vld [vmem:[%s1945 + $0x398] sm:$0xff]
  %v2062 = vld [vmem:[%s1945 + $0x3a0] sm:$0xff]
  %v2063 = vld [vmem:[%s1945 + $0x3a8] sm:$0xff]
  %v2064 = vld [vmem:[%s1945 + $0x3b0] sm:$0xff]
  %v2065 = vld [vmem:[%s1945 + $0x3b8] sm:$0xff]
  %v2066 = vld [vmem:[%s1945 + $0x3c0] sm:$0xff]
  %v2067 = vld [vmem:[%s1945 + $0x3c8] sm:$0xff]
  %v2068 = vld [vmem:[%s1945 + $0x3d0] sm:$0xff]
  %v2069 = vld [vmem:[%s1945 + $0x3d8] sm:$0xff]
  %v2070 = vld [vmem:[%s1945 + $0x3e0] sm:$0xff]
  %v2071 = vld [vmem:[%s1945 + $0x3e8] sm:$0xff]
  %v2072 = vld [vmem:[%s1945 + $0x3f0] sm:$0xff]
  %v2073 = vld [vmem:[%s1945 + $0x3f8] sm:$0xff]
  %v2074 = vld [vmem:[%s1945 + $0x400] sm:$0xff]
  %v2075 = vld [vmem:[%s1945 + $0x408] sm:$0xff]
  %v2076 = vld [vmem:[%s1945 + $0x410] sm:$0xff]
  %v2077 = vld [vmem:[%s1945 + $0x418] sm:$0xff]
  %v2078 = vld [vmem:[%s1945 + $0x420] sm:$0xff]
  %v2079 = vld [vmem:[%s1945 + $0x428] sm:$0xff]
  %v2080 = vld [vmem:[%s1945 + $0x430] sm:$0xff]
  %v2081 = vld [vmem:[%s1945 + $0x438] sm:$0xff]
  %v2083 = vsel %vm63, %v1937, 0
  %v2086 = vsel %vm63, %v1942, 0
  %2088 = vmatprep.subr.mxu0 %v1947
  %2089 = vmatpush1.msra.mxu0 %v1946
  %2090 = vmatprep.subr.mxu0 %v1949
  %2091 = vmatpush1.msra.mxu0 %v1948
  %2092 = vmatprep.subr.mxu0 %v1951
  %2093 = vmatpush1.msra.mxu0 %v1950
  %2094 = vmatprep.subr.mxu0 %v1953
  %2095 = vmatpush1.msra.mxu0 %v1952
  %2096 = vmatprep.subr.mxu0 %v1955
  %2097 = vmatpush1.msra.mxu0 %v1954
  %2098 = vmatprep.subr.mxu0 %v1957
  %2099 = vmatpush1.msra.mxu0 %v1956
  %2100 = vmatprep.subr.mxu0 %v1959
  %2101 = vmatpush1.msra.mxu0 %v1958
  %2102 = vmatprep.subr.mxu0 %v1961
  %2103 = vmatpush1.msra.mxu0 %v1960
  %2104 = vmatprep.subr.mxu0 %v1963
  %2105 = vmatpush1.msra.mxu0 %v1962
  %2106 = vmatprep.subr.mxu0 %v1965
  %2107 = vmatpush1.msra.mxu0 %v1964
  %2108 = vmatprep.subr.mxu0 %v1967
  %2109 = vmatpush1.msra.mxu0 %v1966
  %2110 = vmatprep.subr.mxu0 %v1969
  %2111 = vmatpush1.msra.mxu0 %v1968
  %2112 = vmatprep.subr.mxu0 %v1971
  %2113 = vmatpush1.msra.mxu0 %v1970
  %2114 = vmatprep.subr.mxu0 %v1973
  %2115 = vmatpush1.msra.mxu0 %v1972
  %2116 = vmatprep.subr.mxu0 %v1975
  %2117 = vmatpush1.msra.mxu0 %v1974
  %2118 = vmatprep.subr.mxu0 %v1977
  %2119 = vmatpush1.msra.mxu0 %v1976
  %2120 = vmatprep.subr.mxu0 %v1979
  %2121 = vmatpush1.msra.mxu0 %v1978
  %2122 = vmatprep.subr.mxu0 %v1981
  %2123 = vmatpush1.msra.mxu0 %v1980
  %2124 = vmatprep.subr.mxu0 %v1983
  %2125 = vmatpush1.msra.mxu0 %v1982
  %2126 = vmatprep.subr.mxu0 %v1985
  %2127 = vmatpush1.msra.mxu0 %v1984
  %2128 = vmatprep.subr.mxu0 %v1987
  %2129 = vmatpush1.msra.mxu0 %v1986
  %2130 = vmatprep.subr.mxu0 %v1989
  %2131 = vmatpush1.msra.mxu0 %v1988
  %2132 = vmatprep.subr.mxu0 %v1991
  %2133 = vmatpush1.msra.mxu0 %v1990
  %2134 = vmatprep.subr.mxu0 %v1993
  %2135 = vmatpush1.msra.mxu0 %v1992
  %2136 = vmatprep.subr.mxu0 %v1995
  %2137 = vmatpush1.msra.mxu0 %v1994
  %2138 = vmatprep.subr.mxu0 %v1997
  %2139 = vmatpush1.msra.mxu0 %v1996
  %2140 = vmatprep.subr.mxu0 %v1999
  %2141 = vmatpush1.msra.mxu0 %v1998
  %2142 = vmatprep.subr.mxu0 %v2001
  %2143 = vmatpush1.msra.mxu0 %v2000
  %2144 = vmatprep.subr.mxu0 %v2003
  %2145 = vmatpush1.msra.mxu0 %v2002
  %2146 = vmatprep.subr.mxu0 %v2005
  %2147 = vmatpush1.msra.mxu0 %v2004
  %2148 = vmatprep.subr.mxu0 %v2007
  %2149 = vmatpush1.msra.mxu0 %v2006
  %2150 = vmatprep.subr.mxu0 %v2009
  %2151 = vmatpush1.msra.mxu0 %v2008
  %2152 = vmatprep.mubr.f32.mxu0 %v1785
  %2153 = vmatmul.mubr.f32.gmra.mrb[0].mxu0 %v1783
  %v2154 = vpop.f32.mrb[0].mxu0
  %v2155 = vadd.f32 0.0, %v2154
  %v2156 = vpop.f32.mrb[0].mxu0
  %v2157 = vadd.f32 0.0, %v2156
  %2158 = vmatprep.mubr.f32.mxu0 %v1791
  %2159 = vmatmul.mubr.f32.gmra.mrb[0].mxu0 %v1789
  %v2160 = vpop.f32.mrb[0].mxu0
  %v2161 = vadd.f32 0.0, %v2160
  %v2162 = vpop.f32.mrb[0].mxu0
  %v2163 = vadd.f32 0.0, %v2162
  %2164 = vdwg.mxu0
  %2165 = vmatprep.subr.mxu0 %v2011
  %2166 = vmatpush1.msra.mxu0 %v2010
  %2167 = vmatprep.subr.mxu0 %v2013
  %2168 = vmatpush1.msra.mxu0 %v2012
  %2169 = vmatprep.subr.mxu0 %v2015
  %2170 = vmatpush1.msra.mxu0 %v2014
  %2171 = vmatprep.subr.mxu0 %v2017
  %2172 = vmatpush1.msra.mxu0 %v2016
  %2173 = vmatprep.subr.mxu0 %v2019
  %2174 = vmatpush1.msra.mxu0 %v2018
  %2175 = vmatprep.subr.mxu0 %v2021
  %2176 = vmatpush1.msra.mxu0 %v2020
  %2177 = vmatprep.subr.mxu0 %v2023
  %2178 = vmatpush1.msra.mxu0 %v2022
  %2179 = vmatprep.subr.mxu0 %v2025
  %2180 = vmatpush1.msra.mxu0 %v2024
  %2181 = vmatprep.subr.mxu0 %v2027
  %2182 = vmatpush1.msra.mxu0 %v2026
  %2183 = vmatprep.subr.mxu0 %v2029
  %2184 = vmatpush1.msra.mxu0 %v2028
  %2185 = vmatprep.subr.mxu0 %v2031
  %2186 = vmatpush1.msra.mxu0 %v2030
  %2187 = vmatprep.subr.mxu0 %v2033
  %2188 = vmatpush1.msra.mxu0 %v2032
  %2189 = vmatprep.subr.mxu0 %v2035
  %2190 = vmatpush1.msra.mxu0 %v2034
  %2191 = vmatprep.subr.mxu0 %v2037
  %2192 = vmatpush1.msra.mxu0 %v2036
  %2193 = vmatprep.subr.mxu0 %v2039
  %2194 = vmatpush1.msra.mxu0 %v2038
  %2195 = vmatprep.subr.mxu0 %v2041
  %2196 = vmatpush1.msra.mxu0 %v2040
  %2197 = vmatprep.subr.mxu0 %v2043
  %2198 = vmatpush1.msra.mxu0 %v2042
  %2199 = vmatprep.subr.mxu0 %v2045
  %2200 = vmatpush1.msra.mxu0 %v2044
  %2201 = vmatprep.subr.mxu0 %v2047
  %2202 = vmatpush1.msra.mxu0 %v2046
  %2203 = vmatprep.subr.mxu0 %v2049
  %2204 = vmatpush1.msra.mxu0 %v2048
  %2205 = vmatprep.subr.mxu0 %v2051
  %2206 = vmatpush1.msra.mxu0 %v2050
  %2207 = vmatprep.subr.mxu0 %v2053
  %2208 = vmatpush1.msra.mxu0 %v2052
  %2209 = vmatprep.subr.mxu0 %v2055
  %2210 = vmatpush1.msra.mxu0 %v2054
  %2211 = vmatprep.subr.mxu0 %v2057
  %2212 = vmatpush1.msra.mxu0 %v2056
  %2213 = vmatprep.subr.mxu0 %v2059
  %2214 = vmatpush1.msra.mxu0 %v2058
  %2215 = vmatprep.subr.mxu0 %v2061
  %2216 = vmatpush1.msra.mxu0 %v2060
  %2217 = vmatprep.subr.mxu0 %v2063
  %2218 = vmatpush1.msra.mxu0 %v2062
  %2219 = vmatprep.subr.mxu0 %v2065
  %2220 = vmatpush1.msra.mxu0 %v2064
  %2221 = vmatprep.subr.mxu0 %v2067
  %2222 = vmatpush1.msra.mxu0 %v2066
  %2223 = vmatprep.subr.mxu0 %v2069
  %2224 = vmatpush1.msra.mxu0 %v2068
  %2225 = vmatprep.subr.mxu0 %v2071
  %2226 = vmatpush1.msra.mxu0 %v2070
  %2227 = vmatprep.subr.mxu0 %v2073
  %2228 = vmatpush1.msra.mxu0 %v2072
  %2229 = vmatprep.mubr.f32.mxu0 %v1862
  %2230 = vmatmul.mubr.f32.gmra.mrb[0].mxu0 %v1860
  %v2231 = vpop.f32.mrb[0].mxu0
  %v2232 = vadd.f32 %v2155, %v2231
  %v2233 = vpop.f32.mrb[0].mxu0
  %v2234 = vadd.f32 %v2157, %v2233
  %2235 = vmatprep.mubr.f32.mxu0 %v1868
  %2236 = vmatmul.mubr.f32.gmra.mrb[0].mxu0 %v1866
  %v2237 = vpop.f32.mrb[0].mxu0
  %v2238 = vadd.f32 %v2161, %v2237
  %v2239 = vpop.f32.mrb[0].mxu0
  %v2240 = vadd.f32 %v2163, %v2239
  %2241 = vdwg.mxu0
  %2242 = vmatprep.subr.mxu0 %v2075
  %2243 = vmatpush1.msra.mxu0 %v2074
  %2244 = vmatprep.subr.mxu0 %v2077
  %2245 = vmatpush1.msra.mxu0 %v2076
  %2246 = vmatprep.subr.mxu0 %v2079
  %2247 = vmatpush1.msra.mxu0 %v2078
  %2248 = vmatprep.subr.mxu0 %v2081
  %2249 = vmatpush1.msra.mxu0 %v2080
  %2250 = vmatprep.subr.mxu0 0.0
  %2251 = vmatpush1.msra.mxu0 0.0
  %2252 = vmatprep.subr.mxu0 0.0
  %2253 = vmatpush1.msra.mxu0 0.0
  %2254 = vmatprep.subr.mxu0 0.0
  %2255 = vmatpush1.msra.mxu0 0.0
  %2256 = vmatprep.subr.mxu0 0.0
  %2257 = vmatpush1.msra.mxu0 0.0
  %2258 = vmatprep.subr.mxu0 0.0
  %2259 = vmatpush1.msra.mxu0 0.0
  %2260 = vmatprep.subr.mxu0 0.0
  %2261 = vmatpush1.msra.mxu0 0.0
  %2262 = vmatprep.subr.mxu0 0.0
  %2263 = vmatpush1.msra.mxu0 0.0
  %2264 = vmatprep.subr.mxu0 0.0
  %2265 = vmatpush1.msra.mxu0 0.0
  %2266 = vmatprep.subr.mxu0 0.0
  %2267 = vmatpush1.msra.mxu0 0.0
  %2268 = vmatprep.subr.mxu0 0.0
  %2269 = vmatpush1.msra.mxu0 0.0
  %2270 = vmatprep.subr.mxu0 0.0
  %2271 = vmatpush1.msra.mxu0 0.0
  %2272 = vmatprep.subr.mxu0 0.0
  %2273 = vmatpush1.msra.mxu0 0.0
  %2274 = vmatprep.subr.mxu0 0.0
  %2275 = vmatpush1.msra.mxu0 0.0
  %2276 = vmatprep.subr.mxu0 0.0
  %2277 = vmatpush1.msra.mxu0 0.0
  %2278 = vmatprep.subr.mxu0 0.0
  %2279 = vmatpush1.msra.mxu0 0.0
  %2280 = vmatprep.subr.mxu0 0.0
  %2281 = vmatpush1.msra.mxu0 0.0
  %2282 = vmatprep.subr.mxu0 0.0
  %2283 = vmatpush1.msra.mxu0 0.0
  %2284 = vmatprep.subr.mxu0 0.0
  %2285 = vmatpush1.msra.mxu0 0.0
  %2286 = vmatprep.subr.mxu0 0.0
  %2287 = vmatpush1.msra.mxu0 0.0
  %2288 = vmatprep.subr.mxu0 0.0
  %2289 = vmatpush1.msra.mxu0 0.0
  %2290 = vmatprep.subr.mxu0 0.0
  %2291 = vmatpush1.msra.mxu0 0.0
  %2292 = vmatprep.subr.mxu0 0.0
  %2293 = vmatpush1.msra.mxu0 0.0
  %2294 = vmatprep.subr.mxu0 0.0
  %2295 = vmatpush1.msra.mxu0 0.0
  %2296 = vmatprep.subr.mxu0 0.0
  %2297 = vmatpush1.msra.mxu0 0.0
  %2298 = vmatprep.subr.mxu0 0.0
  %2299 = vmatpush1.msra.mxu0 0.0
  %2300 = vmatprep.subr.mxu0 0.0
  %2301 = vmatpush1.msra.mxu0 0.0
  %2302 = vmatprep.subr.mxu0 0.0
  %2303 = vmatpush1.msra.mxu0 0.0
  %2304 = vmatprep.subr.mxu0 0.0
  %2305 = vmatpush1.msra.mxu0 0.0
  %2306 = vmatprep.mubr.f32.mxu0 0.0
  %2307 = vmatmul.mubr.f32.gmra.mrb[0].mxu0 %v2083
  %v2308 = vpop.f32.mrb[0].mxu0
  %v2309 = vadd.f32 %v2232, %v2308
  %v2310 = vpop.f32.mrb[0].mxu0
  %v2311 = vadd.f32 %v2234, %v2310
  %2312 = vmatprep.mubr.f32.mxu0 0.0
  %2313 = vmatmul.mubr.f32.gmra.mrb[0].mxu0 %v2086
  %v2314 = vpop.f32.mrb[0].mxu0
  %v2315 = vadd.f32 %v2238, %v2314
  %v2316 = vpop.f32.mrb[0].mxu0
  %v2317 = vadd.f32 %v2240, %v2316
  %2318 = vdwg.mxu0
  %v2320 = vsel %vm63, %v1568, 0
  %v2323 = vsel %vm63, %v1573, 0
  %2325 = vmatprep.subr.mxu0 %v1577
  %2326 = vmatpush1.msra.mxu0 %v1576
  %2327 = vmatprep.subr.mxu0 %v1579
  %2328 = vmatpush1.msra.mxu0 %v1578
  %2329 = vmatprep.subr.mxu0 %v1581
  %2330 = vmatpush1.msra.mxu0 %v1580
  %2331 = vmatprep.subr.mxu0 %v1583
  %2332 = vmatpush1.msra.mxu0 %v1582
  %2333 = vmatprep.subr.mxu0 %v1585
  %2334 = vmatpush1.msra.mxu0 %v1584
  %2335 = vmatprep.subr.mxu0 %v1587
  %2336 = vmatpush1.msra.mxu0 %v1586
  %2337 = vmatprep.subr.mxu0 %v1589
  %2338 = vmatpush1.msra.mxu0 %v1588
  %2339 = vmatprep.subr.mxu0 %v1591
  %2340 = vmatpush1.msra.mxu0 %v1590
  %2341 = vmatprep.subr.mxu0 %v1593
  %2342 = vmatpush1.msra.mxu0 %v1592
  %2343 = vmatprep.subr.mxu0 %v1595
  %2344 = vmatpush1.msra.mxu0 %v1594
  %2345 = vmatprep.subr.mxu0 %v1597
  %2346 = vmatpush1.msra.mxu0 %v1596
  %2347 = vmatprep.subr.mxu0 %v1599
  %2348 = vmatpush1.msra.mxu0 %v1598
  %2349 = vmatprep.subr.mxu0 %v1601
  %2350 = vmatpush1.msra.mxu0 %v1600
  %2351 = vmatprep.subr.mxu0 %v1603
  %2352 = vmatpush1.msra.mxu0 %v1602
  %2353 = vmatprep.subr.mxu0 %v1605
  %2354 = vmatpush1.msra.mxu0 %v1604
  %2355 = vmatprep.subr.mxu0 %v1607
  %2356 = vmatpush1.msra.mxu0 %v1606
  %2357 = vmatprep.subr.mxu0 %v1609
  %2358 = vmatpush1.msra.mxu0 %v1608
  %2359 = vmatprep.subr.mxu0 %v1611
  %2360 = vmatpush1.msra.mxu0 %v1610
  %2361 = vmatprep.subr.mxu0 %v1613
  %2362 = vmatpush1.msra.mxu0 %v1612
  %2363 = vmatprep.subr.mxu0 %v1615
  %2364 = vmatpush1.msra.mxu0 %v1614
  %2365 = vmatprep.subr.mxu0 %v1617
  %2366 = vmatpush1.msra.mxu0 %v1616
  %2367 = vmatprep.subr.mxu0 %v1619
  %2368 = vmatpush1.msra.mxu0 %v1618
  %2369 = vmatprep.subr.mxu0 %v1621
  %2370 = vmatpush1.msra.mxu0 %v1620
  %2371 = vmatprep.subr.mxu0 %v1623
  %2372 = vmatpush1.msra.mxu0 %v1622
  %2373 = vmatprep.subr.mxu0 %v1625
  %2374 = vmatpush1.msra.mxu0 %v1624
  %2375 = vmatprep.subr.mxu0 %v1627
  %2376 = vmatpush1.msra.mxu0 %v1626
  %2377 = vmatprep.subr.mxu0 %v1629
  %2378 = vmatpush1.msra.mxu0 %v1628
  %2379 = vmatprep.subr.mxu0 %v1631
  %2380 = vmatpush1.msra.mxu0 %v1630
  %2381 = vmatprep.subr.mxu0 %v1633
  %2382 = vmatpush1.msra.mxu0 %v1632
  %2383 = vmatprep.subr.mxu0 %v1635
  %2384 = vmatpush1.msra.mxu0 %v1634
  %2385 = vmatprep.subr.mxu0 %v1637
  %2386 = vmatpush1.msra.mxu0 %v1636
  %2387 = vmatprep.subr.mxu0 %v1639
  %2388 = vmatpush1.msra.mxu0 %v1638
  %2389 = vmatprep.mubr.f32.mxu0 %v1416
  %2390 = vmatmul.mubr.f32.gmra.mrb[0].mxu0 %v1414
  %v2391 = vpop.f32.mrb[0].mxu0
  %v2392 = vadd.f32 %v2309, %v2391
  %v2393 = vpop.f32.mrb[0].mxu0
  %v2394 = vadd.f32 %v2311, %v2393
  %2395 = vmatprep.mubr.f32.mxu0 %v1422
  %2396 = vmatmul.mubr.f32.gmra.mrb[0].mxu0 %v1420
  %v2397 = vpop.f32.mrb[0].mxu0
  %v2398 = vadd.f32 %v2315, %v2397
  %v2399 = vpop.f32.mrb[0].mxu0
  %v2400 = vadd.f32 %v2317, %v2399
  %2401 = vdwg.mxu0
  %2402 = vmatprep.subr.mxu0 %v1641
  %2403 = vmatpush1.msra.mxu0 %v1640
  %2404 = vmatprep.subr.mxu0 %v1643
  %2405 = vmatpush1.msra.mxu0 %v1642
  %2406 = vmatprep.subr.mxu0 %v1645
  %2407 = vmatpush1.msra.mxu0 %v1644
  %2408 = vmatprep.subr.mxu0 %v1647
  %2409 = vmatpush1.msra.mxu0 %v1646
  %2410 = vmatprep.subr.mxu0 %v1649
  %2411 = vmatpush1.msra.mxu0 %v1648
  %2412 = vmatprep.subr.mxu0 %v1651
  %2413 = vmatpush1.msra.mxu0 %v1650
  %2414 = vmatprep.subr.mxu0 %v1653
  %2415 = vmatpush1.msra.mxu0 %v1652
  %2416 = vmatprep.subr.mxu0 %v1655
  %2417 = vmatpush1.msra.mxu0 %v1654
  %2418 = vmatprep.subr.mxu0 %v1657
  %2419 = vmatpush1.msra.mxu0 %v1656
  %2420 = vmatprep.subr.mxu0 %v1659
  %2421 = vmatpush1.msra.mxu0 %v1658
  %2422 = vmatprep.subr.mxu0 %v1661
  %2423 = vmatpush1.msra.mxu0 %v1660
  %2424 = vmatprep.subr.mxu0 %v1663
  %2425 = vmatpush1.msra.mxu0 %v1662
  %2426 = vmatprep.subr.mxu0 %v1665
  %2427 = vmatpush1.msra.mxu0 %v1664
  %2428 = vmatprep.subr.mxu0 %v1667
  %2429 = vmatpush1.msra.mxu0 %v1666
  %2430 = vmatprep.subr.mxu0 %v1669
  %2431 = vmatpush1.msra.mxu0 %v1668
  %2432 = vmatprep.subr.mxu0 %v1671
  %2433 = vmatpush1.msra.mxu0 %v1670
  %2434 = vmatprep.subr.mxu0 %v1673
  %2435 = vmatpush1.msra.mxu0 %v1672
  %2436 = vmatprep.subr.mxu0 %v1675
  %2437 = vmatpush1.msra.mxu0 %v1674
  %2438 = vmatprep.subr.mxu0 %v1677
  %2439 = vmatpush1.msra.mxu0 %v1676
  %2440 = vmatprep.subr.mxu0 %v1679
  %2441 = vmatpush1.msra.mxu0 %v1678
  %2442 = vmatprep.subr.mxu0 %v1681
  %2443 = vmatpush1.msra.mxu0 %v1680
  %2444 = vmatprep.subr.mxu0 %v1683
  %2445 = vmatpush1.msra.mxu0 %v1682
  %2446 = vmatprep.subr.mxu0 %v1685
  %2447 = vmatpush1.msra.mxu0 %v1684
  %2448 = vmatprep.subr.mxu0 %v1687
  %2449 = vmatpush1.msra.mxu0 %v1686
  %2450 = vmatprep.subr.mxu0 %v1689
  %2451 = vmatpush1.msra.mxu0 %v1688
  %2452 = vmatprep.subr.mxu0 %v1691
  %2453 = vmatpush1.msra.mxu0 %v1690
  %2454 = vmatprep.subr.mxu0 %v1693
  %2455 = vmatpush1.msra.mxu0 %v1692
  %2456 = vmatprep.subr.mxu0 %v1695
  %2457 = vmatpush1.msra.mxu0 %v1694
  %2458 = vmatprep.subr.mxu0 %v1697
  %2459 = vmatpush1.msra.mxu0 %v1696
  %2460 = vmatprep.subr.mxu0 %v1699
  %2461 = vmatpush1.msra.mxu0 %v1698
  %2462 = vmatprep.subr.mxu0 %v1701
  %2463 = vmatpush1.msra.mxu0 %v1700
  %2464 = vmatprep.subr.mxu0 %v1703
  %2465 = vmatpush1.msra.mxu0 %v1702
  %2466 = vmatprep.mubr.f32.mxu0 %v1493
  %2467 = vmatmul.mubr.f32.gmra.mrb[0].mxu0 %v1491
  %v2468 = vpop.f32.mrb[0].mxu0
  %v2469 = vadd.f32 %v2392, %v2468
  %v2470 = vpop.f32.mrb[0].mxu0
  %v2471 = vadd.f32 %v2394, %v2470
  %2472 = vmatprep.mubr.f32.mxu0 %v1499
  %2473 = vmatmul.mubr.f32.gmra.mrb[0].mxu0 %v1497
  %v2474 = vpop.f32.mrb[0].mxu0
  %v2475 = vadd.f32 %v2398, %v2474
  %v2476 = vpop.f32.mrb[0].mxu0
  %v2477 = vadd.f32 %v2400, %v2476
  %2478 = vdwg.mxu0
  %2479 = vmatprep.subr.mxu0 %v1705
  %2480 = vmatpush1.msra.mxu0 %v1704
  %2481 = vmatprep.subr.mxu0 %v1707
  %2482 = vmatpush1.msra.mxu0 %v1706
  %2483 = vmatprep.subr.mxu0 %v1709
  %2484 = vmatpush1.msra.mxu0 %v1708
  %2485 = vmatprep.subr.mxu0 %v1711
  %2486 = vmatpush1.msra.mxu0 %v1710
  %2487 = vmatprep.subr.mxu0 0.0
  %2488 = vmatpush1.msra.mxu0 0.0
  %2489 = vmatprep.subr.mxu0 0.0
  %2490 = vmatpush1.msra.mxu0 0.0
  %2491 = vmatprep.subr.mxu0 0.0
  %2492 = vmatpush1.msra.mxu0 0.0
  %2493 = vmatprep.subr.mxu0 0.0
  %2494 = vmatpush1.msra.mxu0 0.0
  %2495 = vmatprep.subr.mxu0 0.0
  %2496 = vmatpush1.msra.mxu0 0.0
  %2497 = vmatprep.subr.mxu0 0.0
  %2498 = vmatpush1.msra.mxu0 0.0
  %2499 = vmatprep.subr.mxu0 0.0
  %2500 = vmatpush1.msra.mxu0 0.0
  %2501 = vmatprep.subr.mxu0 0.0
  %2502 = vmatpush1.msra.mxu0 0.0
  %2503 = vmatprep.subr.mxu0 0.0
  %2504 = vmatpush1.msra.mxu0 0.0
  %2505 = vmatprep.subr.mxu0 0.0
  %2506 = vmatpush1.msra.mxu0 0.0
  %2507 = vmatprep.subr.mxu0 0.0
  %2508 = vmatpush1.msra.mxu0 0.0
  %2509 = vmatprep.subr.mxu0 0.0
  %2510 = vmatpush1.msra.mxu0 0.0
  %2511 = vmatprep.subr.mxu0 0.0
  %2512 = vmatpush1.msra.mxu0 0.0
  %2513 = vmatprep.subr.mxu0 0.0
  %2514 = vmatpush1.msra.mxu0 0.0
  %2515 = vmatprep.subr.mxu0 0.0
  %2516 = vmatpush1.msra.mxu0 0.0
  %2517 = vmatprep.subr.mxu0 0.0
  %2518 = vmatpush1.msra.mxu0 0.0
  %2519 = vmatprep.subr.mxu0 0.0
  %2520 = vmatpush1.msra.mxu0 0.0
  %2521 = vmatprep.subr.mxu0 0.0
  %2522 = vmatpush1.msra.mxu0 0.0
  %2523 = vmatprep.subr.mxu0 0.0
  %2524 = vmatpush1.msra.mxu0 0.0
  %2525 = vmatprep.subr.mxu0 0.0
  %2526 = vmatpush1.msra.mxu0 0.0
  %2527 = vmatprep.subr.mxu0 0.0
  %2528 = vmatpush1.msra.mxu0 0.0
  %2529 = vmatprep.subr.mxu0 0.0
  %2530 = vmatpush1.msra.mxu0 0.0
  %2531 = vmatprep.subr.mxu0 0.0
  %2532 = vmatpush1.msra.mxu0 0.0
  %2533 = vmatprep.subr.mxu0 0.0
  %2534 = vmatpush1.msra.mxu0 0.0
  %2535 = vmatprep.subr.mxu0 0.0
  %2536 = vmatpush1.msra.mxu0 0.0
  %2537 = vmatprep.subr.mxu0 0.0
  %2538 = vmatpush1.msra.mxu0 0.0
  %2539 = vmatprep.subr.mxu0 0.0
  %2540 = vmatpush1.msra.mxu0 0.0
  %2541 = vmatprep.subr.mxu0 0.0
  %2542 = vmatpush1.msra.mxu0 0.0
  %2543 = vmatprep.mubr.f32.mxu0 0.0
  %2544 = vmatmul.mubr.f32.gmra.mrb[0].mxu0 %v2320
  %v2545 = vpop.f32.mrb[0].mxu0
  %v2546 = vadd.f32 %v2469, %v2545
  %v2547 = vpop.f32.mrb[0].mxu0
  %v2548 = vadd.f32 %v2471, %v2547
  %2549 = vmatprep.mubr.f32.mxu0 0.0
  %2550 = vmatmul.mubr.f32.gmra.mrb[0].mxu0 %v2323
  %v2551 = vpop.f32.mrb[0].mxu0
  %v2552 = vadd.f32 %v2475, %v2551
  %v2553 = vpop.f32.mrb[0].mxu0
  %v2554 = vadd.f32 %v2477, %v2553
  %2555 = vdwg.mxu0
  %v2556 = vsel %vm1326, %v811, 0
  %v2558 = vsel %vm1326, %v812, 0
  %2560 = vmatprep.subr.mxu0 %v1299
  %2561 = vmatpush1.msra.mxu0 %v1297
  %2562 = vmatprep.subr.mxu0 %v1309
  %2563 = vmatpush1.msra.mxu0 %v1307
  %2564 = vmatprep.subr.mxu0 %v1336
  %2565 = vmatpush1.msra.mxu0 %v1333
  %2566 = vmatprep.subr.mxu0 0.0
  %2567 = vmatpush1.msra.mxu0 0.0
  %2568 = vmatprep.subr.mxu0 0.0
  %2569 = vmatpush1.msra.mxu0 0.0
  %2570 = vmatprep.subr.mxu0 0.0
  %2571 = vmatpush1.msra.mxu0 0.0
  %2572 = vmatprep.subr.mxu0 0.0
  %2573 = vmatpush1.msra.mxu0 0.0
  %2574 = vmatprep.subr.mxu0 0.0
  %2575 = vmatpush1.msra.mxu0 0.0
  %2576 = vmatprep.subr.mxu0 0.0
  %2577 = vmatpush1.msra.mxu0 0.0
  %2578 = vmatprep.subr.mxu0 0.0
  %2579 = vmatpush1.msra.mxu0 0.0
  %2580 = vmatprep.subr.mxu0 0.0
  %2581 = vmatpush1.msra.mxu0 0.0
  %2582 = vmatprep.subr.mxu0 0.0
  %2583 = vmatpush1.msra.mxu0 0.0
  %2584 = vmatprep.subr.mxu0 0.0
  %2585 = vmatpush1.msra.mxu0 0.0
  %2586 = vmatprep.subr.mxu0 0.0
  %2587 = vmatpush1.msra.mxu0 0.0
  %2588 = vmatprep.subr.mxu0 0.0
  %2589 = vmatpush1.msra.mxu0 0.0
  %2590 = vmatprep.subr.mxu0 0.0
  %2591 = vmatpush1.msra.mxu0 0.0
  %2592 = vmatprep.subr.mxu0 0.0
  %2593 = vmatpush1.msra.mxu0 0.0
  %2594 = vmatprep.subr.mxu0 0.0
  %2595 = vmatpush1.msra.mxu0 0.0
  %2596 = vmatprep.subr.mxu0 0.0
  %2597 = vmatpush1.msra.mxu0 0.0
  %2598 = vmatprep.subr.mxu0 0.0
  %2599 = vmatpush1.msra.mxu0 0.0
  %2600 = vmatprep.subr.mxu0 0.0
  %2601 = vmatpush1.msra.mxu0 0.0
  %2602 = vmatprep.subr.mxu0 0.0
  %2603 = vmatpush1.msra.mxu0 0.0
  %2604 = vmatprep.subr.mxu0 0.0
  %2605 = vmatpush1.msra.mxu0 0.0
  %2606 = vmatprep.subr.mxu0 0.0
  %2607 = vmatpush1.msra.mxu0 0.0
  %2608 = vmatprep.subr.mxu0 0.0
  %2609 = vmatpush1.msra.mxu0 0.0
  %2610 = vmatprep.subr.mxu0 0.0
  %2611 = vmatpush1.msra.mxu0 0.0
  %2612 = vmatprep.subr.mxu0 0.0
  %2613 = vmatpush1.msra.mxu0 0.0
  %2614 = vmatprep.subr.mxu0 0.0
  %2615 = vmatpush1.msra.mxu0 0.0
  %2616 = vmatprep.subr.mxu0 0.0
  %2617 = vmatpush1.msra.mxu0 0.0
  %2618 = vmatprep.subr.mxu0 0.0
  %2619 = vmatpush1.msra.mxu0 0.0
  %2620 = vmatprep.subr.mxu0 0.0
  %2621 = vmatpush1.msra.mxu0 0.0
  %2622 = vmatprep.subr.mxu0 0.0
  %2623 = vmatpush1.msra.mxu0 0.0
  %2624 = vmatprep.mubr.f32.mxu0 0.0
  %2625 = vmatmul.mubr.f32.gmra.mrb[0].mxu0 %v2556
  %v2626 = vpop.f32.mrb[0].mxu0
  %v2627 = vadd.f32 0.0, %v2626
  %v2628 = vpop.f32.mrb[0].mxu0
  %v2629 = vadd.f32 0.0, %v2628
  %2630 = vmatprep.mubr.f32.mxu0 0.0
  %2631 = vmatmul.mubr.f32.gmra.mrb[0].mxu0 %v2558
  %v2632 = vpop.f32.mrb[0].mxu0
  %v2633 = vadd.f32 0.0, %v2632
  %v2634 = vpop.f32.mrb[0].mxu0
  %v2635 = vadd.f32 0.0, %v2634
  %2636 = vdwg.mxu0
  %2637 = vmatprep.subr.mxu0 %v1303
  %2638 = vmatpush1.msra.mxu0 %v1301
  %2639 = vmatprep.subr.mxu0 %v1313
  %2640 = vmatpush1.msra.mxu0 %v1311
  %2641 = vmatprep.subr.mxu0 %v1342
  %2642 = vmatpush1.msra.mxu0 %v1339
  %2643 = vmatprep.subr.mxu0 0.0
  %2644 = vmatpush1.msra.mxu0 0.0
  %2645 = vmatprep.subr.mxu0 0.0
  %2646 = vmatpush1.msra.mxu0 0.0
  %2647 = vmatprep.subr.mxu0 0.0
  %2648 = vmatpush1.msra.mxu0 0.0
  %2649 = vmatprep.subr.mxu0 0.0
  %2650 = vmatpush1.msra.mxu0 0.0
  %2651 = vmatprep.subr.mxu0 0.0
  %2652 = vmatpush1.msra.mxu0 0.0
  %2653 = vmatprep.subr.mxu0 0.0
  %2654 = vmatpush1.msra.mxu0 0.0
  %2655 = vmatprep.subr.mxu0 0.0
  %2656 = vmatpush1.msra.mxu0 0.0
  %2657 = vmatprep.subr.mxu0 0.0
  %2658 = vmatpush1.msra.mxu0 0.0
  %2659 = vmatprep.subr.mxu0 0.0
  %2660 = vmatpush1.msra.mxu0 0.0
  %2661 = vmatprep.subr.mxu0 0.0
  %2662 = vmatpush1.msra.mxu0 0.0
  %2663 = vmatprep.subr.mxu0 0.0
  %2664 = vmatpush1.msra.mxu0 0.0
  %2665 = vmatprep.subr.mxu0 0.0
  %2666 = vmatpush1.msra.mxu0 0.0
  %2667 = vmatprep.subr.mxu0 0.0
  %2668 = vmatpush1.msra.mxu0 0.0
  %2669 = vmatprep.subr.mxu0 0.0
  %2670 = vmatpush1.msra.mxu0 0.0
  %2671 = vmatprep.subr.mxu0 0.0
  %2672 = vmatpush1.msra.mxu0 0.0
  %2673 = vmatprep.subr.mxu0 0.0
  %2674 = vmatpush1.msra.mxu0 0.0
  %2675 = vmatprep.subr.mxu0 0.0
  %2676 = vmatpush1.msra.mxu0 0.0
  %2677 = vmatprep.subr.mxu0 0.0
  %2678 = vmatpush1.msra.mxu0 0.0
  %2679 = vmatprep.subr.mxu0 0.0
  %2680 = vmatpush1.msra.mxu0 0.0
  %2681 = vmatprep.subr.mxu0 0.0
  %2682 = vmatpush1.msra.mxu0 0.0
  %2683 = vmatprep.subr.mxu0 0.0
  %2684 = vmatpush1.msra.mxu0 0.0
  %2685 = vmatprep.subr.mxu0 0.0
  %2686 = vmatpush1.msra.mxu0 0.0
  %2687 = vmatprep.subr.mxu0 0.0
  %2688 = vmatpush1.msra.mxu0 0.0
  %2689 = vmatprep.subr.mxu0 0.0
  %2690 = vmatpush1.msra.mxu0 0.0
  %2691 = vmatprep.subr.mxu0 0.0
  %2692 = vmatpush1.msra.mxu0 0.0
  %2693 = vmatprep.subr.mxu0 0.0
  %2694 = vmatpush1.msra.mxu0 0.0
  %2695 = vmatprep.subr.mxu0 0.0
  %2696 = vmatpush1.msra.mxu0 0.0
  %2697 = vmatprep.subr.mxu0 0.0
  %2698 = vmatpush1.msra.mxu0 0.0
  %2699 = vmatprep.subr.mxu0 0.0
  %2700 = vmatpush1.msra.mxu0 0.0
  %2701 = vmatprep.mubr.f32.mxu0 0.0
  %2702 = vmatmul.mubr.f32.gmra.mrb[0].mxu0 %v2556
  %v2703 = vpop.f32.mrb[0].mxu0
  %v2704 = vadd.f32 0.0, %v2703
  %v2705 = vpop.f32.mrb[0].mxu0
  %v2706 = vadd.f32 0.0, %v2705
  %2707 = vmatprep.mubr.f32.mxu0 0.0
  %2708 = vmatmul.mubr.f32.gmra.mrb[0].mxu0 %v2558
  %v2709 = vpop.f32.mrb[0].mxu0
  %v2710 = vadd.f32 0.0, %v2709
  %v2711 = vpop.f32.mrb[0].mxu0
  %v2712 = vadd.f32 0.0, %v2711
  %2713 = vdwg.mxu0
  %2714 = vmatprep.subr.mxu0 0.0
  %2715 = vmatpush1.msra.mxu0 %v1305
  %2716 = vmatprep.subr.mxu0 0.0
  %2717 = vmatpush1.msra.mxu0 %v1315
  %2718 = vmatprep.subr.mxu0 0.0
  %2719 = vmatpush1.msra.mxu0 %v1345
  %2720 = vmatprep.subr.mxu0 0.0
  %2721 = vmatpush1.msra.mxu0 0.0
  %2722 = vmatprep.subr.mxu0 0.0
  %2723 = vmatpush1.msra.mxu0 0.0
  %2724 = vmatprep.subr.mxu0 0.0
  %2725 = vmatpush1.msra.mxu0 0.0
  %2726 = vmatprep.subr.mxu0 0.0
  %2727 = vmatpush1.msra.mxu0 0.0
  %2728 = vmatprep.subr.mxu0 0.0
  %2729 = vmatpush1.msra.mxu0 0.0
  %2730 = vmatprep.subr.mxu0 0.0
  %2731 = vmatpush1.msra.mxu0 0.0
  %2732 = vmatprep.subr.mxu0 0.0
  %2733 = vmatpush1.msra.mxu0 0.0
  %2734 = vmatprep.subr.mxu0 0.0
  %2735 = vmatpush1.msra.mxu0 0.0
  %2736 = vmatprep.subr.mxu0 0.0
  %2737 = vmatpush1.msra.mxu0 0.0
  %2738 = vmatprep.subr.mxu0 0.0
  %2739 = vmatpush1.msra.mxu0 0.0
  %2740 = vmatprep.subr.mxu0 0.0
  %2741 = vmatpush1.msra.mxu0 0.0
  %2742 = vmatprep.subr.mxu0 0.0
  %2743 = vmatpush1.msra.mxu0 0.0
  %2744 = vmatprep.subr.mxu0 0.0
  %2745 = vmatpush1.msra.mxu0 0.0
  %2746 = vmatprep.subr.mxu0 0.0
  %2747 = vmatpush1.msra.mxu0 0.0
  %2748 = vmatprep.subr.mxu0 0.0
  %2749 = vmatpush1.msra.mxu0 0.0
  %2750 = vmatprep.subr.mxu0 0.0
  %2751 = vmatpush1.msra.mxu0 0.0
  %2752 = vmatprep.subr.mxu0 0.0
  %2753 = vmatpush1.msra.mxu0 0.0
  %2754 = vmatprep.subr.mxu0 0.0
  %2755 = vmatpush1.msra.mxu0 0.0
  %2756 = vmatprep.subr.mxu0 0.0
  %2757 = vmatpush1.msra.mxu0 0.0
  %2758 = vmatprep.subr.mxu0 0.0
  %2759 = vmatpush1.msra.mxu0 0.0
  %2760 = vmatprep.subr.mxu0 0.0
  %2761 = vmatpush1.msra.mxu0 0.0
  %2762 = vmatprep.subr.mxu0 0.0
  %2763 = vmatpush1.msra.mxu0 0.0
  %2764 = vmatprep.subr.mxu0 0.0
  %2765 = vmatpush1.msra.mxu0 0.0
  %2766 = vmatprep.subr.mxu0 0.0
  %2767 = vmatpush1.msra.mxu0 0.0
  %2768 = vmatprep.subr.mxu0 0.0
  %2769 = vmatpush1.msra.mxu0 0.0
  %2770 = vmatprep.subr.mxu0 0.0
  %2771 = vmatpush1.msra.mxu0 0.0
  %2772 = vmatprep.subr.mxu0 0.0
  %2773 = vmatpush1.msra.mxu0 0.0
  %2774 = vmatprep.subr.mxu0 0.0
  %2775 = vmatpush1.msra.mxu0 0.0
  %2776 = vmatprep.subr.mxu0 0.0
  %2777 = vmatpush1.msra.mxu0 0.0
  %2778 = vmatprep.mubr.f32.mxu0 0.0
  %2779 = vmatmul.mubr.f32.gmra.mrb[0].mxu0 %v2556
  %v2780 = vpop.f32.mrb[0].mxu0
  %v2781 = vadd.f32 0.0, %v2780
  %v2782 = vpop.f32.mrb[0].mxu0
  %2783 = vmatprep.mubr.f32.mxu0 0.0
  %2784 = vmatmul.mubr.f32.gmra.mrb[0].mxu0 %v2558
  %v2785 = vpop.f32.mrb[0].mxu0
  %v2786 = vadd.f32 0.0, %v2785
  %v2787 = vpop.f32.mrb[0].mxu0
  %2788 = vdwg.mxu0
  %s2789 = scalar_lea.vmem %s3, 2176
  %v2790 = vld [vmem:[%s2789] sm:$0xff]
  %v2791 = vld [vmem:[%s2789 + $0x8] sm:$0xff]
  %v2792 = vld [vmem:[%s2789 + $0x10] sm:$0xff]
  %v2793 = vld [vmem:[%s2789 + $0x18] sm:$0xff]
  %v2794 = vld [vmem:[%s2789 + $0x20] sm:$0xff]
  %v2795 = vld [vmem:[%s2789 + $0x28] sm:$0xff]
  %v2796 = vld [vmem:[%s2789 + $0x30] sm:$0xff]
  %v2797 = vld [vmem:[%s2789 + $0x38] sm:$0xff]
  %v2798 = vld [vmem:[%s2789 + $0x40] sm:$0xff]
  %v2799 = vld [vmem:[%s2789 + $0x48] sm:$0xff]
  %v2800 = vld [vmem:[%s2789 + $0x50] sm:$0xff]
  %v2801 = vld [vmem:[%s2789 + $0x58] sm:$0xff]
  %v2802 = vld [vmem:[%s2789 + $0x60] sm:$0xff]
  %v2803 = vld [vmem:[%s2789 + $0x68] sm:$0xff]
  %v2804 = vld [vmem:[%s2789 + $0x70] sm:$0xff]
  %v2805 = vld [vmem:[%s2789 + $0x78] sm:$0xff]
  %v2806 = vld [vmem:[%s2789 + $0x80] sm:$0xff]
  %v2807 = vld [vmem:[%s2789 + $0x88] sm:$0xff]
  %v2808 = vld [vmem:[%s2789 + $0x90] sm:$0xff]
  %v2809 = vld [vmem:[%s2789 + $0x98] sm:$0xff]
  %v2810 = vld [vmem:[%s2789 + $0xa0] sm:$0xff]
  %v2811 = vld [vmem:[%s2789 + $0xa8] sm:$0xff]
  %v2812 = vld [vmem:[%s2789 + $0xb0] sm:$0xff]
  %v2813 = vld [vmem:[%s2789 + $0xb8] sm:$0xff]
  %v2814 = vld [vmem:[%s2789 + $0xc0] sm:$0xff]
  %v2815 = vld [vmem:[%s2789 + $0xc8] sm:$0xff]
  %v2816 = vld [vmem:[%s2789 + $0xd0] sm:$0xff]
  %v2817 = vld [vmem:[%s2789 + $0xd8] sm:$0xff]
  %v2818 = vld [vmem:[%s2789 + $0xe0] sm:$0xff]
  %v2819 = vld [vmem:[%s2789 + $0xe8] sm:$0xff]
  %v2820 = vld [vmem:[%s2789 + $0xf0] sm:$0xff]
  %v2821 = vld [vmem:[%s2789 + $0xf8] sm:$0xff]
  %v2822 = vld [vmem:[%s2789 + $0x100] sm:$0xff]
  %v2823 = vld [vmem:[%s2789 + $0x108] sm:$0xff]
  %v2824 = vld [vmem:[%s2789 + $0x110] sm:$0xff]
  %v2825 = vld [vmem:[%s2789 + $0x118] sm:$0xff]
  %v2826 = vld [vmem:[%s2789 + $0x120] sm:$0xff]
  %v2827 = vld [vmem:[%s2789 + $0x128] sm:$0xff]
  %v2828 = vld [vmem:[%s2789 + $0x130] sm:$0xff]
  %v2829 = vld [vmem:[%s2789 + $0x138] sm:$0xff]
  %v2830 = vld [vmem:[%s2789 + $0x140] sm:$0xff]
  %v2831 = vld [vmem:[%s2789 + $0x148] sm:$0xff]
  %v2832 = vld [vmem:[%s2789 + $0x150] sm:$0xff]
  %v2833 = vld [vmem:[%s2789 + $0x158] sm:$0xff]
  %v2834 = vld [vmem:[%s2789 + $0x160] sm:$0xff]
  %v2835 = vld [vmem:[%s2789 + $0x168] sm:$0xff]
  %v2836 = vld [vmem:[%s2789 + $0x170] sm:$0xff]
  %v2837 = vld [vmem:[%s2789 + $0x178] sm:$0xff]
  %v2838 = vld [vmem:[%s2789 + $0x180] sm:$0xff]
  %v2839 = vld [vmem:[%s2789 + $0x188] sm:$0xff]
  %v2840 = vld [vmem:[%s2789 + $0x190] sm:$0xff]
  %v2841 = vld [vmem:[%s2789 + $0x198] sm:$0xff]
  %v2842 = vld [vmem:[%s2789 + $0x1a0] sm:$0xff]
  %v2843 = vld [vmem:[%s2789 + $0x1a8] sm:$0xff]
  %v2844 = vld [vmem:[%s2789 + $0x1b0] sm:$0xff]
  %v2845 = vld [vmem:[%s2789 + $0x1b8] sm:$0xff]
  %v2846 = vld [vmem:[%s2789 + $0x1c0] sm:$0xff]
  %v2847 = vld [vmem:[%s2789 + $0x1c8] sm:$0xff]
  %v2848 = vld [vmem:[%s2789 + $0x1d0] sm:$0xff]
  %v2849 = vld [vmem:[%s2789 + $0x1d8] sm:$0xff]
  %v2850 = vld [vmem:[%s2789 + $0x1e0] sm:$0xff]
  %v2851 = vld [vmem:[%s2789 + $0x1e8] sm:$0xff]
  %v2852 = vld [vmem:[%s2789 + $0x1f0] sm:$0xff]
  %v2853 = vld [vmem:[%s2789 + $0x1f8] sm:$0xff]
  %v2854 = vld [vmem:[%s2789 + $0x200] sm:$0xff]
  %v2855 = vld [vmem:[%s2789 + $0x208] sm:$0xff]
  %v2856 = vld [vmem:[%s2789 + $0x210] sm:$0xff]
  %v2857 = vld [vmem:[%s2789 + $0x218] sm:$0xff]
  %v2858 = vld [vmem:[%s2789 + $0x220] sm:$0xff]
  %v2859 = vld [vmem:[%s2789 + $0x228] sm:$0xff]
  %v2860 = vld [vmem:[%s2789 + $0x230] sm:$0xff]
  %v2861 = vld [vmem:[%s2789 + $0x238] sm:$0xff]
  %v2862 = vld [vmem:[%s2789 + $0x240] sm:$0xff]
  %v2863 = vld [vmem:[%s2789 + $0x248] sm:$0xff]
  %v2864 = vld [vmem:[%s2789 + $0x250] sm:$0xff]
  %v2865 = vld [vmem:[%s2789 + $0x258] sm:$0xff]
  %v2866 = vld [vmem:[%s2789 + $0x260] sm:$0xff]
  %v2867 = vld [vmem:[%s2789 + $0x268] sm:$0xff]
  %v2868 = vld [vmem:[%s2789 + $0x270] sm:$0xff]
  %v2869 = vld [vmem:[%s2789 + $0x278] sm:$0xff]
  %v2870 = vld [vmem:[%s2789 + $0x280] sm:$0xff]
  %v2871 = vld [vmem:[%s2789 + $0x288] sm:$0xff]
  %v2872 = vld [vmem:[%s2789 + $0x290] sm:$0xff]
  %v2873 = vld [vmem:[%s2789 + $0x298] sm:$0xff]
  %v2874 = vld [vmem:[%s2789 + $0x2a0] sm:$0xff]
  %v2875 = vld [vmem:[%s2789 + $0x2a8] sm:$0xff]
  %v2876 = vld [vmem:[%s2789 + $0x2b0] sm:$0xff]
  %v2877 = vld [vmem:[%s2789 + $0x2b8] sm:$0xff]
  %v2878 = vld [vmem:[%s2789 + $0x2c0] sm:$0xff]
  %v2879 = vld [vmem:[%s2789 + $0x2c8] sm:$0xff]
  %v2880 = vld [vmem:[%s2789 + $0x2d0] sm:$0xff]
  %v2881 = vld [vmem:[%s2789 + $0x2d8] sm:$0xff]
  %v2882 = vld [vmem:[%s2789 + $0x2e0] sm:$0xff]
  %v2883 = vld [vmem:[%s2789 + $0x2e8] sm:$0xff]
  %v2884 = vld [vmem:[%s2789 + $0x2f0] sm:$0xff]
  %v2885 = vld [vmem:[%s2789 + $0x2f8] sm:$0xff]
  %v2886 = vld [vmem:[%s2789 + $0x300] sm:$0xff]
  %v2887 = vld [vmem:[%s2789 + $0x308] sm:$0xff]
  %v2888 = vld [vmem:[%s2789 + $0x310] sm:$0xff]
  %v2889 = vld [vmem:[%s2789 + $0x318] sm:$0xff]
  %v2890 = vld [vmem:[%s2789 + $0x320] sm:$0xff]
  %v2891 = vld [vmem:[%s2789 + $0x328] sm:$0xff]
  %v2892 = vld [vmem:[%s2789 + $0x330] sm:$0xff]
  %v2893 = vld [vmem:[%s2789 + $0x338] sm:$0xff]
  %v2894 = vld [vmem:[%s2789 + $0x340] sm:$0xff]
  %v2895 = vld [vmem:[%s2789 + $0x348] sm:$0xff]
  %v2896 = vld [vmem:[%s2789 + $0x350] sm:$0xff]
  %v2897 = vld [vmem:[%s2789 + $0x358] sm:$0xff]
  %v2898 = vld [vmem:[%s2789 + $0x360] sm:$0xff]
  %v2899 = vld [vmem:[%s2789 + $0x368] sm:$0xff]
  %v2900 = vld [vmem:[%s2789 + $0x370] sm:$0xff]
  %v2901 = vld [vmem:[%s2789 + $0x378] sm:$0xff]
  %v2902 = vld [vmem:[%s2789 + $0x380] sm:$0xff]
  %v2903 = vld [vmem:[%s2789 + $0x388] sm:$0xff]
  %v2904 = vld [vmem:[%s2789 + $0x390] sm:$0xff]
  %v2905 = vld [vmem:[%s2789 + $0x398] sm:$0xff]
  %v2906 = vld [vmem:[%s2789 + $0x3a0] sm:$0xff]
  %v2907 = vld [vmem:[%s2789 + $0x3a8] sm:$0xff]
  %v2908 = vld [vmem:[%s2789 + $0x3b0] sm:$0xff]
  %v2909 = vld [vmem:[%s2789 + $0x3b8] sm:$0xff]
  %v2910 = vld [vmem:[%s2789 + $0x3c0] sm:$0xff]
  %v2911 = vld [vmem:[%s2789 + $0x3c8] sm:$0xff]
  %v2912 = vld [vmem:[%s2789 + $0x3d0] sm:$0xff]
  %v2913 = vld [vmem:[%s2789 + $0x3d8] sm:$0xff]
  %v2914 = vld [vmem:[%s2789 + $0x3e0] sm:$0xff]
  %v2915 = vld [vmem:[%s2789 + $0x3e8] sm:$0xff]
  %v2916 = vld [vmem:[%s2789 + $0x3f0] sm:$0xff]
  %v2917 = vld [vmem:[%s2789 + $0x3f8] sm:$0xff]
  %v2918 = vld [vmem:[%s2789 + $0x400] sm:$0xff]
  %v2919 = vld [vmem:[%s2789 + $0x408] sm:$0xff]
  %v2920 = vld [vmem:[%s2789 + $0x410] sm:$0xff]
  %v2921 = vld [vmem:[%s2789 + $0x418] sm:$0xff]
  %v2922 = vld [vmem:[%s2789 + $0x420] sm:$0xff]
  %v2923 = vld [vmem:[%s2789 + $0x428] sm:$0xff]
  %v2924 = vld [vmem:[%s2789 + $0x430] sm:$0xff]
  %v2925 = vld [vmem:[%s2789 + $0x438] sm:$0xff]
  %v2927 = vsel %vm63, %v2781, 0
  %v2930 = vsel %vm63, %v2786, 0
  %2932 = vmatprep.subr.mxu0 %v2791
  %2933 = vmatpush1.msra.mxu0 %v2790
  %2934 = vmatprep.subr.mxu0 %v2793
  %2935 = vmatpush1.msra.mxu0 %v2792
  %2936 = vmatprep.subr.mxu0 %v2795
  %2937 = vmatpush1.msra.mxu0 %v2794
  %2938 = vmatprep.subr.mxu0 %v2797
  %2939 = vmatpush1.msra.mxu0 %v2796
  %2940 = vmatprep.subr.mxu0 %v2799
  %2941 = vmatpush1.msra.mxu0 %v2798
  %2942 = vmatprep.subr.mxu0 %v2801
  %2943 = vmatpush1.msra.mxu0 %v2800
  %2944 = vmatprep.subr.mxu0 %v2803
  %2945 = vmatpush1.msra.mxu0 %v2802
  %2946 = vmatprep.subr.mxu0 %v2805
  %2947 = vmatpush1.msra.mxu0 %v2804
  %2948 = vmatprep.subr.mxu0 %v2807
  %2949 = vmatpush1.msra.mxu0 %v2806
  %2950 = vmatprep.subr.mxu0 %v2809
  %2951 = vmatpush1.msra.mxu0 %v2808
  %2952 = vmatprep.subr.mxu0 %v2811
  %2953 = vmatpush1.msra.mxu0 %v2810
  %2954 = vmatprep.subr.mxu0 %v2813
  %2955 = vmatpush1.msra.mxu0 %v2812
  %2956 = vmatprep.subr.mxu0 %v2815
  %2957 = vmatpush1.msra.mxu0 %v2814
  %2958 = vmatprep.subr.mxu0 %v2817
  %2959 = vmatpush1.msra.mxu0 %v2816
  %2960 = vmatprep.subr.mxu0 %v2819
  %2961 = vmatpush1.msra.mxu0 %v2818
  %2962 = vmatprep.subr.mxu0 %v2821
  %2963 = vmatpush1.msra.mxu0 %v2820
  %2964 = vmatprep.subr.mxu0 %v2823
  %2965 = vmatpush1.msra.mxu0 %v2822
  %2966 = vmatprep.subr.mxu0 %v2825
  %2967 = vmatpush1.msra.mxu0 %v2824
  %2968 = vmatprep.subr.mxu0 %v2827
  %2969 = vmatpush1.msra.mxu0 %v2826
  %2970 = vmatprep.subr.mxu0 %v2829
  %2971 = vmatpush1.msra.mxu0 %v2828
  %2972 = vmatprep.subr.mxu0 %v2831
  %2973 = vmatpush1.msra.mxu0 %v2830
  %2974 = vmatprep.subr.mxu0 %v2833
  %2975 = vmatpush1.msra.mxu0 %v2832
  %2976 = vmatprep.subr.mxu0 %v2835
  %2977 = vmatpush1.msra.mxu0 %v2834
  %2978 = vmatprep.subr.mxu0 %v2837
  %2979 = vmatpush1.msra.mxu0 %v2836
  %2980 = vmatprep.subr.mxu0 %v2839
  %2981 = vmatpush1.msra.mxu0 %v2838
  %2982 = vmatprep.subr.mxu0 %v2841
  %2983 = vmatpush1.msra.mxu0 %v2840
  %2984 = vmatprep.subr.mxu0 %v2843
  %2985 = vmatpush1.msra.mxu0 %v2842
  %2986 = vmatprep.subr.mxu0 %v2845
  %2987 = vmatpush1.msra.mxu0 %v2844
  %2988 = vmatprep.subr.mxu0 %v2847
  %2989 = vmatpush1.msra.mxu0 %v2846
  %2990 = vmatprep.subr.mxu0 %v2849
  %2991 = vmatpush1.msra.mxu0 %v2848
  %2992 = vmatprep.subr.mxu0 %v2851
  %2993 = vmatpush1.msra.mxu0 %v2850
  %2994 = vmatprep.subr.mxu0 %v2853
  %2995 = vmatpush1.msra.mxu0 %v2852
  %2996 = vmatprep.mubr.f32.mxu0 %v2629
  %2997 = vmatmul.mubr.f32.gmra.mrb[0].mxu0 %v2627
  %v2998 = vpop.f32.mrb[0].mxu0
  %v2999 = vadd.f32 0.0, %v2998
  %v3000 = vpop.f32.mrb[0].mxu0
  %v3001 = vadd.f32 0.0, %v3000
  %3002 = vmatprep.mubr.f32.mxu0 %v2635
  %3003 = vmatmul.mubr.f32.gmra.mrb[0].mxu0 %v2633
  %v3004 = vpop.f32.mrb[0].mxu0
  %v3005 = vadd.f32 0.0, %v3004
  %v3006 = vpop.f32.mrb[0].mxu0
  %v3007 = vadd.f32 0.0, %v3006
  %3008 = vdwg.mxu0
  %3009 = vmatprep.subr.mxu0 %v2855
  %3010 = vmatpush1.msra.mxu0 %v2854
  %3011 = vmatprep.subr.mxu0 %v2857
  %3012 = vmatpush1.msra.mxu0 %v2856
  %3013 = vmatprep.subr.mxu0 %v2859
  %3014 = vmatpush1.msra.mxu0 %v2858
  %3015 = vmatprep.subr.mxu0 %v2861
  %3016 = vmatpush1.msra.mxu0 %v2860
  %3017 = vmatprep.subr.mxu0 %v2863
  %3018 = vmatpush1.msra.mxu0 %v2862
  %3019 = vmatprep.subr.mxu0 %v2865
  %3020 = vmatpush1.msra.mxu0 %v2864
  %3021 = vmatprep.subr.mxu0 %v2867
  %3022 = vmatpush1.msra.mxu0 %v2866
  %3023 = vmatprep.subr.mxu0 %v2869
  %3024 = vmatpush1.msra.mxu0 %v2868
  %3025 = vmatprep.subr.mxu0 %v2871
  %3026 = vmatpush1.msra.mxu0 %v2870
  %3027 = vmatprep.subr.mxu0 %v2873
  %3028 = vmatpush1.msra.mxu0 %v2872
  %3029 = vmatprep.subr.mxu0 %v2875
  %3030 = vmatpush1.msra.mxu0 %v2874
  %3031 = vmatprep.subr.mxu0 %v2877
  %3032 = vmatpush1.msra.mxu0 %v2876
  %3033 = vmatprep.subr.mxu0 %v2879
  %3034 = vmatpush1.msra.mxu0 %v2878
  %3035 = vmatprep.subr.mxu0 %v2881
  %3036 = vmatpush1.msra.mxu0 %v2880
  %3037 = vmatprep.subr.mxu0 %v2883
  %3038 = vmatpush1.msra.mxu0 %v2882
  %3039 = vmatprep.subr.mxu0 %v2885
  %3040 = vmatpush1.msra.mxu0 %v2884
  %3041 = vmatprep.subr.mxu0 %v2887
  %3042 = vmatpush1.msra.mxu0 %v2886
  %3043 = vmatprep.subr.mxu0 %v2889
  %3044 = vmatpush1.msra.mxu0 %v2888
  %3045 = vmatprep.subr.mxu0 %v2891
  %3046 = vmatpush1.msra.mxu0 %v2890
  %3047 = vmatprep.subr.mxu0 %v2893
  %3048 = vmatpush1.msra.mxu0 %v2892
  %3049 = vmatprep.subr.mxu0 %v2895
  %3050 = vmatpush1.msra.mxu0 %v2894
  %3051 = vmatprep.subr.mxu0 %v2897
  %3052 = vmatpush1.msra.mxu0 %v2896
  %3053 = vmatprep.subr.mxu0 %v2899
  %3054 = vmatpush1.msra.mxu0 %v2898
  %3055 = vmatprep.subr.mxu0 %v2901
  %3056 = vmatpush1.msra.mxu0 %v2900
  %3057 = vmatprep.subr.mxu0 %v2903
  %3058 = vmatpush1.msra.mxu0 %v2902
  %3059 = vmatprep.subr.mxu0 %v2905
  %3060 = vmatpush1.msra.mxu0 %v2904
  %3061 = vmatprep.subr.mxu0 %v2907
  %3062 = vmatpush1.msra.mxu0 %v2906
  %3063 = vmatprep.subr.mxu0 %v2909
  %3064 = vmatpush1.msra.mxu0 %v2908
  %3065 = vmatprep.subr.mxu0 %v2911
  %3066 = vmatpush1.msra.mxu0 %v2910
  %3067 = vmatprep.subr.mxu0 %v2913
  %3068 = vmatpush1.msra.mxu0 %v2912
  %3069 = vmatprep.subr.mxu0 %v2915
  %3070 = vmatpush1.msra.mxu0 %v2914
  %3071 = vmatprep.subr.mxu0 %v2917
  %3072 = vmatpush1.msra.mxu0 %v2916
  %3073 = vmatprep.mubr.f32.mxu0 %v2706
  %3074 = vmatmul.mubr.f32.gmra.mrb[0].mxu0 %v2704
  %v3075 = vpop.f32.mrb[0].mxu0
  %v3076 = vadd.f32 %v2999, %v3075
  %v3077 = vpop.f32.mrb[0].mxu0
  %v3078 = vadd.f32 %v3001, %v3077
  %3079 = vmatprep.mubr.f32.mxu0 %v2712
  %3080 = vmatmul.mubr.f32.gmra.mrb[0].mxu0 %v2710
  %v3081 = vpop.f32.mrb[0].mxu0
  %v3082 = vadd.f32 %v3005, %v3081
  %v3083 = vpop.f32.mrb[0].mxu0
  %v3084 = vadd.f32 %v3007, %v3083
  %3085 = vdwg.mxu0
  %3086 = vmatprep.subr.mxu0 %v2919
  %3087 = vmatpush1.msra.mxu0 %v2918
  %3088 = vmatprep.subr.mxu0 %v2921
  %3089 = vmatpush1.msra.mxu0 %v2920
  %3090 = vmatprep.subr.mxu0 %v2923
  %3091 = vmatpush1.msra.mxu0 %v2922
  %3092 = vmatprep.subr.mxu0 %v2925
  %3093 = vmatpush1.msra.mxu0 %v2924
  %3094 = vmatprep.subr.mxu0 0.0
  %3095 = vmatpush1.msra.mxu0 0.0
  %3096 = vmatprep.subr.mxu0 0.0
  %3097 = vmatpush1.msra.mxu0 0.0
  %3098 = vmatprep.subr.mxu0 0.0
  %3099 = vmatpush1.msra.mxu0 0.0
  %3100 = vmatprep.subr.mxu0 0.0
  %3101 = vmatpush1.msra.mxu0 0.0
  %3102 = vmatprep.subr.mxu0 0.0
  %3103 = vmatpush1.msra.mxu0 0.0
  %3104 = vmatprep.subr.mxu0 0.0
  %3105 = vmatpush1.msra.mxu0 0.0
  %3106 = vmatprep.subr.mxu0 0.0
  %3107 = vmatpush1.msra.mxu0 0.0
  %3108 = vmatprep.subr.mxu0 0.0
  %3109 = vmatpush1.msra.mxu0 0.0
  %3110 = vmatprep.subr.mxu0 0.0
  %3111 = vmatpush1.msra.mxu0 0.0
  %3112 = vmatprep.subr.mxu0 0.0
  %3113 = vmatpush1.msra.mxu0 0.0
  %3114 = vmatprep.subr.mxu0 0.0
  %3115 = vmatpush1.msra.mxu0 0.0
  %3116 = vmatprep.subr.mxu0 0.0
  %3117 = vmatpush1.msra.mxu0 0.0
  %3118 = vmatprep.subr.mxu0 0.0
  %3119 = vmatpush1.msra.mxu0 0.0
  %3120 = vmatprep.subr.mxu0 0.0
  %3121 = vmatpush1.msra.mxu0 0.0
  %3122 = vmatprep.subr.mxu0 0.0
  %3123 = vmatpush1.msra.mxu0 0.0
  %3124 = vmatprep.subr.mxu0 0.0
  %3125 = vmatpush1.msra.mxu0 0.0
  %3126 = vmatprep.subr.mxu0 0.0
  %3127 = vmatpush1.msra.mxu0 0.0
  %3128 = vmatprep.subr.mxu0 0.0
  %3129 = vmatpush1.msra.mxu0 0.0
  %3130 = vmatprep.subr.mxu0 0.0
  %3131 = vmatpush1.msra.mxu0 0.0
  %3132 = vmatprep.subr.mxu0 0.0
  %3133 = vmatpush1.msra.mxu0 0.0
  %3134 = vmatprep.subr.mxu0 0.0
  %3135 = vmatpush1.msra.mxu0 0.0
  %3136 = vmatprep.subr.mxu0 0.0
  %3137 = vmatpush1.msra.mxu0 0.0
  %3138 = vmatprep.subr.mxu0 0.0
  %3139 = vmatpush1.msra.mxu0 0.0
  %3140 = vmatprep.subr.mxu0 0.0
  %3141 = vmatpush1.msra.mxu0 0.0
  %3142 = vmatprep.subr.mxu0 0.0
  %3143 = vmatpush1.msra.mxu0 0.0
  %3144 = vmatprep.subr.mxu0 0.0
  %3145 = vmatpush1.msra.mxu0 0.0
  %3146 = vmatprep.subr.mxu0 0.0
  %3147 = vmatpush1.msra.mxu0 0.0
  %3148 = vmatprep.subr.mxu0 0.0
  %3149 = vmatpush1.msra.mxu0 0.0
  %3150 = vmatprep.mubr.f32.mxu0 0.0
  %3151 = vmatmul.mubr.f32.gmra.mrb[0].mxu0 %v2927
  %v3152 = vpop.f32.mrb[0].mxu0
  %v3153 = vadd.f32 %v3076, %v3152
  %v3154 = vpop.f32.mrb[0].mxu0
  %v3155 = vadd.f32 %v3078, %v3154
  %3156 = vmatprep.mubr.f32.mxu0 0.0
  %3157 = vmatmul.mubr.f32.gmra.mrb[0].mxu0 %v2930
  %v3158 = vpop.f32.mrb[0].mxu0
  %v3159 = vadd.f32 %v3082, %v3158
  %v3160 = vpop.f32.mrb[0].mxu0
  %v3161 = vadd.f32 %v3084, %v3160
  %3162 = vdwg.mxu0
  %v3163 = vadd.f32 %v2546, %v3153
  %v3164 = vadd.f32 %v2548, %v3155
  %v3165 = vadd.f32 %v2552, %v3159
  %v3166 = vadd.f32 %v2554, %v3161
  %v3167 = vld [vmem:[%s4] sm:$0x3]
  %v3169 = vlaneseq
  %v3170 = vshrl.u32 %v3169, 7
  %v3171 = vsub.s32 0, %v3170
  %v3172 = vrot.slane %v3167, %v3171
  %v3173 = vlaneseq
  %v3174 = vshrl.u32 %v3173, 7
  %v3175 = vsub.s32 1, %v3174
  %v3176 = vrot.slane %v3167, %v3175
  %v3179 = vadd.f32 %v3163, %v3172
  %v3180 = vadd.f32 %v3164, %v3176
  %v3181 = vadd.f32 %v3165, %v3172
  %v3182 = vadd.f32 %v3166, %v3176
  %v3183 = vsub.f32 0.0, %v3179
  %v3184 = vsub.f32 0.0, %v3180
  %v3185 = vsub.f32 0.0, %v3181
  %v3186 = vsub.f32 0.0, %v3182
  %v3187 = vmul.f32 %v3183, 1.442695
  %v3188 = vpow.pop %v3187
  %v3189 = vmul.f32 %v3184, 1.442695
  %v3190 = vpow.pop %v3189
  %v3191 = vmul.f32 %v3185, 1.442695
  %v3192 = vpow.pop %v3191
  %v3193 = vmul.f32 %v3186, 1.442695
  %v3194 = vpow.pop %v3193
  %v3195 = vadd.f32 %v3188, 1.0
  %v3196 = vadd.f32 %v3190, 1.0
  %v3197 = vadd.f32 %v3192, 1.0
  %v3198 = vadd.f32 %v3194, 1.0
  %v3199 = vrcp.pop %v3195
  %v3200 = vmul.f32 1.0, %v3199
  %v3201 = vrcp.pop %v3196
  %v3202 = vmul.f32 1.0, %v3201
  %v3203 = vrcp.pop %v3197
  %v3204 = vmul.f32 1.0, %v3203
  %v3205 = vrcp.pop %v3198
  %v3206 = vmul.f32 1.0, %v3205
  %vm3207 = vcmask 80896
  %v3208 = vsel %vm3207, %v60, 0
  %vm3210 = vcmask 1041408
  %v3212 = vsel %vm3210, %v3204, 0
  %v3215 = vsel %vm3210, %v3206, 0
  %3217 = vmatprep.subr.mxu0 %v3202
  %3218 = vmatpush1.msra.mxu0 %v3200
  %3219 = vmatprep.subr.mxu0 %v3215
  %3220 = vmatpush1.msra.mxu0 %v3212
  %3221 = vmatprep.subr.mxu0 0.0
  %3222 = vmatpush1.msra.mxu0 0.0
  %3223 = vmatprep.subr.mxu0 0.0
  %3224 = vmatpush1.msra.mxu0 0.0
  %3225 = vmatprep.subr.mxu0 0.0
  %3226 = vmatpush1.msra.mxu0 0.0
  %3227 = vmatprep.subr.mxu0 0.0
  %3228 = vmatpush1.msra.mxu0 0.0
  %3229 = vmatprep.subr.mxu0 0.0
  %3230 = vmatpush1.msra.mxu0 0.0
  %3231 = vmatprep.subr.mxu0 0.0
  %3232 = vmatpush1.msra.mxu0 0.0
  %3233 = vmatprep.subr.mxu0 0.0
  %3234 = vmatpush1.msra.mxu0 0.0
  %3235 = vmatprep.subr.mxu0 0.0
  %3236 = vmatpush1.msra.mxu0 0.0
  %3237 = vmatprep.subr.mxu0 0.0
  %3238 = vmatpush1.msra.mxu0 0.0
  %3239 = vmatprep.subr.mxu0 0.0
  %3240 = vmatpush1.msra.mxu0 0.0
  %3241 = vmatprep.subr.mxu0 0.0
  %3242 = vmatpush1.msra.mxu0 0.0
  %3243 = vmatprep.subr.mxu0 0.0
  %3244 = vmatpush1.msra.mxu0 0.0
  %3245 = vmatprep.subr.mxu0 0.0
  %3246 = vmatpush1.msra.mxu0 0.0
  %3247 = vmatprep.subr.mxu0 0.0
  %3248 = vmatpush1.msra.mxu0 0.0
  %3249 = vmatprep.subr.mxu0 0.0
  %3250 = vmatpush1.msra.mxu0 0.0
  %3251 = vmatprep.subr.mxu0 0.0
  %3252 = vmatpush1.msra.mxu0 0.0
  %3253 = vmatprep.subr.mxu0 0.0
  %3254 = vmatpush1.msra.mxu0 0.0
  %3255 = vmatprep.subr.mxu0 0.0
  %3256 = vmatpush1.msra.mxu0 0.0
  %3257 = vmatprep.subr.mxu0 0.0
  %3258 = vmatpush1.msra.mxu0 0.0
  %3259 = vmatprep.subr.mxu0 0.0
  %3260 = vmatpush1.msra.mxu0 0.0
  %3261 = vmatprep.subr.mxu0 0.0
  %3262 = vmatpush1.msra.mxu0 0.0
  %3263 = vmatprep.subr.mxu0 0.0
  %3264 = vmatpush1.msra.mxu0 0.0
  %3265 = vmatprep.subr.mxu0 0.0
  %3266 = vmatpush1.msra.mxu0 0.0
  %3267 = vmatprep.subr.mxu0 0.0
  %3268 = vmatpush1.msra.mxu0 0.0
  %3269 = vmatprep.subr.mxu0 0.0
  %3270 = vmatpush1.msra.mxu0 0.0
  %3271 = vmatprep.subr.mxu0 0.0
  %3272 = vmatpush1.msra.mxu0 0.0
  %3273 = vmatprep.subr.mxu0 0.0
  %3274 = vmatpush1.msra.mxu0 0.0
  %3275 = vmatprep.subr.mxu0 0.0
  %3276 = vmatpush1.msra.mxu0 0.0
  %3277 = vmatprep.subr.mxu0 0.0
  %3278 = vmatpush1.msra.mxu0 0.0
  %3279 = vmatprep.subr.mxu0 0.0
  %3280 = vmatpush1.msra.mxu0 0.0
  %3281 = vmatprep.mubr.f32.mxu0 0.0
  %3282 = vmatmul.mubr.f32.gmra.mrb[0].mxu0 %v3208
  %v3283 = vpop.f32.mrb[0].mxu0
  %v3284 = vadd.f32 0.0, %v3283
  %v3285 = vpop.f32.mrb[0].mxu0
  %v3286 = vadd.f32 0.0, %v3285
  %3287 = vdwg.mxu0
  %v3288 = vld [vmem:[%s5] sm:$0xff]
  %v3289 = vld [vmem:[%s5 + $0x8] sm:$0xff]
  %v3290 = vld [vmem:[%s5 + $0x10] sm:$0xff]
  %v3291 = vld [vmem:[%s5 + $0x18] sm:$0xff]
  %v3292 = vld [vmem:[%s5 + $0x20] sm:$0xff]
  %v3293 = vld [vmem:[%s5 + $0x28] sm:$0xff]
  %v3294 = vld [vmem:[%s5 + $0x30] sm:$0xff]
  %v3295 = vld [vmem:[%s5 + $0x38] sm:$0xff]
  %v3296 = vld [vmem:[%s5 + $0x40] sm:$0xff]
  %v3297 = vld [vmem:[%s5 + $0x48] sm:$0xff]
  %v3298 = vld [vmem:[%s5 + $0x50] sm:$0xff]
  %v3299 = vld [vmem:[%s5 + $0x58] sm:$0xff]
  %v3300 = vld [vmem:[%s5 + $0x60] sm:$0xff]
  %v3301 = vld [vmem:[%s5 + $0x68] sm:$0xff]
  %v3302 = vld [vmem:[%s5 + $0x70] sm:$0xff]
  %v3303 = vld [vmem:[%s5 + $0x78] sm:$0xff]
  %v3304 = vld [vmem:[%s5 + $0x80] sm:$0xff]
  %v3305 = vld [vmem:[%s5 + $0x88] sm:$0xff]
  %v3306 = vld [vmem:[%s5 + $0x90] sm:$0xff]
  %v3307 = vld [vmem:[%s5 + $0x98] sm:$0xff]
  %v3308 = vsel %vm3207, %v182, 0
  %3310 = vmatprep.subr.mxu0 %v3202
  %3311 = vmatpush1.msra.mxu0 %v3200
  %3312 = vmatprep.subr.mxu0 %v3215
  %3313 = vmatpush1.msra.mxu0 %v3212
  %3314 = vmatprep.subr.mxu0 0.0
  %3315 = vmatpush1.msra.mxu0 0.0
  %3316 = vmatprep.subr.mxu0 0.0
  %3317 = vmatpush1.msra.mxu0 0.0
  %3318 = vmatprep.subr.mxu0 0.0
  %3319 = vmatpush1.msra.mxu0 0.0
  %3320 = vmatprep.subr.mxu0 0.0
  %3321 = vmatpush1.msra.mxu0 0.0
  %3322 = vmatprep.subr.mxu0 0.0
  %3323 = vmatpush1.msra.mxu0 0.0
  %3324 = vmatprep.subr.mxu0 0.0
  %3325 = vmatpush1.msra.mxu0 0.0
  %3326 = vmatprep.subr.mxu0 0.0
  %3327 = vmatpush1.msra.mxu0 0.0
  %3328 = vmatprep.subr.mxu0 0.0
  %3329 = vmatpush1.msra.mxu0 0.0
  %3330 = vmatprep.subr.mxu0 0.0
  %3331 = vmatpush1.msra.mxu0 0.0
  %3332 = vmatprep.subr.mxu0 0.0
  %3333 = vmatpush1.msra.mxu0 0.0
  %3334 = vmatprep.subr.mxu0 0.0
  %3335 = vmatpush1.msra.mxu0 0.0
  %3336 = vmatprep.subr.mxu0 0.0
  %3337 = vmatpush1.msra.mxu0 0.0
  %3338 = vmatprep.subr.mxu0 0.0
  %3339 = vmatpush1.msra.mxu0 0.0
  %3340 = vmatprep.subr.mxu0 0.0
  %3341 = vmatpush1.msra.mxu0 0.0
  %3342 = vmatprep.subr.mxu0 0.0
  %3343 = vmatpush1.msra.mxu0 0.0
  %3344 = vmatprep.subr.mxu0 0.0
  %3345 = vmatpush1.msra.mxu0 0.0
  %3346 = vmatprep.subr.mxu0 0.0
  %3347 = vmatpush1.msra.mxu0 0.0
  %3348 = vmatprep.subr.mxu0 0.0
  %3349 = vmatpush1.msra.mxu0 0.0
  %3350 = vmatprep.subr.mxu0 0.0
  %3351 = vmatpush1.msra.mxu0 0.0
  %3352 = vmatprep.subr.mxu0 0.0
  %3353 = vmatpush1.msra.mxu0 0.0
  %3354 = vmatprep.subr.mxu0 0.0
  %3355 = vmatpush1.msra.mxu0 0.0
  %3356 = vmatprep.subr.mxu0 0.0
  %3357 = vmatpush1.msra.mxu0 0.0
  %3358 = vmatprep.subr.mxu0 0.0
  %3359 = vmatpush1.msra.mxu0 0.0
  %3360 = vmatprep.subr.mxu0 0.0
  %3361 = vmatpush1.msra.mxu0 0.0
  %3362 = vmatprep.subr.mxu0 0.0
  %3363 = vmatpush1.msra.mxu0 0.0
  %3364 = vmatprep.subr.mxu0 0.0
  %3365 = vmatpush1.msra.mxu0 0.0
  %3366 = vmatprep.subr.mxu0 0.0
  %3367 = vmatpush1.msra.mxu0 0.0
  %3368 = vmatprep.subr.mxu0 0.0
  %3369 = vmatpush1.msra.mxu0 0.0
  %3370 = vmatprep.subr.mxu0 0.0
  %3371 = vmatpush1.msra.mxu0 0.0
  %3372 = vmatprep.subr.mxu0 0.0
  %3373 = vmatpush1.msra.mxu0 0.0
  %3374 = vmatprep.mubr.f32.mxu0 0.0
  %3375 = vmatmul.mubr.f32.gmra.mrb[0].mxu0 %v3308
  %v3376 = vpop.f32.mrb[0].mxu0
  %v3377 = vadd.f32 0.0, %v3376
  %v3378 = vpop.f32.mrb[0].mxu0
  %v3379 = vadd.f32 0.0, %v3378
  %3380 = vdwg.mxu0
  %s3381 = scalar_lea.vmem %s5, 160
  %v3382 = vld [vmem:[%s3381] sm:$0xff]
  %v3383 = vld [vmem:[%s3381 + $0x8] sm:$0xff]
  %v3384 = vld [vmem:[%s3381 + $0x10] sm:$0xff]
  %v3385 = vld [vmem:[%s3381 + $0x18] sm:$0xff]
  %v3386 = vld [vmem:[%s3381 + $0x20] sm:$0xff]
  %v3387 = vld [vmem:[%s3381 + $0x28] sm:$0xff]
  %v3388 = vld [vmem:[%s3381 + $0x30] sm:$0xff]
  %v3389 = vld [vmem:[%s3381 + $0x38] sm:$0xff]
  %v3390 = vld [vmem:[%s3381 + $0x40] sm:$0xff]
  %v3391 = vld [vmem:[%s3381 + $0x48] sm:$0xff]
  %v3392 = vld [vmem:[%s3381 + $0x50] sm:$0xff]
  %v3393 = vld [vmem:[%s3381 + $0x58] sm:$0xff]
  %v3394 = vld [vmem:[%s3381 + $0x60] sm:$0xff]
  %v3395 = vld [vmem:[%s3381 + $0x68] sm:$0xff]
  %v3396 = vld [vmem:[%s3381 + $0x70] sm:$0xff]
  %v3397 = vld [vmem:[%s3381 + $0x78] sm:$0xff]
  %v3398 = vld [vmem:[%s3381 + $0x80] sm:$0xff]
  %v3399 = vld [vmem:[%s3381 + $0x88] sm:$0xff]
  %v3400 = vld [vmem:[%s3381 + $0x90] sm:$0xff]
  %v3401 = vld [vmem:[%s3381 + $0x98] sm:$0xff]
  %v3403 = vsel %vm63, %v3379, 0
  %3405 = vmatprep.subr.mxu0 0.0
  %3406 = vmatpush1.msra.mxu0 %v3382
  %3407 = vmatprep.subr.mxu0 0.0
  %3408 = vmatpush1.msra.mxu0 %v3383
  %3409 = vmatprep.subr.mxu0 0.0
  %3410 = vmatpush1.msra.mxu0 %v3384
  %3411 = vmatprep.subr.mxu0 0.0
  %3412 = vmatpush1.msra.mxu0 %v3385
  %3413 = vmatprep.subr.mxu0 0.0
  %3414 = vmatpush1.msra.mxu0 %v3386
  %3415 = vmatprep.subr.mxu0 0.0
  %3416 = vmatpush1.msra.mxu0 %v3387
  %3417 = vmatprep.subr.mxu0 0.0
  %3418 = vmatpush1.msra.mxu0 %v3388
  %3419 = vmatprep.subr.mxu0 0.0
  %3420 = vmatpush1.msra.mxu0 %v3389
  %3421 = vmatprep.subr.mxu0 0.0
  %3422 = vmatpush1.msra.mxu0 %v3390
  %3423 = vmatprep.subr.mxu0 0.0
  %3424 = vmatpush1.msra.mxu0 %v3391
  %3425 = vmatprep.subr.mxu0 0.0
  %3426 = vmatpush1.msra.mxu0 %v3392
  %3427 = vmatprep.subr.mxu0 0.0
  %3428 = vmatpush1.msra.mxu0 %v3393
  %3429 = vmatprep.subr.mxu0 0.0
  %3430 = vmatpush1.msra.mxu0 %v3394
  %3431 = vmatprep.subr.mxu0 0.0
  %3432 = vmatpush1.msra.mxu0 %v3395
  %3433 = vmatprep.subr.mxu0 0.0
  %3434 = vmatpush1.msra.mxu0 %v3396
  %3435 = vmatprep.subr.mxu0 0.0
  %3436 = vmatpush1.msra.mxu0 %v3397
  %3437 = vmatprep.subr.mxu0 0.0
  %3438 = vmatpush1.msra.mxu0 %v3398
  %3439 = vmatprep.subr.mxu0 0.0
  %3440 = vmatpush1.msra.mxu0 %v3399
  %3441 = vmatprep.subr.mxu0 0.0
  %3442 = vmatpush1.msra.mxu0 %v3400
  %3443 = vmatprep.subr.mxu0 0.0
  %3444 = vmatpush1.msra.mxu0 %v3401
  %3445 = vmatprep.subr.mxu0 0.0
  %3446 = vmatpush1.msra.mxu0 0.0
  %3447 = vmatprep.subr.mxu0 0.0
  %3448 = vmatpush1.msra.mxu0 0.0
  %3449 = vmatprep.subr.mxu0 0.0
  %3450 = vmatpush1.msra.mxu0 0.0
  %3451 = vmatprep.subr.mxu0 0.0
  %3452 = vmatpush1.msra.mxu0 0.0
  %3453 = vmatprep.subr.mxu0 0.0
  %3454 = vmatpush1.msra.mxu0 0.0
  %3455 = vmatprep.subr.mxu0 0.0
  %3456 = vmatpush1.msra.mxu0 0.0
  %3457 = vmatprep.subr.mxu0 0.0
  %3458 = vmatpush1.msra.mxu0 0.0
  %3459 = vmatprep.subr.mxu0 0.0
  %3460 = vmatpush1.msra.mxu0 0.0
  %3461 = vmatprep.subr.mxu0 0.0
  %3462 = vmatpush1.msra.mxu0 0.0
  %3463 = vmatprep.subr.mxu0 0.0
  %3464 = vmatpush1.msra.mxu0 0.0
  %3465 = vmatprep.subr.mxu0 0.0
  %3466 = vmatpush1.msra.mxu0 0.0
  %3467 = vmatprep.subr.mxu0 0.0
  %3468 = vmatpush1.msra.mxu0 0.0
  %3469 = vmatprep.mubr.f32.mxu0 %v3403
  %3470 = vmatmul.mubr.f32.gmra.mrb[0].mxu0 %v3377
  %v3471 = vpop.f32.mrb[0].mxu0
  %v3472 = vadd.f32 0.0, %v3471
  %v3473 = vpop.f32.mrb[0].mxu0
  %3474 = vdwg.mxu0
  %v3476 = vsel %vm63, %v3286, 0
  %3478 = vmatprep.subr.mxu0 0.0
  %3479 = vmatpush1.msra.mxu0 %v3288
  %3480 = vmatprep.subr.mxu0 0.0
  %3481 = vmatpush1.msra.mxu0 %v3289
  %3482 = vmatprep.subr.mxu0 0.0
  %3483 = vmatpush1.msra.mxu0 %v3290
  %3484 = vmatprep.subr.mxu0 0.0
  %3485 = vmatpush1.msra.mxu0 %v3291
  %3486 = vmatprep.subr.mxu0 0.0
  %3487 = vmatpush1.msra.mxu0 %v3292
  %3488 = vmatprep.subr.mxu0 0.0
  %3489 = vmatpush1.msra.mxu0 %v3293
  %3490 = vmatprep.subr.mxu0 0.0
  %3491 = vmatpush1.msra.mxu0 %v3294
  %3492 = vmatprep.subr.mxu0 0.0
  %3493 = vmatpush1.msra.mxu0 %v3295
  %3494 = vmatprep.subr.mxu0 0.0
  %3495 = vmatpush1.msra.mxu0 %v3296
  %3496 = vmatprep.subr.mxu0 0.0
  %3497 = vmatpush1.msra.mxu0 %v3297
  %3498 = vmatprep.subr.mxu0 0.0
  %3499 = vmatpush1.msra.mxu0 %v3298
  %3500 = vmatprep.subr.mxu0 0.0
  %3501 = vmatpush1.msra.mxu0 %v3299
  %3502 = vmatprep.subr.mxu0 0.0
  %3503 = vmatpush1.msra.mxu0 %v3300
  %3504 = vmatprep.subr.mxu0 0.0
  %3505 = vmatpush1.msra.mxu0 %v3301
  %3506 = vmatprep.subr.mxu0 0.0
  %3507 = vmatpush1.msra.mxu0 %v3302
  %3508 = vmatprep.subr.mxu0 0.0
  %3509 = vmatpush1.msra.mxu0 %v3303
  %3510 = vmatprep.subr.mxu0 0.0
  %3511 = vmatpush1.msra.mxu0 %v3304
  %3512 = vmatprep.subr.mxu0 0.0
  %3513 = vmatpush1.msra.mxu0 %v3305
  %3514 = vmatprep.subr.mxu0 0.0
  %3515 = vmatpush1.msra.mxu0 %v3306
  %3516 = vmatprep.subr.mxu0 0.0
  %3517 = vmatpush1.msra.mxu0 %v3307
  %3518 = vmatprep.subr.mxu0 0.0
  %3519 = vmatpush1.msra.mxu0 0.0
  %3520 = vmatprep.subr.mxu0 0.0
  %3521 = vmatpush1.msra.mxu0 0.0
  %3522 = vmatprep.subr.mxu0 0.0
  %3523 = vmatpush1.msra.mxu0 0.0
  %3524 = vmatprep.subr.mxu0 0.0
  %3525 = vmatpush1.msra.mxu0 0.0
  %3526 = vmatprep.subr.mxu0 0.0
  %3527 = vmatpush1.msra.mxu0 0.0
  %3528 = vmatprep.subr.mxu0 0.0
  %3529 = vmatpush1.msra.mxu0 0.0
  %3530 = vmatprep.subr.mxu0 0.0
  %3531 = vmatpush1.msra.mxu0 0.0
  %3532 = vmatprep.subr.mxu0 0.0
  %3533 = vmatpush1.msra.mxu0 0.0
  %3534 = vmatprep.subr.mxu0 0.0
  %3535 = vmatpush1.msra.mxu0 0.0
  %3536 = vmatprep.subr.mxu0 0.0
  %3537 = vmatpush1.msra.mxu0 0.0
  %3538 = vmatprep.subr.mxu0 0.0
  %3539 = vmatpush1.msra.mxu0 0.0
  %3540 = vmatprep.subr.mxu0 0.0
  %3541 = vmatpush1.msra.mxu0 0.0
  %3542 = vmatprep.mubr.f32.mxu0 %v3476
  %3543 = vmatmul.mubr.f32.gmra.mrb[0].mxu0 %v3284
  %v3544 = vpop.f32.mrb[0].mxu0
  %v3545 = vadd.f32 %v3472, %v3544
  %v3546 = vpop.f32.mrb[0].mxu0
  %3547 = vdwg.mxu0
  %v3548 = vsel %vm3207, %v811, 0
  %3550 = vmatprep.subr.mxu0 %v3202
  %3551 = vmatpush1.msra.mxu0 %v3200
  %3552 = vmatprep.subr.mxu0 %v3215
  %3553 = vmatpush1.msra.mxu0 %v3212
  %3554 = vmatprep.subr.mxu0 0.0
  %3555 = vmatpush1.msra.mxu0 0.0
  %3556 = vmatprep.subr.mxu0 0.0
  %3557 = vmatpush1.msra.mxu0 0.0
  %3558 = vmatprep.subr.mxu0 0.0
  %3559 = vmatpush1.msra.mxu0 0.0
  %3560 = vmatprep.subr.mxu0 0.0
  %3561 = vmatpush1.msra.mxu0 0.0
  %3562 = vmatprep.subr.mxu0 0.0
  %3563 = vmatpush1.msra.mxu0 0.0
  %3564 = vmatprep.subr.mxu0 0.0
  %3565 = vmatpush1.msra.mxu0 0.0
  %3566 = vmatprep.subr.mxu0 0.0
  %3567 = vmatpush1.msra.mxu0 0.0
  %3568 = vmatprep.subr.mxu0 0.0
  %3569 = vmatpush1.msra.mxu0 0.0
  %3570 = vmatprep.subr.mxu0 0.0
  %3571 = vmatpush1.msra.mxu0 0.0
  %3572 = vmatprep.subr.mxu0 0.0
  %3573 = vmatpush1.msra.mxu0 0.0
  %3574 = vmatprep.subr.mxu0 0.0
  %3575 = vmatpush1.msra.mxu0 0.0
  %3576 = vmatprep.subr.mxu0 0.0
  %3577 = vmatpush1.msra.mxu0 0.0
  %3578 = vmatprep.subr.mxu0 0.0
  %3579 = vmatpush1.msra.mxu0 0.0
  %3580 = vmatprep.subr.mxu0 0.0
  %3581 = vmatpush1.msra.mxu0 0.0
  %3582 = vmatprep.subr.mxu0 0.0
  %3583 = vmatpush1.msra.mxu0 0.0
  %3584 = vmatprep.subr.mxu0 0.0
  %3585 = vmatpush1.msra.mxu0 0.0
  %3586 = vmatprep.subr.mxu0 0.0
  %3587 = vmatpush1.msra.mxu0 0.0
  %3588 = vmatprep.subr.mxu0 0.0
  %3589 = vmatpush1.msra.mxu0 0.0
  %3590 = vmatprep.subr.mxu0 0.0
  %3591 = vmatpush1.msra.mxu0 0.0
  %3592 = vmatprep.subr.mxu0 0.0
  %3593 = vmatpush1.msra.mxu0 0.0
  %3594 = vmatprep.subr.mxu0 0.0
  %3595 = vmatpush1.msra.mxu0 0.0
  %3596 = vmatprep.subr.mxu0 0.0
  %3597 = vmatpush1.msra.mxu0 0.0
  %3598 = vmatprep.subr.mxu0 0.0
  %3599 = vmatpush1.msra.mxu0 0.0
  %3600 = vmatprep.subr.mxu0 0.0
  %3601 = vmatpush1.msra.mxu0 0.0
  %3602 = vmatprep.subr.mxu0 0.0
  %3603 = vmatpush1.msra.mxu0 0.0
  %3604 = vmatprep.subr.mxu0 0.0
  %3605 = vmatpush1.msra.mxu0 0.0
  %3606 = vmatprep.subr.mxu0 0.0
  %3607 = vmatpush1.msra.mxu0 0.0
  %3608 = vmatprep.subr.mxu0 0.0
  %3609 = vmatpush1.msra.mxu0 0.0
  %3610 = vmatprep.subr.mxu0 0.0
  %3611 = vmatpush1.msra.mxu0 0.0
  %3612 = vmatprep.subr.mxu0 0.0
  %3613 = vmatpush1.msra.mxu0 0.0
  %3614 = vmatprep.mubr.f32.mxu0 0.0
  %3615 = vmatmul.mubr.f32.gmra.mrb[0].mxu0 %v3548
  %v3616 = vpop.f32.mrb[0].mxu0
  %v3617 = vadd.f32 0.0, %v3616
  %v3618 = vpop.f32.mrb[0].mxu0
  %v3619 = vadd.f32 0.0, %v3618
  %3620 = vdwg.mxu0
  %s3621 = scalar_lea.vmem %s5, 320
  %v3622 = vld [vmem:[%s3621] sm:$0xff]
  %v3623 = vld [vmem:[%s3621 + $0x8] sm:$0xff]
  %v3624 = vld [vmem:[%s3621 + $0x10] sm:$0xff]
  %v3625 = vld [vmem:[%s3621 + $0x18] sm:$0xff]
  %v3626 = vld [vmem:[%s3621 + $0x20] sm:$0xff]
  %v3627 = vld [vmem:[%s3621 + $0x28] sm:$0xff]
  %v3628 = vld [vmem:[%s3621 + $0x30] sm:$0xff]
  %v3629 = vld [vmem:[%s3621 + $0x38] sm:$0xff]
  %v3630 = vld [vmem:[%s3621 + $0x40] sm:$0xff]
  %v3631 = vld [vmem:[%s3621 + $0x48] sm:$0xff]
  %v3632 = vld [vmem:[%s3621 + $0x50] sm:$0xff]
  %v3633 = vld [vmem:[%s3621 + $0x58] sm:$0xff]
  %v3634 = vld [vmem:[%s3621 + $0x60] sm:$0xff]
  %v3635 = vld [vmem:[%s3621 + $0x68] sm:$0xff]
  %v3636 = vld [vmem:[%s3621 + $0x70] sm:$0xff]
  %v3637 = vld [vmem:[%s3621 + $0x78] sm:$0xff]
  %v3638 = vld [vmem:[%s3621 + $0x80] sm:$0xff]
  %v3639 = vld [vmem:[%s3621 + $0x88] sm:$0xff]
  %v3640 = vld [vmem:[%s3621 + $0x90] sm:$0xff]
  %v3641 = vld [vmem:[%s3621 + $0x98] sm:$0xff]
  %v3643 = vsel %vm63, %v3619, 0
  %3645 = vmatprep.subr.mxu0 0.0
  %3646 = vmatpush1.msra.mxu0 %v3622
  %3647 = vmatprep.subr.mxu0 0.0
  %3648 = vmatpush1.msra.mxu0 %v3623
  %3649 = vmatprep.subr.mxu0 0.0
  %3650 = vmatpush1.msra.mxu0 %v3624
  %3651 = vmatprep.subr.mxu0 0.0
  %3652 = vmatpush1.msra.mxu0 %v3625
  %3653 = vmatprep.subr.mxu0 0.0
  %3654 = vmatpush1.msra.mxu0 %v3626
  %3655 = vmatprep.subr.mxu0 0.0
  %3656 = vmatpush1.msra.mxu0 %v3627
  %3657 = vmatprep.subr.mxu0 0.0
  %3658 = vmatpush1.msra.mxu0 %v3628
  %3659 = vmatprep.subr.mxu0 0.0
  %3660 = vmatpush1.msra.mxu0 %v3629
  %3661 = vmatprep.subr.mxu0 0.0
  %3662 = vmatpush1.msra.mxu0 %v3630
  %3663 = vmatprep.subr.mxu0 0.0
  %3664 = vmatpush1.msra.mxu0 %v3631
  %3665 = vmatprep.subr.mxu0 0.0
  %3666 = vmatpush1.msra.mxu0 %v3632
  %3667 = vmatprep.subr.mxu0 0.0
  %3668 = vmatpush1.msra.mxu0 %v3633
  %3669 = vmatprep.subr.mxu0 0.0
  %3670 = vmatpush1.msra.mxu0 %v3634
  %3671 = vmatprep.subr.mxu0 0.0
  %3672 = vmatpush1.msra.mxu0 %v3635
  %3673 = vmatprep.subr.mxu0 0.0
  %3674 = vmatpush1.msra.mxu0 %v3636
  %3675 = vmatprep.subr.mxu0 0.0
  %3676 = vmatpush1.msra.mxu0 %v3637
  %3677 = vmatprep.subr.mxu0 0.0
  %3678 = vmatpush1.msra.mxu0 %v3638
  %3679 = vmatprep.subr.mxu0 0.0
  %3680 = vmatpush1.msra.mxu0 %v3639
  %3681 = vmatprep.subr.mxu0 0.0
  %3682 = vmatpush1.msra.mxu0 %v3640
  %3683 = vmatprep.subr.mxu0 0.0
  %3684 = vmatpush1.msra.mxu0 %v3641
  %3685 = vmatprep.subr.mxu0 0.0
  %3686 = vmatpush1.msra.mxu0 0.0
  %3687 = vmatprep.subr.mxu0 0.0
  %3688 = vmatpush1.msra.mxu0 0.0
  %3689 = vmatprep.subr.mxu0 0.0
  %3690 = vmatpush1.msra.mxu0 0.0
  %3691 = vmatprep.subr.mxu0 0.0
  %3692 = vmatpush1.msra.mxu0 0.0
  %3693 = vmatprep.subr.mxu0 0.0
  %3694 = vmatpush1.msra.mxu0 0.0
  %3695 = vmatprep.subr.mxu0 0.0
  %3696 = vmatpush1.msra.mxu0 0.0
  %3697 = vmatprep.subr.mxu0 0.0
  %3698 = vmatpush1.msra.mxu0 0.0
  %3699 = vmatprep.subr.mxu0 0.0
  %3700 = vmatpush1.msra.mxu0 0.0
  %3701 = vmatprep.subr.mxu0 0.0
  %3702 = vmatpush1.msra.mxu0 0.0
  %3703 = vmatprep.subr.mxu0 0.0
  %3704 = vmatpush1.msra.mxu0 0.0
  %3705 = vmatprep.subr.mxu0 0.0
  %3706 = vmatpush1.msra.mxu0 0.0
  %3707 = vmatprep.subr.mxu0 0.0
  %3708 = vmatpush1.msra.mxu0 0.0
  %3709 = vmatprep.mubr.f32.mxu0 %v3643
  %3710 = vmatmul.mubr.f32.gmra.mrb[0].mxu0 %v3617
  %v3711 = vpop.f32.mrb[0].mxu0
  %v3712 = vadd.f32 0.0, %v3711
  %v3713 = vpop.f32.mrb[0].mxu0
  %3714 = vdwg.mxu0
  %v3715 = vadd.f32 %v3545, %v3712
  %v3716 = vld [vmem:[%s6] sm:$0x1]
  %v3718 = vlaneseq
  %v3719 = vshrl.u32 %v3718, 7
  %v3720 = vsub.s32 0, %v3719
  %v3721 = vrot.slane %v3716, %v3720
  %v3723 = vadd.f32 %v3715, %v3721
  %v3724 = vsub.f32 0.0, %v3723
  %v3725 = vmul.f32 %v3724, 1.442695
  %v3726 = vpow.pop %v3725
  %v3727 = vadd.f32 %v3726, 1.0
  %v3728 = vrcp.pop %v3727
  %v3729 = vmul.f32 1.0, %v3728
  %vm3730 = vcmask 48128
  %v3731 = vsel %vm3730, %v60, 0
  %vm3733 = vcmask 1045504
  %v3735 = vsel %vm3733, %v3729, 0
  %3737 = vmatprep.subr.mxu0 0.0
  %3738 = vmatpush1.msra.mxu0 %v3735
  %3739 = vmatprep.subr.mxu0 0.0
  %3740 = vmatpush1.msra.mxu0 0.0
  %3741 = vmatprep.subr.mxu0 0.0
  %3742 = vmatpush1.msra.mxu0 0.0
  %3743 = vmatprep.subr.mxu0 0.0
  %3744 = vmatpush1.msra.mxu0 0.0
  %3745 = vmatprep.subr.mxu0 0.0
  %3746 = vmatpush1.msra.mxu0 0.0
  %3747 = vmatprep.subr.mxu0 0.0
  %3748 = vmatpush1.msra.mxu0 0.0
  %3749 = vmatprep.subr.mxu0 0.0
  %3750 = vmatpush1.msra.mxu0 0.0
  %3751 = vmatprep.subr.mxu0 0.0
  %3752 = vmatpush1.msra.mxu0 0.0
  %3753 = vmatprep.subr.mxu0 0.0
  %3754 = vmatpush1.msra.mxu0 0.0
  %3755 = vmatprep.subr.mxu0 0.0
  %3756 = vmatpush1.msra.mxu0 0.0
  %3757 = vmatprep.subr.mxu0 0.0
  %3758 = vmatpush1.msra.mxu0 0.0
  %3759 = vmatprep.subr.mxu0 0.0
  %3760 = vmatpush1.msra.mxu0 0.0
  %3761 = vmatprep.subr.mxu0 0.0
  %3762 = vmatpush1.msra.mxu0 0.0
  %3763 = vmatprep.subr.mxu0 0.0
  %3764 = vmatpush1.msra.mxu0 0.0
  %3765 = vmatprep.subr.mxu0 0.0
  %3766 = vmatpush1.msra.mxu0 0.0
  %3767 = vmatprep.subr.mxu0 0.0
  %3768 = vmatpush1.msra.mxu0 0.0
  %3769 = vmatprep.subr.mxu0 0.0
  %3770 = vmatpush1.msra.mxu0 0.0
  %3771 = vmatprep.subr.mxu0 0.0
  %3772 = vmatpush1.msra.mxu0 0.0
  %3773 = vmatprep.subr.mxu0 0.0
  %3774 = vmatpush1.msra.mxu0 0.0
  %3775 = vmatprep.subr.mxu0 0.0
  %3776 = vmatpush1.msra.mxu0 0.0
  %3777 = vmatprep.subr.mxu0 0.0
  %3778 = vmatpush1.msra.mxu0 0.0
  %3779 = vmatprep.subr.mxu0 0.0
  %3780 = vmatpush1.msra.mxu0 0.0
  %3781 = vmatprep.subr.mxu0 0.0
  %3782 = vmatpush1.msra.mxu0 0.0
  %3783 = vmatprep.subr.mxu0 0.0
  %3784 = vmatpush1.msra.mxu0 0.0
  %3785 = vmatprep.subr.mxu0 0.0
  %3786 = vmatpush1.msra.mxu0 0.0
  %3787 = vmatprep.subr.mxu0 0.0
  %3788 = vmatpush1.msra.mxu0 0.0
  %3789 = vmatprep.subr.mxu0 0.0
  %3790 = vmatpush1.msra.mxu0 0.0
  %3791 = vmatprep.subr.mxu0 0.0
  %3792 = vmatpush1.msra.mxu0 0.0
  %3793 = vmatprep.subr.mxu0 0.0
  %3794 = vmatpush1.msra.mxu0 0.0
  %3795 = vmatprep.subr.mxu0 0.0
  %3796 = vmatpush1.msra.mxu0 0.0
  %3797 = vmatprep.subr.mxu0 0.0
  %3798 = vmatpush1.msra.mxu0 0.0
  %3799 = vmatprep.subr.mxu0 0.0
  %3800 = vmatpush1.msra.mxu0 0.0
  %3801 = vmatprep.mubr.f32.mxu0 0.0
  %3802 = vmatmul.mubr.f32.gmra.mrb[0].mxu0 %v3731
  %v3803 = vpop.f32.mrb[0].mxu0
  %v3804 = vadd.f32 0.0, %v3803
  %v3805 = vpop.f32.mrb[0].mxu0
  %3806 = vdwg.mxu0
  %v3807 = vld [vmem:[%s7] sm:$0xff]
  %v3808 = vld [vmem:[%s7 + $0x8] sm:$0xff]
  %v3809 = vld [vmem:[%s7 + $0x10] sm:$0xff]
  %v3810 = vld [vmem:[%s7 + $0x18] sm:$0xff]
  %v3811 = vld [vmem:[%s7 + $0x20] sm:$0xff]
  %v3812 = vld [vmem:[%s7 + $0x28] sm:$0xff]
  %v3813 = vld [vmem:[%s7 + $0x30] sm:$0xff]
  %v3814 = vld [vmem:[%s7 + $0x38] sm:$0xff]
  %v3815 = vld [vmem:[%s7 + $0x40] sm:$0xff]
  %v3816 = vld [vmem:[%s7 + $0x48] sm:$0xff]
  %v3817 = vld [vmem:[%s7 + $0x50] sm:$0xff]
  %v3818 = vld [vmem:[%s7 + $0x58] sm:$0xff]
  %v3819 = vsel %vm3730, %v182, 0
  %3821 = vmatprep.subr.mxu0 0.0
  %3822 = vmatpush1.msra.mxu0 %v3735
  %3823 = vmatprep.subr.mxu0 0.0
  %3824 = vmatpush1.msra.mxu0 0.0
  %3825 = vmatprep.subr.mxu0 0.0
  %3826 = vmatpush1.msra.mxu0 0.0
  %3827 = vmatprep.subr.mxu0 0.0
  %3828 = vmatpush1.msra.mxu0 0.0
  %3829 = vmatprep.subr.mxu0 0.0
  %3830 = vmatpush1.msra.mxu0 0.0
  %3831 = vmatprep.subr.mxu0 0.0
  %3832 = vmatpush1.msra.mxu0 0.0
  %3833 = vmatprep.subr.mxu0 0.0
  %3834 = vmatpush1.msra.mxu0 0.0
  %3835 = vmatprep.subr.mxu0 0.0
  %3836 = vmatpush1.msra.mxu0 0.0
  %3837 = vmatprep.subr.mxu0 0.0
  %3838 = vmatpush1.msra.mxu0 0.0
  %3839 = vmatprep.subr.mxu0 0.0
  %3840 = vmatpush1.msra.mxu0 0.0
  %3841 = vmatprep.subr.mxu0 0.0
  %3842 = vmatpush1.msra.mxu0 0.0
  %3843 = vmatprep.subr.mxu0 0.0
  %3844 = vmatpush1.msra.mxu0 0.0
  %3845 = vmatprep.subr.mxu0 0.0
  %3846 = vmatpush1.msra.mxu0 0.0
  %3847 = vmatprep.subr.mxu0 0.0
  %3848 = vmatpush1.msra.mxu0 0.0
  %3849 = vmatprep.subr.mxu0 0.0
  %3850 = vmatpush1.msra.mxu0 0.0
  %3851 = vmatprep.subr.mxu0 0.0
  %3852 = vmatpush1.msra.mxu0 0.0
  %3853 = vmatprep.subr.mxu0 0.0
  %3854 = vmatpush1.msra.mxu0 0.0
  %3855 = vmatprep.subr.mxu0 0.0
  %3856 = vmatpush1.msra.mxu0 0.0
  %3857 = vmatprep.subr.mxu0 0.0
  %3858 = vmatpush1.msra.mxu0 0.0
  %3859 = vmatprep.subr.mxu0 0.0
  %3860 = vmatpush1.msra.mxu0 0.0
  %3861 = vmatprep.subr.mxu0 0.0
  %3862 = vmatpush1.msra.mxu0 0.0
  %3863 = vmatprep.subr.mxu0 0.0
  %3864 = vmatpush1.msra.mxu0 0.0
  %3865 = vmatprep.subr.mxu0 0.0
  %3866 = vmatpush1.msra.mxu0 0.0
  %3867 = vmatprep.subr.mxu0 0.0
  %3868 = vmatpush1.msra.mxu0 0.0
  %3869 = vmatprep.subr.mxu0 0.0
  %3870 = vmatpush1.msra.mxu0 0.0
  %3871 = vmatprep.subr.mxu0 0.0
  %3872 = vmatpush1.msra.mxu0 0.0
  %3873 = vmatprep.subr.mxu0 0.0
  %3874 = vmatpush1.msra.mxu0 0.0
  %3875 = vmatprep.subr.mxu0 0.0
  %3876 = vmatpush1.msra.mxu0 0.0
  %3877 = vmatprep.subr.mxu0 0.0
  %3878 = vmatpush1.msra.mxu0 0.0
  %3879 = vmatprep.subr.mxu0 0.0
  %3880 = vmatpush1.msra.mxu0 0.0
  %3881 = vmatprep.subr.mxu0 0.0
  %3882 = vmatpush1.msra.mxu0 0.0
  %3883 = vmatprep.subr.mxu0 0.0
  %3884 = vmatpush1.msra.mxu0 0.0
  %3885 = vmatprep.mubr.f32.mxu0 0.0
  %3886 = vmatmul.mubr.f32.gmra.mrb[0].mxu0 %v3819
  %v3887 = vpop.f32.mrb[0].mxu0
  %v3888 = vadd.f32 0.0, %v3887
  %v3889 = vpop.f32.mrb[0].mxu0
  %3890 = vdwg.mxu0
  %s3891 = scalar_lea.vmem %s7, 96
  %v3892 = vld [vmem:[%s3891] sm:$0xff]
  %v3893 = vld [vmem:[%s3891 + $0x8] sm:$0xff]
  %v3894 = vld [vmem:[%s3891 + $0x10] sm:$0xff]
  %v3895 = vld [vmem:[%s3891 + $0x18] sm:$0xff]
  %v3896 = vld [vmem:[%s3891 + $0x20] sm:$0xff]
  %v3897 = vld [vmem:[%s3891 + $0x28] sm:$0xff]
  %v3898 = vld [vmem:[%s3891 + $0x30] sm:$0xff]
  %v3899 = vld [vmem:[%s3891 + $0x38] sm:$0xff]
  %v3900 = vld [vmem:[%s3891 + $0x40] sm:$0xff]
  %v3901 = vld [vmem:[%s3891 + $0x48] sm:$0xff]
  %v3902 = vld [vmem:[%s3891 + $0x50] sm:$0xff]
  %v3903 = vld [vmem:[%s3891 + $0x58] sm:$0xff]
  %vm3904 = vcmask 785408
  %v3906 = vsel %vm3904, %v3888, 0
  %3908 = vmatprep.subr.mxu0 0.0
  %3909 = vmatpush1.msra.mxu0 %v3892
  %3910 = vmatprep.subr.mxu0 0.0
  %3911 = vmatpush1.msra.mxu0 %v3893
  %3912 = vmatprep.subr.mxu0 0.0
  %3913 = vmatpush1.msra.mxu0 %v3894
  %3914 = vmatprep.subr.mxu0 0.0
  %3915 = vmatpush1.msra.mxu0 %v3895
  %3916 = vmatprep.subr.mxu0 0.0
  %3917 = vmatpush1.msra.mxu0 %v3896
  %3918 = vmatprep.subr.mxu0 0.0
  %3919 = vmatpush1.msra.mxu0 %v3897
  %3920 = vmatprep.subr.mxu0 0.0
  %3921 = vmatpush1.msra.mxu0 %v3898
  %3922 = vmatprep.subr.mxu0 0.0
  %3923 = vmatpush1.msra.mxu0 %v3899
  %3924 = vmatprep.subr.mxu0 0.0
  %3925 = vmatpush1.msra.mxu0 %v3900
  %3926 = vmatprep.subr.mxu0 0.0
  %3927 = vmatpush1.msra.mxu0 %v3901
  %3928 = vmatprep.subr.mxu0 0.0
  %3929 = vmatpush1.msra.mxu0 %v3902
  %3930 = vmatprep.subr.mxu0 0.0
  %3931 = vmatpush1.msra.mxu0 %v3903
  %3932 = vmatprep.subr.mxu0 0.0
  %3933 = vmatpush1.msra.mxu0 0.0
  %3934 = vmatprep.subr.mxu0 0.0
  %3935 = vmatpush1.msra.mxu0 0.0
  %3936 = vmatprep.subr.mxu0 0.0
  %3937 = vmatpush1.msra.mxu0 0.0
  %3938 = vmatprep.subr.mxu0 0.0
  %3939 = vmatpush1.msra.mxu0 0.0
  %3940 = vmatprep.subr.mxu0 0.0
  %3941 = vmatpush1.msra.mxu0 0.0
  %3942 = vmatprep.subr.mxu0 0.0
  %3943 = vmatpush1.msra.mxu0 0.0
  %3944 = vmatprep.subr.mxu0 0.0
  %3945 = vmatpush1.msra.mxu0 0.0
  %3946 = vmatprep.subr.mxu0 0.0
  %3947 = vmatpush1.msra.mxu0 0.0
  %3948 = vmatprep.subr.mxu0 0.0
  %3949 = vmatpush1.msra.mxu0 0.0
  %3950 = vmatprep.subr.mxu0 0.0
  %3951 = vmatpush1.msra.mxu0 0.0
  %3952 = vmatprep.subr.mxu0 0.0
  %3953 = vmatpush1.msra.mxu0 0.0
  %3954 = vmatprep.subr.mxu0 0.0
  %3955 = vmatpush1.msra.mxu0 0.0
  %3956 = vmatprep.subr.mxu0 0.0
  %3957 = vmatpush1.msra.mxu0 0.0
  %3958 = vmatprep.subr.mxu0 0.0
  %3959 = vmatpush1.msra.mxu0 0.0
  %3960 = vmatprep.subr.mxu0 0.0
  %3961 = vmatpush1.msra.mxu0 0.0
  %3962 = vmatprep.subr.mxu0 0.0
  %3963 = vmatpush1.msra.mxu0 0.0
  %3964 = vmatprep.subr.mxu0 0.0
  %3965 = vmatpush1.msra.mxu0 0.0
  %3966 = vmatprep.subr.mxu0 0.0
  %3967 = vmatpush1.msra.mxu0 0.0
  %3968 = vmatprep.subr.mxu0 0.0
  %3969 = vmatpush1.msra.mxu0 0.0
  %3970 = vmatprep.subr.mxu0 0.0
  %3971 = vmatpush1.msra.mxu0 0.0
  %3972 = vmatprep.mubr.f32.mxu0 0.0
  %3973 = vmatmul.mubr.f32.gmra.mrb[0].mxu0 %v3906
  %v3974 = vpop.f32.mrb[0].mxu0
  %v3975 = vadd.f32 0.0, %v3974
  %v3976 = vpop.f32.mrb[0].mxu0
  %3977 = vdwg.mxu0
  %v3979 = vsel %vm3904, %v3804, 0
  %3981 = vmatprep.subr.mxu0 0.0
  %3982 = vmatpush1.msra.mxu0 %v3807
  %3983 = vmatprep.subr.mxu0 0.0
  %3984 = vmatpush1.msra.mxu0 %v3808
  %3985 = vmatprep.subr.mxu0 0.0
  %3986 = vmatpush1.msra.mxu0 %v3809
  %3987 = vmatprep.subr.mxu0 0.0
  %3988 = vmatpush1.msra.mxu0 %v3810
  %3989 = vmatprep.subr.mxu0 0.0
  %3990 = vmatpush1.msra.mxu0 %v3811
  %3991 = vmatprep.subr.mxu0 0.0
  %3992 = vmatpush1.msra.mxu0 %v3812
  %3993 = vmatprep.subr.mxu0 0.0
  %3994 = vmatpush1.msra.mxu0 %v3813
  %3995 = vmatprep.subr.mxu0 0.0
  %3996 = vmatpush1.msra.mxu0 %v3814
  %3997 = vmatprep.subr.mxu0 0.0
  %3998 = vmatpush1.msra.mxu0 %v3815
  %3999 = vmatprep.subr.mxu0 0.0
  %4000 = vmatpush1.msra.mxu0 %v3816
  %4001 = vmatprep.subr.mxu0 0.0
  %4002 = vmatpush1.msra.mxu0 %v3817
  %4003 = vmatprep.subr.mxu0 0.0
  %4004 = vmatpush1.msra.mxu0 %v3818
  %4005 = vmatprep.subr.mxu0 0.0
  %4006 = vmatpush1.msra.mxu0 0.0
  %4007 = vmatprep.subr.mxu0 0.0
  %4008 = vmatpush1.msra.mxu0 0.0
  %4009 = vmatprep.subr.mxu0 0.0
  %4010 = vmatpush1.msra.mxu0 0.0
  %4011 = vmatprep.subr.mxu0 0.0
  %4012 = vmatpush1.msra.mxu0 0.0
  %4013 = vmatprep.subr.mxu0 0.0
  %4014 = vmatpush1.msra.mxu0 0.0
  %4015 = vmatprep.subr.mxu0 0.0
  %4016 = vmatpush1.msra.mxu0 0.0
  %4017 = vmatprep.subr.mxu0 0.0
  %4018 = vmatpush1.msra.mxu0 0.0
  %4019 = vmatprep.subr.mxu0 0.0
  %4020 = vmatpush1.msra.mxu0 0.0
  %4021 = vmatprep.subr.mxu0 0.0
  %4022 = vmatpush1.msra.mxu0 0.0
  %4023 = vmatprep.subr.mxu0 0.0
  %4024 = vmatpush1.msra.mxu0 0.0
  %4025 = vmatprep.subr.mxu0 0.0
  %4026 = vmatpush1.msra.mxu0 0.0
  %4027 = vmatprep.subr.mxu0 0.0
  %4028 = vmatpush1.msra.mxu0 0.0
  %4029 = vmatprep.subr.mxu0 0.0
  %4030 = vmatpush1.msra.mxu0 0.0
  %4031 = vmatprep.subr.mxu0 0.0
  %4032 = vmatpush1.msra.mxu0 0.0
  %4033 = vmatprep.subr.mxu0 0.0
  %4034 = vmatpush1.msra.mxu0 0.0
  %4035 = vmatprep.subr.mxu0 0.0
  %4036 = vmatpush1.msra.mxu0 0.0
  %4037 = vmatprep.subr.mxu0 0.0
  %4038 = vmatpush1.msra.mxu0 0.0
  %4039 = vmatprep.subr.mxu0 0.0
  %4040 = vmatpush1.msra.mxu0 0.0
  %4041 = vmatprep.subr.mxu0 0.0
  %4042 = vmatpush1.msra.mxu0 0.0
  %4043 = vmatprep.subr.mxu0 0.0
  %4044 = vmatpush1.msra.mxu0 0.0
  %4045 = vmatprep.mubr.f32.mxu0 0.0
  %4046 = vmatmul.mubr.f32.gmra.mrb[0].mxu0 %v3979
  %v4047 = vpop.f32.mrb[0].mxu0
  %v4048 = vadd.f32 %v3975, %v4047
  %v4049 = vpop.f32.mrb[0].mxu0
  %4050 = vdwg.mxu0
  %v4051 = vsel %vm3730, %v811, 0
  %4053 = vmatprep.subr.mxu0 0.0
  %4054 = vmatpush1.msra.mxu0 %v3735
  %4055 = vmatprep.subr.mxu0 0.0
  %4056 = vmatpush1.msra.mxu0 0.0
  %4057 = vmatprep.subr.mxu0 0.0
  %4058 = vmatpush1.msra.mxu0 0.0
  %4059 = vmatprep.subr.mxu0 0.0
  %4060 = vmatpush1.msra.mxu0 0.0
  %4061 = vmatprep.subr.mxu0 0.0
  %4062 = vmatpush1.msra.mxu0 0.0
  %4063 = vmatprep.subr.mxu0 0.0
  %4064 = vmatpush1.msra.mxu0 0.0
  %4065 = vmatprep.subr.mxu0 0.0
  %4066 = vmatpush1.msra.mxu0 0.0
  %4067 = vmatprep.subr.mxu0 0.0
  %4068 = vmatpush1.msra.mxu0 0.0
  %4069 = vmatprep.subr.mxu0 0.0
  %4070 = vmatpush1.msra.mxu0 0.0
  %4071 = vmatprep.subr.mxu0 0.0
  %4072 = vmatpush1.msra.mxu0 0.0
  %4073 = vmatprep.subr.mxu0 0.0
  %4074 = vmatpush1.msra.mxu0 0.0
  %4075 = vmatprep.subr.mxu0 0.0
  %4076 = vmatpush1.msra.mxu0 0.0
  %4077 = vmatprep.subr.mxu0 0.0
  %4078 = vmatpush1.msra.mxu0 0.0
  %4079 = vmatprep.subr.mxu0 0.0
  %4080 = vmatpush1.msra.mxu0 0.0
  %4081 = vmatprep.subr.mxu0 0.0
  %4082 = vmatpush1.msra.mxu0 0.0
  %4083 = vmatprep.subr.mxu0 0.0
  %4084 = vmatpush1.msra.mxu0 0.0
  %4085 = vmatprep.subr.mxu0 0.0
  %4086 = vmatpush1.msra.mxu0 0.0
  %4087 = vmatprep.subr.mxu0 0.0
  %4088 = vmatpush1.msra.mxu0 0.0
  %4089 = vmatprep.subr.mxu0 0.0
  %4090 = vmatpush1.msra.mxu0 0.0
  %4091 = vmatprep.subr.mxu0 0.0
  %4092 = vmatpush1.msra.mxu0 0.0
  %4093 = vmatprep.subr.mxu0 0.0
  %4094 = vmatpush1.msra.mxu0 0.0
  %4095 = vmatprep.subr.mxu0 0.0
  %4096 = vmatpush1.msra.mxu0 0.0
  %4097 = vmatprep.subr.mxu0 0.0
  %4098 = vmatpush1.msra.mxu0 0.0
  %4099 = vmatprep.subr.mxu0 0.0
  %4100 = vmatpush1.msra.mxu0 0.0
  %4101 = vmatprep.subr.mxu0 0.0
  %4102 = vmatpush1.msra.mxu0 0.0
  %4103 = vmatprep.subr.mxu0 0.0
  %4104 = vmatpush1.msra.mxu0 0.0
  %4105 = vmatprep.subr.mxu0 0.0
  %4106 = vmatpush1.msra.mxu0 0.0
  %4107 = vmatprep.subr.mxu0 0.0
  %4108 = vmatpush1.msra.mxu0 0.0
  %4109 = vmatprep.subr.mxu0 0.0
  %4110 = vmatpush1.msra.mxu0 0.0
  %4111 = vmatprep.subr.mxu0 0.0
  %4112 = vmatpush1.msra.mxu0 0.0
  %4113 = vmatprep.subr.mxu0 0.0
  %4114 = vmatpush1.msra.mxu0 0.0
  %4115 = vmatprep.subr.mxu0 0.0
  %4116 = vmatpush1.msra.mxu0 0.0
  %4117 = vmatprep.mubr.f32.mxu0 0.0
  %4118 = vmatmul.mubr.f32.gmra.mrb[0].mxu0 %v4051
  %v4119 = vpop.f32.mrb[0].mxu0
  %v4120 = vadd.f32 0.0, %v4119
  %v4121 = vpop.f32.mrb[0].mxu0
  %4122 = vdwg.mxu0
  %s4123 = scalar_lea.vmem %s7, 192
  %v4124 = vld [vmem:[%s4123] sm:$0xff]
  %v4125 = vld [vmem:[%s4123 + $0x8] sm:$0xff]
  %v4126 = vld [vmem:[%s4123 + $0x10] sm:$0xff]
  %v4127 = vld [vmem:[%s4123 + $0x18] sm:$0xff]
  %v4128 = vld [vmem:[%s4123 + $0x20] sm:$0xff]
  %v4129 = vld [vmem:[%s4123 + $0x28] sm:$0xff]
  %v4130 = vld [vmem:[%s4123 + $0x30] sm:$0xff]
  %v4131 = vld [vmem:[%s4123 + $0x38] sm:$0xff]
  %v4132 = vld [vmem:[%s4123 + $0x40] sm:$0xff]
  %v4133 = vld [vmem:[%s4123 + $0x48] sm:$0xff]
  %v4134 = vld [vmem:[%s4123 + $0x50] sm:$0xff]
  %v4135 = vld [vmem:[%s4123 + $0x58] sm:$0xff]
  %v4137 = vsel %vm3904, %v4120, 0
  %4139 = vmatprep.subr.mxu0 0.0
  %4140 = vmatpush1.msra.mxu0 %v4124
  %4141 = vmatprep.subr.mxu0 0.0
  %4142 = vmatpush1.msra.mxu0 %v4125
  %4143 = vmatprep.subr.mxu0 0.0
  %4144 = vmatpush1.msra.mxu0 %v4126
  %4145 = vmatprep.subr.mxu0 0.0
  %4146 = vmatpush1.msra.mxu0 %v4127
  %4147 = vmatprep.subr.mxu0 0.0
  %4148 = vmatpush1.msra.mxu0 %v4128
  %4149 = vmatprep.subr.mxu0 0.0
  %4150 = vmatpush1.msra.mxu0 %v4129
  %4151 = vmatprep.subr.mxu0 0.0
  %4152 = vmatpush1.msra.mxu0 %v4130
  %4153 = vmatprep.subr.mxu0 0.0
  %4154 = vmatpush1.msra.mxu0 %v4131
  %4155 = vmatprep.subr.mxu0 0.0
  %4156 = vmatpush1.msra.mxu0 %v4132
  %4157 = vmatprep.subr.mxu0 0.0
  %4158 = vmatpush1.msra.mxu0 %v4133
  %4159 = vmatprep.subr.mxu0 0.0
  %4160 = vmatpush1.msra.mxu0 %v4134
  %4161 = vmatprep.subr.mxu0 0.0
  %4162 = vmatpush1.msra.mxu0 %v4135
  %4163 = vmatprep.subr.mxu0 0.0
  %4164 = vmatpush1.msra.mxu0 0.0
  %4165 = vmatprep.subr.mxu0 0.0
  %4166 = vmatpush1.msra.mxu0 0.0
  %4167 = vmatprep.subr.mxu0 0.0
  %4168 = vmatpush1.msra.mxu0 0.0
  %4169 = vmatprep.subr.mxu0 0.0
  %4170 = vmatpush1.msra.mxu0 0.0
  %4171 = vmatprep.subr.mxu0 0.0
  %4172 = vmatpush1.msra.mxu0 0.0
  %4173 = vmatprep.subr.mxu0 0.0
  %4174 = vmatpush1.msra.mxu0 0.0
  %4175 = vmatprep.subr.mxu0 0.0
  %4176 = vmatpush1.msra.mxu0 0.0
  %4177 = vmatprep.subr.mxu0 0.0
  %4178 = vmatpush1.msra.mxu0 0.0
  %4179 = vmatprep.subr.mxu0 0.0
  %4180 = vmatpush1.msra.mxu0 0.0
  %4181 = vmatprep.subr.mxu0 0.0
  %4182 = vmatpush1.msra.mxu0 0.0
  %4183 = vmatprep.subr.mxu0 0.0
  %4184 = vmatpush1.msra.mxu0 0.0
  %4185 = vmatprep.subr.mxu0 0.0
  %4186 = vmatpush1.msra.mxu0 0.0
  %4187 = vmatprep.subr.mxu0 0.0
  %4188 = vmatpush1.msra.mxu0 0.0
  %4189 = vmatprep.subr.mxu0 0.0
  %4190 = vmatpush1.msra.mxu0 0.0
  %4191 = vmatprep.subr.mxu0 0.0
  %4192 = vmatpush1.msra.mxu0 0.0
  %4193 = vmatprep.subr.mxu0 0.0
  %4194 = vmatpush1.msra.mxu0 0.0
  %4195 = vmatprep.subr.mxu0 0.0
  %4196 = vmatpush1.msra.mxu0 0.0
  %4197 = vmatprep.subr.mxu0 0.0
  %4198 = vmatpush1.msra.mxu0 0.0
  %4199 = vmatprep.subr.mxu0 0.0
  %4200 = vmatpush1.msra.mxu0 0.0
  %4201 = vmatprep.subr.mxu0 0.0
  %4202 = vmatpush1.msra.mxu0 0.0
  %4203 = vmatprep.mubr.f32.mxu0 0.0
  %4204 = vmatmul.mubr.f32.gmra.mrb[0].mxu0 %v4137
  %v4205 = vpop.f32.mrb[0].mxu0
  %v4206 = vadd.f32 0.0, %v4205
  %v4207 = vpop.f32.mrb[0].mxu0
  %4208 = vdwg.mxu0
  %v4209 = vadd.f32 %v4048, %v4206
  %v4210 = vld [vmem:[%s8] sm:$0x1]
  %v4212 = vlaneseq
  %v4213 = vshrl.u32 %v4212, 7
  %v4214 = vsub.s32 0, %v4213
  %v4215 = vrot.slane %v4210, %v4214
  %v4217 = vadd.f32 %v4209, %v4215
  %v4218 = vtanh.pop %v4217
  %vm4219 = vcmask 31744
  %v4220 = vsel %vm4219, %v60, 0
  %vm4222 = vcmask 1043456
  %v4224 = vsel %vm4222, %v4218, 0
  %4226 = vmatprep.subr.mxu0 0.0
  %4227 = vmatpush1.msra.mxu0 %v4224
  %4228 = vmatprep.subr.mxu0 0.0
  %4229 = vmatpush1.msra.mxu0 0.0
  %4230 = vmatprep.subr.mxu0 0.0
  %4231 = vmatpush1.msra.mxu0 0.0
  %4232 = vmatprep.subr.mxu0 0.0
  %4233 = vmatpush1.msra.mxu0 0.0
  %4234 = vmatprep.subr.mxu0 0.0
  %4235 = vmatpush1.msra.mxu0 0.0
  %4236 = vmatprep.subr.mxu0 0.0
  %4237 = vmatpush1.msra.mxu0 0.0
  %4238 = vmatprep.subr.mxu0 0.0
  %4239 = vmatpush1.msra.mxu0 0.0
  %4240 = vmatprep.subr.mxu0 0.0
  %4241 = vmatpush1.msra.mxu0 0.0
  %4242 = vmatprep.subr.mxu0 0.0
  %4243 = vmatpush1.msra.mxu0 0.0
  %4244 = vmatprep.subr.mxu0 0.0
  %4245 = vmatpush1.msra.mxu0 0.0
  %4246 = vmatprep.subr.mxu0 0.0
  %4247 = vmatpush1.msra.mxu0 0.0
  %4248 = vmatprep.subr.mxu0 0.0
  %4249 = vmatpush1.msra.mxu0 0.0
  %4250 = vmatprep.subr.mxu0 0.0
  %4251 = vmatpush1.msra.mxu0 0.0
  %4252 = vmatprep.subr.mxu0 0.0
  %4253 = vmatpush1.msra.mxu0 0.0
  %4254 = vmatprep.subr.mxu0 0.0
  %4255 = vmatpush1.msra.mxu0 0.0
  %4256 = vmatprep.subr.mxu0 0.0
  %4257 = vmatpush1.msra.mxu0 0.0
  %4258 = vmatprep.subr.mxu0 0.0
  %4259 = vmatpush1.msra.mxu0 0.0
  %4260 = vmatprep.subr.mxu0 0.0
  %4261 = vmatpush1.msra.mxu0 0.0
  %4262 = vmatprep.subr.mxu0 0.0
  %4263 = vmatpush1.msra.mxu0 0.0
  %4264 = vmatprep.subr.mxu0 0.0
  %4265 = vmatpush1.msra.mxu0 0.0
  %4266 = vmatprep.subr.mxu0 0.0
  %4267 = vmatpush1.msra.mxu0 0.0
  %4268 = vmatprep.subr.mxu0 0.0
  %4269 = vmatpush1.msra.mxu0 0.0
  %4270 = vmatprep.subr.mxu0 0.0
  %4271 = vmatpush1.msra.mxu0 0.0
  %4272 = vmatprep.subr.mxu0 0.0
  %4273 = vmatpush1.msra.mxu0 0.0
  %4274 = vmatprep.subr.mxu0 0.0
  %4275 = vmatpush1.msra.mxu0 0.0
  %4276 = vmatprep.subr.mxu0 0.0
  %4277 = vmatpush1.msra.mxu0 0.0
  %4278 = vmatprep.subr.mxu0 0.0
  %4279 = vmatpush1.msra.mxu0 0.0
  %4280 = vmatprep.subr.mxu0 0.0
  %4281 = vmatpush1.msra.mxu0 0.0
  %4282 = vmatprep.subr.mxu0 0.0
  %4283 = vmatpush1.msra.mxu0 0.0
  %4284 = vmatprep.subr.mxu0 0.0
  %4285 = vmatpush1.msra.mxu0 0.0
  %4286 = vmatprep.subr.mxu0 0.0
  %4287 = vmatpush1.msra.mxu0 0.0
  %4288 = vmatprep.subr.mxu0 0.0
  %4289 = vmatpush1.msra.mxu0 0.0
  %4290 = vmatprep.mubr.f32.mxu0 0.0
  %4291 = vmatmul.mubr.f32.gmra.mrb[0].mxu0 %v4220
  %v4292 = vpop.f32.mrb[0].mxu0
  %v4293 = vadd.f32 0.0, %v4292
  %v4294 = vpop.f32.mrb[0].mxu0
  %4295 = vdwg.mxu0
  %v4296 = vld [vmem:[%s9] sm:$0xff]
  %v4297 = vld [vmem:[%s9 + $0x8] sm:$0xff]
  %v4298 = vld [vmem:[%s9 + $0x10] sm:$0xff]
  %v4299 = vld [vmem:[%s9 + $0x18] sm:$0xff]
  %v4300 = vld [vmem:[%s9 + $0x20] sm:$0xff]
  %v4301 = vld [vmem:[%s9 + $0x28] sm:$0xff]
  %v4302 = vld [vmem:[%s9 + $0x30] sm:$0xff]
  %v4303 = vld [vmem:[%s9 + $0x38] sm:$0xff]
  %v4304 = vsel %vm4219, %v182, 0
  %4306 = vmatprep.subr.mxu0 0.0
  %4307 = vmatpush1.msra.mxu0 %v4224
  %4308 = vmatprep.subr.mxu0 0.0
  %4309 = vmatpush1.msra.mxu0 0.0
  %4310 = vmatprep.subr.mxu0 0.0
  %4311 = vmatpush1.msra.mxu0 0.0
  %4312 = vmatprep.subr.mxu0 0.0
  %4313 = vmatpush1.msra.mxu0 0.0
  %4314 = vmatprep.subr.mxu0 0.0
  %4315 = vmatpush1.msra.mxu0 0.0
  %4316 = vmatprep.subr.mxu0 0.0
  %4317 = vmatpush1.msra.mxu0 0.0
  %4318 = vmatprep.subr.mxu0 0.0
  %4319 = vmatpush1.msra.mxu0 0.0
  %4320 = vmatprep.subr.mxu0 0.0
  %4321 = vmatpush1.msra.mxu0 0.0
  %4322 = vmatprep.subr.mxu0 0.0
  %4323 = vmatpush1.msra.mxu0 0.0
  %4324 = vmatprep.subr.mxu0 0.0
  %4325 = vmatpush1.msra.mxu0 0.0
  %4326 = vmatprep.subr.mxu0 0.0
  %4327 = vmatpush1.msra.mxu0 0.0
  %4328 = vmatprep.subr.mxu0 0.0
  %4329 = vmatpush1.msra.mxu0 0.0
  %4330 = vmatprep.subr.mxu0 0.0
  %4331 = vmatpush1.msra.mxu0 0.0
  %4332 = vmatprep.subr.mxu0 0.0
  %4333 = vmatpush1.msra.mxu0 0.0
  %4334 = vmatprep.subr.mxu0 0.0
  %4335 = vmatpush1.msra.mxu0 0.0
  %4336 = vmatprep.subr.mxu0 0.0
  %4337 = vmatpush1.msra.mxu0 0.0
  %4338 = vmatprep.subr.mxu0 0.0
  %4339 = vmatpush1.msra.mxu0 0.0
  %4340 = vmatprep.subr.mxu0 0.0
  %4341 = vmatpush1.msra.mxu0 0.0
  %4342 = vmatprep.subr.mxu0 0.0
  %4343 = vmatpush1.msra.mxu0 0.0
  %4344 = vmatprep.subr.mxu0 0.0
  %4345 = vmatpush1.msra.mxu0 0.0
  %4346 = vmatprep.subr.mxu0 0.0
  %4347 = vmatpush1.msra.mxu0 0.0
  %4348 = vmatprep.subr.mxu0 0.0
  %4349 = vmatpush1.msra.mxu0 0.0
  %4350 = vmatprep.subr.mxu0 0.0
  %4351 = vmatpush1.msra.mxu0 0.0
  %4352 = vmatprep.subr.mxu0 0.0
  %4353 = vmatpush1.msra.mxu0 0.0
  %4354 = vmatprep.subr.mxu0 0.0
  %4355 = vmatpush1.msra.mxu0 0.0
  %4356 = vmatprep.subr.mxu0 0.0
  %4357 = vmatpush1.msra.mxu0 0.0
  %4358 = vmatprep.subr.mxu0 0.0
  %4359 = vmatpush1.msra.mxu0 0.0
  %4360 = vmatprep.subr.mxu0 0.0
  %4361 = vmatpush1.msra.mxu0 0.0
  %4362 = vmatprep.subr.mxu0 0.0
  %4363 = vmatpush1.msra.mxu0 0.0
  %4364 = vmatprep.subr.mxu0 0.0
  %4365 = vmatpush1.msra.mxu0 0.0
  %4366 = vmatprep.subr.mxu0 0.0
  %4367 = vmatpush1.msra.mxu0 0.0
  %4368 = vmatprep.subr.mxu0 0.0
  %4369 = vmatpush1.msra.mxu0 0.0
  %4370 = vmatprep.mubr.f32.mxu0 0.0
  %4371 = vmatmul.mubr.f32.gmra.mrb[0].mxu0 %v4304
  %v4372 = vpop.f32.mrb[0].mxu0
  %v4373 = vadd.f32 0.0, %v4372
  %v4374 = vpop.f32.mrb[0].mxu0
  %4375 = vdwg.mxu0
  %s4376 = scalar_lea.vmem %s9, 64
  %v4377 = vld [vmem:[%s4376] sm:$0xff]
  %v4378 = vld [vmem:[%s4376 + $0x8] sm:$0xff]
  %v4379 = vld [vmem:[%s4376 + $0x10] sm:$0xff]
  %v4380 = vld [vmem:[%s4376 + $0x18] sm:$0xff]
  %v4381 = vld [vmem:[%s4376 + $0x20] sm:$0xff]
  %v4382 = vld [vmem:[%s4376 + $0x28] sm:$0xff]
  %v4383 = vld [vmem:[%s4376 + $0x30] sm:$0xff]
  %v4384 = vld [vmem:[%s4376 + $0x38] sm:$0xff]
  %vm4385 = vcmask 523264
  %v4387 = vsel %vm4385, %v4373, 0
  %4389 = vmatprep.subr.mxu0 0.0
  %4390 = vmatpush1.msra.mxu0 %v4377
  %4391 = vmatprep.subr.mxu0 0.0
  %4392 = vmatpush1.msra.mxu0 %v4378
  %4393 = vmatprep.subr.mxu0 0.0
  %4394 = vmatpush1.msra.mxu0 %v4379
  %4395 = vmatprep.subr.mxu0 0.0
  %4396 = vmatpush1.msra.mxu0 %v4380
  %4397 = vmatprep.subr.mxu0 0.0
  %4398 = vmatpush1.msra.mxu0 %v4381
  %4399 = vmatprep.subr.mxu0 0.0
  %4400 = vmatpush1.msra.mxu0 %v4382
  %4401 = vmatprep.subr.mxu0 0.0
  %4402 = vmatpush1.msra.mxu0 %v4383
  %4403 = vmatprep.subr.mxu0 0.0
  %4404 = vmatpush1.msra.mxu0 %v4384
  %4405 = vmatprep.subr.mxu0 0.0
  %4406 = vmatpush1.msra.mxu0 0.0
  %4407 = vmatprep.subr.mxu0 0.0
  %4408 = vmatpush1.msra.mxu0 0.0
  %4409 = vmatprep.subr.mxu0 0.0
  %4410 = vmatpush1.msra.mxu0 0.0
  %4411 = vmatprep.subr.mxu0 0.0
  %4412 = vmatpush1.msra.mxu0 0.0
  %4413 = vmatprep.subr.mxu0 0.0
  %4414 = vmatpush1.msra.mxu0 0.0
  %4415 = vmatprep.subr.mxu0 0.0
  %4416 = vmatpush1.msra.mxu0 0.0
  %4417 = vmatprep.subr.mxu0 0.0
  %4418 = vmatpush1.msra.mxu0 0.0
  %4419 = vmatprep.subr.mxu0 0.0
  %4420 = vmatpush1.msra.mxu0 0.0
  %4421 = vmatprep.subr.mxu0 0.0
  %4422 = vmatpush1.msra.mxu0 0.0
  %4423 = vmatprep.subr.mxu0 0.0
  %4424 = vmatpush1.msra.mxu0 0.0
  %4425 = vmatprep.subr.mxu0 0.0
  %4426 = vmatpush1.msra.mxu0 0.0
  %4427 = vmatprep.subr.mxu0 0.0
  %4428 = vmatpush1.msra.mxu0 0.0
  %4429 = vmatprep.subr.mxu0 0.0
  %4430 = vmatpush1.msra.mxu0 0.0
  %4431 = vmatprep.subr.mxu0 0.0
  %4432 = vmatpush1.msra.mxu0 0.0
  %4433 = vmatprep.subr.mxu0 0.0
  %4434 = vmatpush1.msra.mxu0 0.0
  %4435 = vmatprep.subr.mxu0 0.0
  %4436 = vmatpush1.msra.mxu0 0.0
  %4437 = vmatprep.subr.mxu0 0.0
  %4438 = vmatpush1.msra.mxu0 0.0
  %4439 = vmatprep.subr.mxu0 0.0
  %4440 = vmatpush1.msra.mxu0 0.0
  %4441 = vmatprep.subr.mxu0 0.0
  %4442 = vmatpush1.msra.mxu0 0.0
  %4443 = vmatprep.subr.mxu0 0.0
  %4444 = vmatpush1.msra.mxu0 0.0
  %4445 = vmatprep.subr.mxu0 0.0
  %4446 = vmatpush1.msra.mxu0 0.0
  %4447 = vmatprep.subr.mxu0 0.0
  %4448 = vmatpush1.msra.mxu0 0.0
  %4449 = vmatprep.subr.mxu0 0.0
  %4450 = vmatpush1.msra.mxu0 0.0
  %4451 = vmatprep.subr.mxu0 0.0
  %4452 = vmatpush1.msra.mxu0 0.0
  %4453 = vmatprep.mubr.f32.mxu0 0.0
  %4454 = vmatmul.mubr.f32.gmra.mrb[0].mxu0 %v4387
  %v4455 = vpop.f32.mrb[0].mxu0
  %v4456 = vadd.f32 0.0, %v4455
  %v4457 = vpop.f32.mrb[0].mxu0
  %4458 = vdwg.mxu0
  %v4460 = vsel %vm4385, %v4293, 0
  %4462 = vmatprep.subr.mxu0 0.0
  %4463 = vmatpush1.msra.mxu0 %v4296
  %4464 = vmatprep.subr.mxu0 0.0
  %4465 = vmatpush1.msra.mxu0 %v4297
  %4466 = vmatprep.subr.mxu0 0.0
  %4467 = vmatpush1.msra.mxu0 %v4298
  %4468 = vmatprep.subr.mxu0 0.0
  %4469 = vmatpush1.msra.mxu0 %v4299
  %4470 = vmatprep.subr.mxu0 0.0
  %4471 = vmatpush1.msra.mxu0 %v4300
  %4472 = vmatprep.subr.mxu0 0.0
  %4473 = vmatpush1.msra.mxu0 %v4301
  %4474 = vmatprep.subr.mxu0 0.0
  %4475 = vmatpush1.msra.mxu0 %v4302
  %4476 = vmatprep.subr.mxu0 0.0
  %4477 = vmatpush1.msra.mxu0 %v4303
  %4478 = vmatprep.subr.mxu0 0.0
  %4479 = vmatpush1.msra.mxu0 0.0
  %4480 = vmatprep.subr.mxu0 0.0
  %4481 = vmatpush1.msra.mxu0 0.0
  %4482 = vmatprep.subr.mxu0 0.0
  %4483 = vmatpush1.msra.mxu0 0.0
  %4484 = vmatprep.subr.mxu0 0.0
  %4485 = vmatpush1.msra.mxu0 0.0
  %4486 = vmatprep.subr.mxu0 0.0
  %4487 = vmatpush1.msra.mxu0 0.0
  %4488 = vmatprep.subr.mxu0 0.0
  %4489 = vmatpush1.msra.mxu0 0.0
  %4490 = vmatprep.subr.mxu0 0.0
  %4491 = vmatpush1.msra.mxu0 0.0
  %4492 = vmatprep.subr.mxu0 0.0
  %4493 = vmatpush1.msra.mxu0 0.0
  %4494 = vmatprep.subr.mxu0 0.0
  %4495 = vmatpush1.msra.mxu0 0.0
  %4496 = vmatprep.subr.mxu0 0.0
  %4497 = vmatpush1.msra.mxu0 0.0
  %4498 = vmatprep.subr.mxu0 0.0
  %4499 = vmatpush1.msra.mxu0 0.0
  %4500 = vmatprep.subr.mxu0 0.0
  %4501 = vmatpush1.msra.mxu0 0.0
  %4502 = vmatprep.subr.mxu0 0.0
  %4503 = vmatpush1.msra.mxu0 0.0
  %4504 = vmatprep.subr.mxu0 0.0
  %4505 = vmatpush1.msra.mxu0 0.0
  %4506 = vmatprep.subr.mxu0 0.0
  %4507 = vmatpush1.msra.mxu0 0.0
  %4508 = vmatprep.subr.mxu0 0.0
  %4509 = vmatpush1.msra.mxu0 0.0
  %4510 = vmatprep.subr.mxu0 0.0
  %4511 = vmatpush1.msra.mxu0 0.0
  %4512 = vmatprep.subr.mxu0 0.0
  %4513 = vmatpush1.msra.mxu0 0.0
  %4514 = vmatprep.subr.mxu0 0.0
  %4515 = vmatpush1.msra.mxu0 0.0
  %4516 = vmatprep.subr.mxu0 0.0
  %4517 = vmatpush1.msra.mxu0 0.0
  %4518 = vmatprep.subr.mxu0 0.0
  %4519 = vmatpush1.msra.mxu0 0.0
  %4520 = vmatprep.subr.mxu0 0.0
  %4521 = vmatpush1.msra.mxu0 0.0
  %4522 = vmatprep.subr.mxu0 0.0
  %4523 = vmatpush1.msra.mxu0 0.0
  %4524 = vmatprep.subr.mxu0 0.0
  %4525 = vmatpush1.msra.mxu0 0.0
  %4526 = vmatprep.mubr.f32.mxu0 0.0
  %4527 = vmatmul.mubr.f32.gmra.mrb[0].mxu0 %v4460
  %v4528 = vpop.f32.mrb[0].mxu0
  %v4529 = vadd.f32 %v4456, %v4528
  %v4530 = vpop.f32.mrb[0].mxu0
  %4531 = vdwg.mxu0
  %v4532 = vsel %vm4219, %v811, 0
  %4534 = vmatprep.subr.mxu0 0.0
  %4535 = vmatpush1.msra.mxu0 %v4224
  %4536 = vmatprep.subr.mxu0 0.0
  %4537 = vmatpush1.msra.mxu0 0.0
  %4538 = vmatprep.subr.mxu0 0.0
  %4539 = vmatpush1.msra.mxu0 0.0
  %4540 = vmatprep.subr.mxu0 0.0
  %4541 = vmatpush1.msra.mxu0 0.0
  %4542 = vmatprep.subr.mxu0 0.0
  %4543 = vmatpush1.msra.mxu0 0.0
  %4544 = vmatprep.subr.mxu0 0.0
  %4545 = vmatpush1.msra.mxu0 0.0
  %4546 = vmatprep.subr.mxu0 0.0
  %4547 = vmatpush1.msra.mxu0 0.0
  %4548 = vmatprep.subr.mxu0 0.0
  %4549 = vmatpush1.msra.mxu0 0.0
  %4550 = vmatprep.subr.mxu0 0.0
  %4551 = vmatpush1.msra.mxu0 0.0
  %4552 = vmatprep.subr.mxu0 0.0
  %4553 = vmatpush1.msra.mxu0 0.0
  %4554 = vmatprep.subr.mxu0 0.0
  %4555 = vmatpush1.msra.mxu0 0.0
  %4556 = vmatprep.subr.mxu0 0.0
  %4557 = vmatpush1.msra.mxu0 0.0
  %4558 = vmatprep.subr.mxu0 0.0
  %4559 = vmatpush1.msra.mxu0 0.0
  %4560 = vmatprep.subr.mxu0 0.0
  %4561 = vmatpush1.msra.mxu0 0.0
  %4562 = vmatprep.subr.mxu0 0.0
  %4563 = vmatpush1.msra.mxu0 0.0
  %4564 = vmatprep.subr.mxu0 0.0
  %4565 = vmatpush1.msra.mxu0 0.0
  %4566 = vmatprep.subr.mxu0 0.0
  %4567 = vmatpush1.msra.mxu0 0.0
  %4568 = vmatprep.subr.mxu0 0.0
  %4569 = vmatpush1.msra.mxu0 0.0
  %4570 = vmatprep.subr.mxu0 0.0
  %4571 = vmatpush1.msra.mxu0 0.0
  %4572 = vmatprep.subr.mxu0 0.0
  %4573 = vmatpush1.msra.mxu0 0.0
  %4574 = vmatprep.subr.mxu0 0.0
  %4575 = vmatpush1.msra.mxu0 0.0
  %4576 = vmatprep.subr.mxu0 0.0
  %4577 = vmatpush1.msra.mxu0 0.0
  %4578 = vmatprep.subr.mxu0 0.0
  %4579 = vmatpush1.msra.mxu0 0.0
  %4580 = vmatprep.subr.mxu0 0.0
  %4581 = vmatpush1.msra.mxu0 0.0
  %4582 = vmatprep.subr.mxu0 0.0
  %4583 = vmatpush1.msra.mxu0 0.0
  %4584 = vmatprep.subr.mxu0 0.0
  %4585 = vmatpush1.msra.mxu0 0.0
  %4586 = vmatprep.subr.mxu0 0.0
  %4587 = vmatpush1.msra.mxu0 0.0
  %4588 = vmatprep.subr.mxu0 0.0
  %4589 = vmatpush1.msra.mxu0 0.0
  %4590 = vmatprep.subr.mxu0 0.0
  %4591 = vmatpush1.msra.mxu0 0.0
  %4592 = vmatprep.subr.mxu0 0.0
  %4593 = vmatpush1.msra.mxu0 0.0
  %4594 = vmatprep.subr.mxu0 0.0
  %4595 = vmatpush1.msra.mxu0 0.0
  %4596 = vmatprep.subr.mxu0 0.0
  %4597 = vmatpush1.msra.mxu0 0.0
  %4598 = vmatprep.mubr.f32.mxu0 0.0
  %4599 = vmatmul.mubr.f32.gmra.mrb[0].mxu0 %v4532
  %v4600 = vpop.f32.mrb[0].mxu0
  %v4601 = vadd.f32 0.0, %v4600
  %v4602 = vpop.f32.mrb[0].mxu0
  %4603 = vdwg.mxu0
  %s4604 = scalar_lea.vmem %s9, 128
  %v4605 = vld [vmem:[%s4604] sm:$0xff]
  %v4606 = vld [vmem:[%s4604 + $0x8] sm:$0xff]
  %v4607 = vld [vmem:[%s4604 + $0x10] sm:$0xff]
  %v4608 = vld [vmem:[%s4604 + $0x18] sm:$0xff]
  %v4609 = vld [vmem:[%s4604 + $0x20] sm:$0xff]
  %v4610 = vld [vmem:[%s4604 + $0x28] sm:$0xff]
  %v4611 = vld [vmem:[%s4604 + $0x30] sm:$0xff]
  %v4612 = vld [vmem:[%s4604 + $0x38] sm:$0xff]
  %v4614 = vsel %vm4385, %v4601, 0
  %4616 = vmatprep.subr.mxu0 0.0
  %4617 = vmatpush1.msra.mxu0 %v4605
  %4618 = vmatprep.subr.mxu0 0.0
  %4619 = vmatpush1.msra.mxu0 %v4606
  %4620 = vmatprep.subr.mxu0 0.0
  %4621 = vmatpush1.msra.mxu0 %v4607
  %4622 = vmatprep.subr.mxu0 0.0
  %4623 = vmatpush1.msra.mxu0 %v4608
  %4624 = vmatprep.subr.mxu0 0.0
  %4625 = vmatpush1.msra.mxu0 %v4609
  %4626 = vmatprep.subr.mxu0 0.0
  %4627 = vmatpush1.msra.mxu0 %v4610
  %4628 = vmatprep.subr.mxu0 0.0
  %4629 = vmatpush1.msra.mxu0 %v4611
  %4630 = vmatprep.subr.mxu0 0.0
  %4631 = vmatpush1.msra.mxu0 %v4612
  %4632 = vmatprep.subr.mxu0 0.0
  %4633 = vmatpush1.msra.mxu0 0.0
  %4634 = vmatprep.subr.mxu0 0.0
  %4635 = vmatpush1.msra.mxu0 0.0
  %4636 = vmatprep.subr.mxu0 0.0
  %4637 = vmatpush1.msra.mxu0 0.0
  %4638 = vmatprep.subr.mxu0 0.0
  %4639 = vmatpush1.msra.mxu0 0.0
  %4640 = vmatprep.subr.mxu0 0.0
  %4641 = vmatpush1.msra.mxu0 0.0
  %4642 = vmatprep.subr.mxu0 0.0
  %4643 = vmatpush1.msra.mxu0 0.0
  %4644 = vmatprep.subr.mxu0 0.0
  %4645 = vmatpush1.msra.mxu0 0.0
  %4646 = vmatprep.subr.mxu0 0.0
  %4647 = vmatpush1.msra.mxu0 0.0
  %4648 = vmatprep.subr.mxu0 0.0
  %4649 = vmatpush1.msra.mxu0 0.0
  %4650 = vmatprep.subr.mxu0 0.0
  %4651 = vmatpush1.msra.mxu0 0.0
  %4652 = vmatprep.subr.mxu0 0.0
  %4653 = vmatpush1.msra.mxu0 0.0
  %4654 = vmatprep.subr.mxu0 0.0
  %4655 = vmatpush1.msra.mxu0 0.0
  %4656 = vmatprep.subr.mxu0 0.0
  %4657 = vmatpush1.msra.mxu0 0.0
  %4658 = vmatprep.subr.mxu0 0.0
  %4659 = vmatpush1.msra.mxu0 0.0
  %4660 = vmatprep.subr.mxu0 0.0
  %4661 = vmatpush1.msra.mxu0 0.0
  %4662 = vmatprep.subr.mxu0 0.0
  %4663 = vmatpush1.msra.mxu0 0.0
  %4664 = vmatprep.subr.mxu0 0.0
  %4665 = vmatpush1.msra.mxu0 0.0
  %4666 = vmatprep.subr.mxu0 0.0
  %4667 = vmatpush1.msra.mxu0 0.0
  %4668 = vmatprep.subr.mxu0 0.0
  %4669 = vmatpush1.msra.mxu0 0.0
  %4670 = vmatprep.subr.mxu0 0.0
  %4671 = vmatpush1.msra.mxu0 0.0
  %4672 = vmatprep.subr.mxu0 0.0
  %4673 = vmatpush1.msra.mxu0 0.0
  %4674 = vmatprep.subr.mxu0 0.0
  %4675 = vmatpush1.msra.mxu0 0.0
  %4676 = vmatprep.subr.mxu0 0.0
  %4677 = vmatpush1.msra.mxu0 0.0
  %4678 = vmatprep.subr.mxu0 0.0
  %4679 = vmatpush1.msra.mxu0 0.0
  %4680 = vmatprep.mubr.f32.mxu0 0.0
  %4681 = vmatmul.mubr.f32.gmra.mrb[0].mxu0 %v4614
  %v4682 = vpop.f32.mrb[0].mxu0
  %v4683 = vadd.f32 0.0, %v4682
  %v4684 = vpop.f32.mrb[0].mxu0
  %4685 = vdwg.mxu0
  %v4686 = vadd.f32 %v4529, %v4683
  %v4687 = vld [vmem:[%s10] sm:$0x1]
  %v4689 = vlaneseq
  %v4690 = vshrl.u32 %v4689, 7
  %v4691 = vsub.s32 0, %v4690
  %v4692 = vrot.slane %v4687, %v4691
  %v4694 = vadd.f32 %v4686, %v4692
  %v4695 = vsub.f32 0.0, %v4694
  %v4696 = vmul.f32 %v4695, 1.442695
  %v4697 = vpow.pop %v4696
  %v4698 = vadd.f32 %v4697, 1.0
  %v4699 = vrcp.pop %v4698
  %v4700 = vmul.f32 1.0, %v4699
  %vm4701 = vcmask 387072
  %4702 = vst.msk [vmem:[%s11] sm:$0x7] %vm4701, %v4700
  // Predicated region
  $region46: #{model_forward.1} parent=0 // pred_check
    _
  $region47: #{model_forward.1} parent=0 // pred_check_branch
    %4704 = sbr.rel (0) target = $region49
  $region48: #{model_forward.1} parent=0 // pred_region
    _
  $region49: #{model_forward.1} parent=0 // pred_fallthru
    _
  // Predicated region
  $region50: #{model_forward.1} parent=0 // pred_check
    _
  $region51: #{model_forward.1} parent=0 // pred_check_branch
    %4706 = sbr.rel (0) target = $region53
  $region52: #{model_forward.1} parent=0 // pred_region
    _
  $region53: #{model_forward.1} parent=0 // pred_fallthru
    _

</llo_original>
